<compile_context>
chip_gen: v5e
topology: v5e:2x2
jax: 0.10.0
libtpu: 0.0.40
codegen_flags: <defaults>
</compile_context>

<pallas_src>
import functools
import math

import jax
import jax.numpy as jnp
from jax import lax
from jax.experimental import pallas as pl
from jax.experimental.pallas import tpu as pltpu

# ---------------- small synthetic config (KoBERT shrunk down) ----------------
HIDDEN = 32            # config.hidden_size
NUM_HEADS = 2          # num_attention_heads
HEAD_DIM = HIDDEN // NUM_HEADS
NUM_LAYERS = 2         # num_hidden_layers
INTER = 64             # intermediate_size
VOCAB = 100            # vocab_size
MAX_POS = 32           # max_position_embeddings
TYPE_VOCAB = 2         # type_vocab_size
NUM_CLASSES = 5        # num NER tags
NUM_CLASSES_PAD = 8    # lane-padded emissions width (sliced back to 5 for CRF)
PAD_ID = 1             # KoBERT [PAD] id
LN_EPS = 1e-12
LSTM_H = HIDDEN // 2   # per-direction LSTM hidden size


# ============================ in-kernel math helpers ==========================

def _sigmoid(x):
    # hand-rolled logistic kept in f32 (safe Mosaic lowering on all generations)
    return 1.0 / (1.0 + jnp.exp(-x))


def _erf(x):
    # Abramowitz & Stegun 7.1.26 rational approx (|err| < 1.5e-7); used because
    # lax.erf may not have a Mosaic lowering rule.  Only exp/abs/where/VPU math.
    t = 1.0 / (1.0 + 0.3275911 * jnp.abs(x))
    poly = t * (0.254829592 + t * (-0.284496736 + t * (1.421413741
                + t * (-1.453152027 + t * 1.061405429))))
    y = 1.0 - poly * jnp.exp(-x * x)
    return jnp.where(x >= 0.0, y, -y)


def _gelu(x):
    # exact (erf) GELU, matching hidden_act='gelu'
    return 0.5 * x * (1.0 + _erf(x * 0.7071067811865476))


def _ln(x, g, b):
    mu = jnp.mean(x, axis=-1, keepdims=True)
    var = jnp.mean((x - mu) * (x - mu), axis=-1, keepdims=True)
    return (x - mu) * lax.rsqrt(var + LN_EPS) * g + b


def _full_spec(shape):
    n = len(shape)
    return pl.BlockSpec(shape, lambda i: (0,) * n)


# ============================== fused Pallas kernel ===========================

def _fused_forward_kernel(B, T,
                          emb_ref, maskb_ref,
                          embg_ref, embb_ref,
                          wqkv_ref, bqkv_ref, wo_ref, bo_ref,
                          ln1g_ref, ln1b_ref, wi_ref, bi_ref,
                          wo2_ref, bo2_ref, ln2g_ref, ln2b_ref,
                          wih_ref, bih_ref, whh_ref,
                          wff_ref, bff_ref,
                          emis_ref):
    H = HIDDEN
    nh = NUM_HEADS
    hd = HEAD_DIM
    Hd = LSTM_H

    # ---- embedding LayerNorm (fused; was a standalone launch before) ----
    x = _ln(emb_ref[...], embg_ref[...], embb_ref[...])          # (B*T, H)
    key_bias = maskb_ref[...]                                    # (B*nh, 1, T)

    # ---- BERT encoder: all layers resident in VMEM, static layer loop ----
    for l in range(NUM_LAYERS):
        # fused QKV projection on the flattened batch*time slab
        # (1/sqrt(head_dim) already folded into the Q weights/bias)
        qkv = (jnp.dot(x, wqkv_ref[l], preferred_element_type=jnp.float32)
               + bqkv_ref[l])                                    # (B*T, 3H)

        # head-batched q/k/v: (B*nh, T, hd), b-major / head-minor
        qs, ks, vs = [], [], []
        for b in range(B):
            rows = qkv[b * T:(b + 1) * T]                        # (T, 3H)
            for h in range(nh):
                qs.append(rows[None, :, h * hd:(h + 1) * hd])
                ks.append(rows[None, :, H + h * hd:H + (h + 1) * hd])
                vs.append(rows[None, :, 2 * H + h * hd:2 * H + (h + 1) * hd])
        q = jnp.concatenate(qs, axis=0)
        k = jnp.concatenate(ks, axis=0)
        v = jnp.concatenate(vs, axis=0)

        # one batched contraction for scores and one for PV over all (b, h)
        s = jnp.einsum('bqd,bkd->bqk', q, k,
                       preferred_element_type=jnp.float32) + key_bias
        s = s - jnp.max(s, axis=-1, keepdims=True)
        e = jnp.exp(s)
        p = e * pl.reciprocal(jnp.sum(e, axis=-1, keepdims=True), approx=True)
        ctx = jnp.einsum('bqk,bkd->bqd', p, v,
                         preferred_element_type=jnp.float32)     # (B*nh, T, hd)

        # back to the flattened (B*T, H) layout
        ctx_rows = []
        for b in range(B):
            ctx_rows.append(jnp.concatenate(
                [ctx[b * nh + h] for h in range(nh)], axis=-1))  # (T, H)
        ctx2 = jnp.concatenate(ctx_rows, axis=0)                 # (B*T, H)

        attn = (jnp.dot(ctx2, wo_ref[l], preferred_element_type=jnp.float32)
                + bo_ref[l])
        x1 = _ln(x + attn, ln1g_ref[l], ln1b_ref[l])             # residual + LN

        inter = _gelu(jnp.dot(x1, wi_ref[l], preferred_element_type=jnp.float32)
                      + bi_ref[l])                               # bias + GELU fused
        ffn = (jnp.dot(inter, wo2_ref[l], preferred_element_type=jnp.float32)
               + bo2_ref[l])
        x = _ln(x1 + ffn, ln2g_ref[l], ln2b_ref[l])

    # ---- BiLSTM (both directions fused) + position_wise_ff emissions ----
    # Input projections hoisted out of the recurrence: one lane-dense
    # (B*T, H) @ (H, 128) matmul covers i,f,g,o gates of BOTH directions.
    xg_all = (jnp.dot(x, wih_ref[...], preferred_element_type=jnp.float32)
              + bih_ref[...])                                    # (B*T, 8*Hd)
    xg3 = xg_all.reshape(B, T, 8 * Hd)
    xgf = xg3[:, :, :4 * Hd]                                     # forward gates
    xgb = xg3[:, :, 4 * Hd:]                                     # backward gates

    whh = whh_ref[...]                                           # (2, Hd, 4Hd)
    h = jnp.zeros((2, B, Hd), jnp.float32)                       # [fwd, bwd]
    c = jnp.zeros((2, B, Hd), jnp.float32)
    hs_f = [None] * T
    hs_b = [None] * T
    # T is small/static: fully unrolled; h/c never leave vregs; only the
    # (2,B,Hd)@(2,Hd,4Hd) h-recurrence dot sits on the serial chain.
    # TODO(synk): for long sequences switch to lax.fori_loop + VMEM scratch.
    for t in range(T):
        tb = T - 1 - t
        xg = jnp.concatenate([xgf[:, t, :][None], xgb[:, tb, :][None]], axis=0)
        gates = xg + jnp.einsum('nbh,nhg->nbg', h, whh,
                                preferred_element_type=jnp.float32)
        i = _sigmoid(gates[..., 0:Hd])           # PyTorch gate order i, f, g, o
        f = _sigmoid(gates[..., Hd:2 * Hd])
        g = jnp.tanh(gates[..., 2 * Hd:3 * Hd])
        o = _sigmoid(gates[..., 3 * Hd:4 * Hd])
        c = f * c + i * g
        h = o * jnp.tanh(c)
        hs_f[t] = h[0]
        hs_b[tb] = h[1]

    # one emissions matmul + one store (instead of T tiny masked stores)
    hf_all = jnp.concatenate(hs_f, axis=0)                       # (T*B, Hd)
    hb_all = jnp.concatenate(hs_b, axis=0)                       # (T*B, Hd)
    h_all = jnp.concatenate([hf_all, hb_all], axis=-1)           # (T*B, H)
    emis_ref[...] = (jnp.dot(h_all, wff_ref[...],
                             preferred_element_type=jnp.float32) + bff_ref[...])


def fused_forward(kp, emb_flat, mask_bias_bn, B, T):
    """emb_flat: (B*T, H), mask_bias_bn: (B*nh, 1, T) -> emissions (T*B, Cpad)."""
    Cp = NUM_CLASSES_PAD
    bp = kp["bert"]
    args = (emb_flat, mask_bias_bn,
            bp["emb_ln_g"], bp["emb_ln_b"],
            bp["wqkv"], bp["bqkv"], bp["wo"], bp["bo"],
            bp["ln1_g"], bp["ln1_b"], bp["wi"], bp["bi"],
            bp["wo2"], bp["bo2"], bp["ln2_g"], bp["ln2_b"],
            kp["lstm"]["w_ih"], kp["lstm"]["b_ih"], kp["lstm"]["w_hh"],
            kp["ff"]["w"], kp["ff"]["b"])
    # All weights + activations total well under 1 MB -> everything resident in
    # VMEM, single grid step over the whole batch (launch-bound regime).
    # TODO(synk): for v7x dual-TC with larger B, split the batch over a size-2
    # "parallel" leading grid axis instead of re-launching per layer.
    return pl.pallas_call(
        functools.partial(_fused_forward_kernel, B, T),
        out_shape=jax.ShapeDtypeStruct((T * B, Cp), jnp.float32),
        grid=(1,),
        in_specs=[_full_spec(a.shape) for a in args],
        out_specs=_full_spec((T * B, Cp)),
        compiler_params=pltpu.CompilerParams(
            dimension_semantics=("arbitrary",)),
    )(*args)


# ============================ model building blocks ===========================

def crf_decode(emissions_tm, start_trans, end_trans, trans):
    """Viterbi decode (torchcrf CRF.decode, implicit all-ones mask), time-major."""
    # TODO(synk): tiny (C=5) argmax DP over T steps; kept in plain JAX/XLA.
    score = start_trans[None, :] + emissions_tm[0]               # (B, C)

    def fwd(score, emit_t):
        bc = score[:, :, None] + trans[None, :, :] + emit_t[:, None, :]
        return jnp.max(bc, axis=1), jnp.argmax(bc, axis=1)

    score, history = lax.scan(fwd, score, emissions_tm[1:])
    score = score + end_trans[None, :]
    last_tag = jnp.argmax(score, axis=1).astype(jnp.int32)       # (B,)

    def back(tag, hist_t):
        prev = jnp.take_along_axis(hist_t, tag[:, None], axis=1)[:, 0].astype(jnp.int32)
        return prev, prev

    _, tags_rev = lax.scan(back, last_tag, history[::-1])
    tags = jnp.concatenate([tags_rev[::-1], last_tag[None]], axis=0)   # (T, B)
    return jnp.swapaxes(tags, 0, 1)                                    # (B, T)


def kobert_bilstm_crf_forward(kp, input_ids, token_type_ids=None):
    B, T = input_ids.shape
    if token_type_ids is None:
        token_type_ids = jnp.zeros_like(input_ids)
    attention_mask = (input_ids != PAD_ID).astype(jnp.float32)
    # additive key mask, replicated per head: (B*nh, 1, T)
    mask_bias = ((1.0 - attention_mask) * -10000.0)[:, None, :]
    mask_bias_bn = jnp.repeat(mask_bias, NUM_HEADS, axis=0)

    bp = kp["bert"]
    # embedding gathers kept in XLA (data-dependent gather)
    emb = (bp["word_emb"][input_ids]
           + bp["pos_emb"][jnp.arange(T)][None, :, :]
           + bp["tok_emb"][token_type_ids])                       # (B, T, H)
    emb_flat = emb.reshape(B * T, HIDDEN)

    # ONE fused kernel: emb LN + all BERT layers + BiLSTM + emissions.
    # self.dropout(...) is identity at inference.
    emis = fused_forward(kp, emb_flat, mask_bias_bn, B, T)        # (T*B, Cpad)
    emis_tm = emis.reshape(T, B, NUM_CLASSES_PAD)[:, :, :NUM_CLASSES]
    return crf_decode(emis_tm, kp["crf"]["start"], kp["crf"]["end"],
                      kp["crf"]["trans"])


# ============================ deterministic params ============================

def init_params(key):
    keys = iter(jax.random.split(key, 256))

    def nrm(shape, scale=0.02):
        return scale * jax.random.normal(next(keys), shape, jnp.float32)

    def layer_params():
        return dict(
            wq=nrm((HIDDEN, HIDDEN)), bq=jnp.zeros((HIDDEN,), jnp.float32),
            wk=nrm((HIDDEN, HIDDEN)), bk=jnp.zeros((HIDDEN,), jnp.float32),
            wv=nrm((HIDDEN, HIDDEN)), bv=jnp.zeros((HIDDEN,), jnp.float32),
            wo=nrm((HIDDEN, HIDDEN)), bo=jnp.zeros((HIDDEN,), jnp.float32),
            ln1_g=jnp.ones((HIDDEN,), jnp.float32),
            ln1_b=jnp.zeros((HIDDEN,), jnp.float32),
            wi=nrm((HIDDEN, INTER)), bi=jnp.zeros((INTER,), jnp.float32),
            wo2=nrm((INTER, HIDDEN)), bo2=jnp.zeros((HIDDEN,), jnp.float32),
            ln2_g=jnp.ones((HIDDEN,), jnp.float32),
            ln2_b=jnp.zeros((HIDDEN,), jnp.float32),
        )

    Hd = LSTM_H
    return dict(
        bert=dict(
            word_emb=nrm((VOCAB, HIDDEN)),
            pos_emb=nrm((MAX_POS, HIDDEN)),
            tok_emb=nrm((TYPE_VOCAB, HIDDEN)),
            emb_ln_g=jnp.ones((HIDDEN,), jnp.float32),
            emb_ln_b=jnp.zeros((HIDDEN,), jnp.float32),
            layers=[layer_params() for _ in range(NUM_LAYERS)],
        ),
        lstm=dict(
            w_ih_f=nrm((HIDDEN, 4 * Hd), 0.1), w_hh_f=nrm((Hd, 4 * Hd), 0.1),
            b_f=nrm((4 * Hd,), 0.1),
            w_ih_b=nrm((HIDDEN, 4 * Hd), 0.1), w_hh_b=nrm((Hd, 4 * Hd), 0.1),
            b_b=nrm((4 * Hd,), 0.1),
        ),
        ff=dict(w=nrm((HIDDEN, NUM_CLASSES), 0.1),
                b=jnp.zeros((NUM_CLASSES,), jnp.float32)),
        crf=dict(start=nrm((NUM_CLASSES,), 0.1),
                 end=nrm((NUM_CLASSES,), 0.1),
                 trans=nrm((NUM_CLASSES, NUM_CLASSES), 0.1)),
    )


def pack_params(p):
    """Rearrange module-style weights into the fused-kernel layout.

    Per-layer weights are stacked along a leading layer axis so the single
    fused kernel can statically index layer l.
    NOTE: PyTorch nn.LSTM has b_ih and b_hh per direction; a real checkpoint
    port must fold b_ih + b_hh into the single per-direction bias used here.
    """
    scale = 1.0 / math.sqrt(HEAD_DIM)          # folded into the Q projection
    lp = p["bert"]["layers"]

    def stack(fn):
        return jnp.stack([fn(l) for l in lp], axis=0)

    bert = dict(
        word_emb=p["bert"]["word_emb"], pos_emb=p["bert"]["pos_emb"],
        tok_emb=p["bert"]["tok_emb"],
        emb_ln_g=p["bert"]["emb_ln_g"][None, :],
        emb_ln_b=p["bert"]["emb_ln_b"][None, :],
        wqkv=stack(lambda l: jnp.concatenate(
            [l["wq"] * scale, l["wk"], l["wv"]], axis=1)),          # (L, H, 3H)
        bqkv=stack(lambda l: jnp.concatenate(
            [l["bq"] * scale, l["bk"], l["bv"]])[None, :]),         # (L, 1, 3H)
        wo=stack(lambda l: l["wo"]), bo=stack(lambda l: l["bo"][None, :]),
        ln1_g=stack(lambda l: l["ln1_g"][None, :]),
        ln1_b=stack(lambda l: l["ln1_b"][None, :]),
        wi=stack(lambda l: l["wi"]), bi=stack(lambda l: l["bi"][None, :]),
        wo2=stack(lambda l: l["wo2"]), bo2=stack(lambda l: l["bo2"][None, :]),
        ln2_g=stack(lambda l: l["ln2_g"][None, :]),
        ln2_b=stack(lambda l: l["ln2_b"][None, :]),
    )
    # BiLSTM: both directions' input projections fused into one 128-lane weight,
    # hidden-recurrence weights stacked along a direction axis.
    lstm = dict(
        w_ih=jnp.concatenate([p["lstm"]["w_ih_f"], p["lstm"]["w_ih_b"]], axis=1),
        b_ih=jnp.concatenate([p["lstm"]["b_f"], p["lstm"]["b_b"]])[None, :],
        w_hh=jnp.stack([p["lstm"]["w_hh_f"], p["lstm"]["w_hh_b"]], axis=0),
    )
    ffw = jnp.zeros((HIDDEN, NUM_CLASSES_PAD),
                    jnp.float32).at[:, :NUM_CLASSES].set(p["ff"]["w"])
    ffb = jnp.zeros((1, NUM_CLASSES_PAD),
                    jnp.float32).at[0, :NUM_CLASSES].set(p["ff"]["b"])
    return dict(bert=bert, lstm=lstm, ff=dict(w=ffw, b=ffb), crf=p["crf"])


# ==================================== main ====================================

if __name__ == "__main__":
    key = jax.random.PRNGKey(0)
    pkey, dkey = jax.random.split(key)
    params = init_params(pkey)
    kparams = pack_params(params)

    B, T = 2, 8
    input_ids = jax.random.randint(dkey, (B, T), 2, VOCAB, dtype=jnp.int32)
    # introduce real padding so the attention mask matters
    input_ids = input_ids.at[1, 5:].set(PAD_ID)

    fwd = jax.jit(functools.partial(kobert_bilstm_crf_forward, kparams))
    sequence_of_tags = fwd(input_ids)          # (B, T) int32 predicted tags
    jax.block_until_ready(sequence_of_tags)
    assert sequence_of_tags.shape == (B, T)
    print("KERNEL_OK")
</pallas_src>

<mosaic_0001>
module attributes {stable_mosaic.version = 11 : i64} {
  func.func @_fused_forward_kernel(%arg0: i32, %arg1: memref<16x32xf32, #tpu.memory_space<vmem>>, %arg2: memref<4x1x8xf32, #tpu.memory_space<vmem>>, %arg3: memref<1x32xf32, #tpu.memory_space<vmem>>, %arg4: memref<1x32xf32, #tpu.memory_space<vmem>>, %arg5: memref<2x32x96xf32, #tpu.memory_space<vmem>>, %arg6: memref<2x1x96xf32, #tpu.memory_space<vmem>>, %arg7: memref<2x32x32xf32, #tpu.memory_space<vmem>>, %arg8: memref<2x1x32xf32, #tpu.memory_space<vmem>>, %arg9: memref<2x1x32xf32, #tpu.memory_space<vmem>>, %arg10: memref<2x1x32xf32, #tpu.memory_space<vmem>>, %arg11: memref<2x32x64xf32, #tpu.memory_space<vmem>>, %arg12: memref<2x1x64xf32, #tpu.memory_space<vmem>>, %arg13: memref<2x64x32xf32, #tpu.memory_space<vmem>>, %arg14: memref<2x1x32xf32, #tpu.memory_space<vmem>>, %arg15: memref<2x1x32xf32, #tpu.memory_space<vmem>>, %arg16: memref<2x1x32xf32, #tpu.memory_space<vmem>>, %arg17: memref<32x128xf32, #tpu.memory_space<vmem>>, %arg18: memref<1x128xf32, #tpu.memory_space<vmem>>, %arg19: memref<2x16x64xf32, #tpu.memory_space<vmem>>, %arg20: memref<32x8xf32, #tpu.memory_space<vmem>>, %arg21: memref<1x8xf32, #tpu.memory_space<vmem>>, %arg22: memref<16x8xf32, #tpu.memory_space<vmem>>) attributes {dimension_semantics = [#tpu.dimension_semantics<arbitrary>], iteration_bounds = array<i64: 1>, scalar_prefetch = 0 : i64, scratch_operands = 0 : i64, tpu.core_type = #tpu.core_type<tc>, window_params = [{pipeline_mode = #tpu.pipeline_mode<synchronous>, transform_indices = @transform_0, window_bounds = array<i64: 16, 32>}, {pipeline_mode = #tpu.pipeline_mode<synchronous>, transform_indices = @transform_1, window_bounds = array<i64: 4, 1, 8>}, {pipeline_mode = #tpu.pipeline_mode<synchronous>, transform_indices = @transform_2, window_bounds = array<i64: 1, 32>}, {pipeline_mode = #tpu.pipeline_mode<synchronous>, transform_indices = @transform_3, window_bounds = array<i64: 1, 32>}, {pipeline_mode = #tpu.pipeline_mode<synchronous>, transform_indices = @transform_4, window_bounds = array<i64: 2, 32, 96>}, {pipeline_mode = #tpu.pipeline_mode<synchronous>, transform_indices = @transform_5, window_bounds = array<i64: 2, 1, 96>}, {pipeline_mode = #tpu.pipeline_mode<synchronous>, transform_indices = @transform_6, window_bounds = array<i64: 2, 32, 32>}, {pipeline_mode = #tpu.pipeline_mode<synchronous>, transform_indices = @transform_7, window_bounds = array<i64: 2, 1, 32>}, {pipeline_mode = #tpu.pipeline_mode<synchronous>, transform_indices = @transform_8, window_bounds = array<i64: 2, 1, 32>}, {pipeline_mode = #tpu.pipeline_mode<synchronous>, transform_indices = @transform_9, window_bounds = array<i64: 2, 1, 32>}, {pipeline_mode = #tpu.pipeline_mode<synchronous>, transform_indices = @transform_10, window_bounds = array<i64: 2, 32, 64>}, {pipeline_mode = #tpu.pipeline_mode<synchronous>, transform_indices = @transform_11, window_bounds = array<i64: 2, 1, 64>}, {pipeline_mode = #tpu.pipeline_mode<synchronous>, transform_indices = @transform_12, window_bounds = array<i64: 2, 64, 32>}, {pipeline_mode = #tpu.pipeline_mode<synchronous>, transform_indices = @transform_13, window_bounds = array<i64: 2, 1, 32>}, {pipeline_mode = #tpu.pipeline_mode<synchronous>, transform_indices = @transform_14, window_bounds = array<i64: 2, 1, 32>}, {pipeline_mode = #tpu.pipeline_mode<synchronous>, transform_indices = @transform_15, window_bounds = array<i64: 2, 1, 32>}, {pipeline_mode = #tpu.pipeline_mode<synchronous>, transform_indices = @transform_16, window_bounds = array<i64: 32, 128>}, {pipeline_mode = #tpu.pipeline_mode<synchronous>, transform_indices = @transform_17, window_bounds = array<i64: 1, 128>}, {pipeline_mode = #tpu.pipeline_mode<synchronous>, transform_indices = @transform_18, window_bounds = array<i64: 2, 16, 64>}, {pipeline_mode = #tpu.pipeline_mode<synchronous>, transform_indices = @transform_19, window_bounds = array<i64: 32, 8>}, {pipeline_mode = #tpu.pipeline_mode<synchronous>, transform_indices = @transform_20, window_bounds = array<i64: 1, 8>}, {pipeline_mode = #tpu.pipeline_mode<synchronous>, transform_indices = @transform_21, window_bounds = array<i64: 16, 8>}]} {
    %c0 = arith.constant 0 : index
    %c0_0 = arith.constant 0 : index
    %0 = vector.load %arg1[%c0, %c0_0] : memref<16x32xf32, #tpu.memory_space<vmem>>, vector<16x32xf32>
    %c0_1 = arith.constant 0 : index
    %c0_2 = arith.constant 0 : index
    %1 = vector.load %arg3[%c0_1, %c0_2] : memref<1x32xf32, #tpu.memory_space<vmem>>, vector<1x32xf32>
    %c0_3 = arith.constant 0 : index
    %c0_4 = arith.constant 0 : index
    %2 = vector.load %arg4[%c0_3, %c0_4] : memref<1x32xf32, #tpu.memory_space<vmem>>, vector<1x32xf32>
    %cst = arith.constant dense<0.000000e+00> : vector<16xf32>
    %3 = vector.multi_reduction <add>, %0, %cst [1] : vector<16x32xf32> to vector<16xf32>
    %4 = vector.shape_cast %3 : vector<16xf32> to vector<16x1xf32>
    %cst_5 = arith.constant 3.200000e+01 : f32
    %5 = vector.broadcast %cst_5 : f32 to vector<16x1xf32>
    %6 = arith.divf %4, %5 : vector<16x1xf32>
    %7 = vector.broadcast %6 : vector<16x1xf32> to vector<16x32xf32>
    %8 = arith.subf %0, %7 : vector<16x32xf32>
    %9 = vector.broadcast %6 : vector<16x1xf32> to vector<16x32xf32>
    %10 = arith.subf %0, %9 : vector<16x32xf32>
    %11 = arith.mulf %8, %10 : vector<16x32xf32>
    %cst_6 = arith.constant dense<0.000000e+00> : vector<16xf32>
    %12 = vector.multi_reduction <add>, %11, %cst_6 [1] : vector<16x32xf32> to vector<16xf32>
    %13 = vector.shape_cast %12 : vector<16xf32> to vector<16x1xf32>
    %cst_7 = arith.constant 3.200000e+01 : f32
    %14 = vector.broadcast %cst_7 : f32 to vector<16x1xf32>
    %15 = arith.divf %13, %14 : vector<16x1xf32>
    %16 = vector.broadcast %6 : vector<16x1xf32> to vector<16x32xf32>
    %17 = arith.subf %0, %16 : vector<16x32xf32>
    %cst_8 = arith.constant 9.99999996E-13 : f32
    %18 = vector.broadcast %cst_8 : f32 to vector<16x1xf32>
    %19 = arith.addf %15, %18 : vector<16x1xf32>
    %20 = math.rsqrt %19 : vector<16x1xf32>
    %21 = vector.broadcast %20 : vector<16x1xf32> to vector<16x32xf32>
    %22 = arith.mulf %17, %21 : vector<16x32xf32>
    %23 = vector.broadcast %1 : vector<1x32xf32> to vector<16x32xf32>
    %24 = arith.mulf %22, %23 : vector<16x32xf32>
    %25 = vector.broadcast %2 : vector<1x32xf32> to vector<16x32xf32>
    %26 = arith.addf %24, %25 : vector<16x32xf32>
    %c0_9 = arith.constant 0 : index
    %c0_10 = arith.constant 0 : index
    %c0_11 = arith.constant 0 : index
    %27 = vector.load %arg2[%c0_9, %c0_10, %c0_11] : memref<4x1x8xf32, #tpu.memory_space<vmem>>, vector<4x1x8xf32>
    %c0_12 = arith.constant 0 : index
    %c0_13 = arith.constant 0 : index
    %c0_14 = arith.constant 0 : index
    %28 = vector.load %arg5[%c0_12, %c0_13, %c0_14] : memref<2x32x96xf32, #tpu.memory_space<vmem>>, vector<1x32x96xf32>
    %29 = vector.shape_cast %28 : vector<1x32x96xf32> to vector<32x96xf32>
    %cst_15 = arith.constant dense<0.000000e+00> : vector<16x96xf32>
    %30 = tpu.matmul %26, %29, %cst_15 {dimension_numbers = #tpu.dot_dimension_numbers<[1], [0], [0], [1], [0, 0, 1, 1], [], []>} : vector<16x32xf32>, vector<32x96xf32>, vector<16x96xf32> -> vector<16x96xf32>
    %c0_16 = arith.constant 0 : index
    %c0_17 = arith.constant 0 : index
    %c0_18 = arith.constant 0 : index
    %31 = vector.load %arg6[%c0_16, %c0_17, %c0_18] : memref<2x1x96xf32, #tpu.memory_space<vmem>>, vector<1x1x96xf32>
    %32 = vector.shape_cast %31 : vector<1x1x96xf32> to vector<1x96xf32>
    %33 = vector.broadcast %32 : vector<1x96xf32> to vector<16x96xf32>
    %34 = arith.addf %30, %33 : vector<16x96xf32>
    %35 = vector.extract_strided_slice %34 {offsets = [0, 0], sizes = [8, 96], strides = [1, 1]} : vector<16x96xf32> to vector<8x96xf32>
    %36 = vector.extract_strided_slice %35 {offsets = [0, 0], sizes = [8, 16], strides = [1, 1]} : vector<8x96xf32> to vector<8x16xf32>
    %37 = vector.shape_cast %36 : vector<8x16xf32> to vector<1x8x16xf32>
    %38 = vector.extract_strided_slice %35 {offsets = [0, 32], sizes = [8, 16], strides = [1, 1]} : vector<8x96xf32> to vector<8x16xf32>
    %39 = vector.shape_cast %38 : vector<8x16xf32> to vector<1x8x16xf32>
    %40 = vector.extract_strided_slice %35 {offsets = [0, 64], sizes = [8, 16], strides = [1, 1]} : vector<8x96xf32> to vector<8x16xf32>
    %41 = vector.shape_cast %40 : vector<8x16xf32> to vector<1x8x16xf32>
    %42 = vector.extract_strided_slice %35 {offsets = [0, 16], sizes = [8, 16], strides = [1, 1]} : vector<8x96xf32> to vector<8x16xf32>
    %43 = vector.shape_cast %42 : vector<8x16xf32> to vector<1x8x16xf32>
    %44 = vector.extract_strided_slice %35 {offsets = [0, 48], sizes = [8, 16], strides = [1, 1]} : vector<8x96xf32> to vector<8x16xf32>
    %45 = vector.shape_cast %44 : vector<8x16xf32> to vector<1x8x16xf32>
    %46 = vector.extract_strided_slice %35 {offsets = [0, 80], sizes = [8, 16], strides = [1, 1]} : vector<8x96xf32> to vector<8x16xf32>
    %47 = vector.shape_cast %46 : vector<8x16xf32> to vector<1x8x16xf32>
    %48 = vector.extract_strided_slice %34 {offsets = [8, 0], sizes = [8, 96], strides = [1, 1]} : vector<16x96xf32> to vector<8x96xf32>
    %49 = vector.extract_strided_slice %48 {offsets = [0, 0], sizes = [8, 16], strides = [1, 1]} : vector<8x96xf32> to vector<8x16xf32>
    %50 = vector.shape_cast %49 : vector<8x16xf32> to vector<1x8x16xf32>
    %51 = vector.extract_strided_slice %48 {offsets = [0, 32], sizes = [8, 16], strides = [1, 1]} : vector<8x96xf32> to vector<8x16xf32>
    %52 = vector.shape_cast %51 : vector<8x16xf32> to vector<1x8x16xf32>
    %53 = vector.extract_strided_slice %48 {offsets = [0, 64], sizes = [8, 16], strides = [1, 1]} : vector<8x96xf32> to vector<8x16xf32>
    %54 = vector.shape_cast %53 : vector<8x16xf32> to vector<1x8x16xf32>
    %55 = vector.extract_strided_slice %48 {offsets = [0, 16], sizes = [8, 16], strides = [1, 1]} : vector<8x96xf32> to vector<8x16xf32>
    %56 = vector.shape_cast %55 : vector<8x16xf32> to vector<1x8x16xf32>
    %57 = vector.extract_strided_slice %48 {offsets = [0, 48], sizes = [8, 16], strides = [1, 1]} : vector<8x96xf32> to vector<8x16xf32>
    %58 = vector.shape_cast %57 : vector<8x16xf32> to vector<1x8x16xf32>
    %59 = vector.extract_strided_slice %48 {offsets = [0, 80], sizes = [8, 16], strides = [1, 1]} : vector<8x96xf32> to vector<8x16xf32>
    %60 = vector.shape_cast %59 : vector<8x16xf32> to vector<1x8x16xf32>
    %61 = tpu.concatenate %37, %43, %50, %56 in 0 : vector<1x8x16xf32>, vector<1x8x16xf32>, vector<1x8x16xf32>, vector<1x8x16xf32> -> vector<4x8x16xf32>
    %62 = tpu.concatenate %39, %45, %52, %58 in 0 : vector<1x8x16xf32>, vector<1x8x16xf32>, vector<1x8x16xf32>, vector<1x8x16xf32> -> vector<4x8x16xf32>
    %63 = tpu.concatenate %41, %47, %54, %60 in 0 : vector<1x8x16xf32>, vector<1x8x16xf32>, vector<1x8x16xf32>, vector<1x8x16xf32> -> vector<4x8x16xf32>
    "tpu.trace_start"() <{level = 10 : i32, message = "bqd,bkd->bqk"}> : () -> ()
    %cst_19 = arith.constant dense<0.000000e+00> : vector<4x8x8xf32>
    %64 = tpu.matmul %61, %62, %cst_19 {dimension_numbers = #tpu.dot_dimension_numbers<[2], [2], [1], [1], [0, 0, 0, 1, 1, 1], [0], [0]>} : vector<4x8x16xf32>, vector<4x8x16xf32>, vector<4x8x8xf32> -> vector<4x8x8xf32>
    "tpu.trace_stop"() : () -> ()
    %65 = vector.broadcast %27 : vector<4x1x8xf32> to vector<4x8x8xf32>
    %66 = arith.addf %64, %65 : vector<4x8x8xf32>
    %cst_20 = arith.constant dense<0xFF800000> : vector<4x8xf32>
    %67 = vector.multi_reduction <maximumf>, %66, %cst_20 [2] : vector<4x8x8xf32> to vector<4x8xf32>
    %68 = vector.shape_cast %67 : vector<4x8xf32> to vector<4x8x1xf32>
    %69 = vector.broadcast %68 : vector<4x8x1xf32> to vector<4x8x8xf32>
    %70 = arith.subf %66, %69 : vector<4x8x8xf32>
    %71 = math.exp %70 : vector<4x8x8xf32>
    %cst_21 = arith.constant dense<0.000000e+00> : vector<4x8xf32>
    %72 = vector.multi_reduction <add>, %71, %cst_21 [2] : vector<4x8x8xf32> to vector<4x8xf32>
    %73 = vector.shape_cast %72 : vector<4x8xf32> to vector<4x8x1xf32>
    %74 = tpu.reciprocal %73 {approx = true} : vector<4x8x1xf32> -> vector<4x8x1xf32>
    %75 = vector.broadcast %74 : vector<4x8x1xf32> to vector<4x8x8xf32>
    %76 = arith.mulf %71, %75 : vector<4x8x8xf32>
    "tpu.trace_start"() <{level = 10 : i32, message = "bqk,bkd->bqd"}> : () -> ()
    %cst_22 = arith.constant dense<0.000000e+00> : vector<4x8x16xf32>
    %77 = tpu.matmul %76, %63, %cst_22 {dimension_numbers = #tpu.dot_dimension_numbers<[2], [1], [1], [2], [0, 0, 0, 1, 1, 2], [0], [0]>} : vector<4x8x8xf32>, vector<4x8x16xf32>, vector<4x8x16xf32> -> vector<4x8x16xf32>
    "tpu.trace_stop"() : () -> ()
    %78 = vector.extract_strided_slice %77 {offsets = [0, 0, 0], sizes = [1, 8, 16], strides = [1, 1, 1]} : vector<4x8x16xf32> to vector<1x8x16xf32>
    %79 = vector.shape_cast %78 : vector<1x8x16xf32> to vector<8x16xf32>
    %80 = vector.extract_strided_slice %77 {offsets = [1, 0, 0], sizes = [1, 8, 16], strides = [1, 1, 1]} : vector<4x8x16xf32> to vector<1x8x16xf32>
    %81 = vector.shape_cast %80 : vector<1x8x16xf32> to vector<8x16xf32>
    %82 = tpu.concatenate %79, %81 in 1 : vector<8x16xf32>, vector<8x16xf32> -> vector<8x32xf32>
    %83 = vector.extract_strided_slice %77 {offsets = [2, 0, 0], sizes = [1, 8, 16], strides = [1, 1, 1]} : vector<4x8x16xf32> to vector<1x8x16xf32>
    %84 = vector.shape_cast %83 : vector<1x8x16xf32> to vector<8x16xf32>
    %85 = vector.extract_strided_slice %77 {offsets = [3, 0, 0], sizes = [1, 8, 16], strides = [1, 1, 1]} : vector<4x8x16xf32> to vector<1x8x16xf32>
    %86 = vector.shape_cast %85 : vector<1x8x16xf32> to vector<8x16xf32>
    %87 = tpu.concatenate %84, %86 in 1 : vector<8x16xf32>, vector<8x16xf32> -> vector<8x32xf32>
    %88 = tpu.concatenate %82, %87 in 0 : vector<8x32xf32>, vector<8x32xf32> -> vector<16x32xf32>
    %c0_23 = arith.constant 0 : index
    %c0_24 = arith.constant 0 : index
    %c0_25 = arith.constant 0 : index
    %89 = vector.load %arg7[%c0_23, %c0_24, %c0_25] : memref<2x32x32xf32, #tpu.memory_space<vmem>>, vector<1x32x32xf32>
    %90 = vector.shape_cast %89 : vector<1x32x32xf32> to vector<32x32xf32>
    %cst_26 = arith.constant dense<0.000000e+00> : vector<16x32xf32>
    %91 = tpu.matmul %88, %90, %cst_26 {dimension_numbers = #tpu.dot_dimension_numbers<[1], [0], [0], [1], [0, 0, 1, 1], [], []>} : vector<16x32xf32>, vector<32x32xf32>, vector<16x32xf32> -> vector<16x32xf32>
    %c0_27 = arith.constant 0 : index
    %c0_28 = arith.constant 0 : index
    %c0_29 = arith.constant 0 : index
    %92 = vector.load %arg8[%c0_27, %c0_28, %c0_29] : memref<2x1x32xf32, #tpu.memory_space<vmem>>, vector<1x1x32xf32>
    %93 = vector.shape_cast %92 : vector<1x1x32xf32> to vector<1x32xf32>
    %94 = vector.broadcast %93 : vector<1x32xf32> to vector<16x32xf32>
    %95 = arith.addf %91, %94 : vector<16x32xf32>
    %96 = arith.addf %26, %95 : vector<16x32xf32>
    %c0_30 = arith.constant 0 : index
    %c0_31 = arith.constant 0 : index
    %c0_32 = arith.constant 0 : index
    %97 = vector.load %arg9[%c0_30, %c0_31, %c0_32] : memref<2x1x32xf32, #tpu.memory_space<vmem>>, vector<1x1x32xf32>
    %98 = vector.shape_cast %97 : vector<1x1x32xf32> to vector<1x32xf32>
    %c0_33 = arith.constant 0 : index
    %c0_34 = arith.constant 0 : index
    %c0_35 = arith.constant 0 : index
    %99 = vector.load %arg10[%c0_33, %c0_34, %c0_35] : memref<2x1x32xf32, #tpu.memory_space<vmem>>, vector<1x1x32xf32>
    %100 = vector.shape_cast %99 : vector<1x1x32xf32> to vector<1x32xf32>
    %cst_36 = arith.constant dense<0.000000e+00> : vector<16xf32>
    %101 = vector.multi_reduction <add>, %96, %cst_36 [1] : vector<16x32xf32> to vector<16xf32>
    %102 = vector.shape_cast %101 : vector<16xf32> to vector<16x1xf32>
    %cst_37 = arith.constant 3.200000e+01 : f32
    %103 = vector.broadcast %cst_37 : f32 to vector<16x1xf32>
    %104 = arith.divf %102, %103 : vector<16x1xf32>
    %105 = vector.broadcast %104 : vector<16x1xf32> to vector<16x32xf32>
    %106 = arith.subf %96, %105 : vector<16x32xf32>
    %107 = vector.broadcast %104 : vector<16x1xf32> to vector<16x32xf32>
    %108 = arith.subf %96, %107 : vector<16x32xf32>
    %109 = arith.mulf %106, %108 : vector<16x32xf32>
    %cst_38 = arith.constant dense<0.000000e+00> : vector<16xf32>
    %110 = vector.multi_reduction <add>, %109, %cst_38 [1] : vector<16x32xf32> to vector<16xf32>
    %111 = vector.shape_cast %110 : vector<16xf32> to vector<16x1xf32>
    %cst_39 = arith.constant 3.200000e+01 : f32
    %112 = vector.broadcast %cst_39 : f32 to vector<16x1xf32>
    %113 = arith.divf %111, %112 : vector<16x1xf32>
    %114 = vector.broadcast %104 : vector<16x1xf32> to vector<16x32xf32>
    %115 = arith.subf %96, %114 : vector<16x32xf32>
    %cst_40 = arith.constant 9.99999996E-13 : f32
    %116 = vector.broadcast %cst_40 : f32 to vector<16x1xf32>
    %117 = arith.addf %113, %116 : vector<16x1xf32>
    %118 = math.rsqrt %117 : vector<16x1xf32>
    %119 = vector.broadcast %118 : vector<16x1xf32> to vector<16x32xf32>
    %120 = arith.mulf %115, %119 : vector<16x32xf32>
    %121 = vector.broadcast %98 : vector<1x32xf32> to vector<16x32xf32>
    %122 = arith.mulf %120, %121 : vector<16x32xf32>
    %123 = vector.broadcast %100 : vector<1x32xf32> to vector<16x32xf32>
    %124 = arith.addf %122, %123 : vector<16x32xf32>
    %c0_41 = arith.constant 0 : index
    %c0_42 = arith.constant 0 : index
    %c0_43 = arith.constant 0 : index
    %125 = vector.load %arg11[%c0_41, %c0_42, %c0_43] : memref<2x32x64xf32, #tpu.memory_space<vmem>>, vector<1x32x64xf32>
    %126 = vector.shape_cast %125 : vector<1x32x64xf32> to vector<32x64xf32>
    %cst_44 = arith.constant dense<0.000000e+00> : vector<16x64xf32>
    %127 = tpu.matmul %124, %126, %cst_44 {dimension_numbers = #tpu.dot_dimension_numbers<[1], [0], [0], [1], [0, 0, 1, 1], [], []>} : vector<16x32xf32>, vector<32x64xf32>, vector<16x64xf32> -> vector<16x64xf32>
    %c0_45 = arith.constant 0 : index
    %c0_46 = arith.constant 0 : index
    %c0_47 = arith.constant 0 : index
    %128 = vector.load %arg12[%c0_45, %c0_46, %c0_47] : memref<2x1x64xf32, #tpu.memory_space<vmem>>, vector<1x1x64xf32>
    %129 = vector.shape_cast %128 : vector<1x1x64xf32> to vector<1x64xf32>
    %130 = vector.broadcast %129 : vector<1x64xf32> to vector<16x64xf32>
    %131 = arith.addf %127, %130 : vector<16x64xf32>
    %cst_48 = arith.constant 5.000000e-01 : f32
    %132 = vector.broadcast %cst_48 : f32 to vector<16x64xf32>
    %133 = arith.mulf %132, %131 : vector<16x64xf32>
    %cst_49 = arith.constant 0.707106769 : f32
    %134 = vector.broadcast %cst_49 : f32 to vector<16x64xf32>
    %135 = arith.mulf %131, %134 : vector<16x64xf32>
    %136 = math.absf %135 : vector<16x64xf32>
    %cst_50 = arith.constant 0.327591091 : f32
    %137 = vector.broadcast %cst_50 : f32 to vector<16x64xf32>
    %138 = arith.mulf %137, %136 : vector<16x64xf32>
    %cst_51 = arith.constant 1.000000e+00 : f32
    %139 = vector.broadcast %cst_51 : f32 to vector<16x64xf32>
    %140 = arith.addf %139, %138 : vector<16x64xf32>
    %cst_52 = arith.constant 1.000000e+00 : f32
    %141 = vector.broadcast %cst_52 : f32 to vector<16x64xf32>
    %142 = arith.divf %141, %140 : vector<16x64xf32>
    %cst_53 = arith.constant 1.06140542 : f32
    %143 = vector.broadcast %cst_53 : f32 to vector<16x64xf32>
    %144 = arith.mulf %142, %143 : vector<16x64xf32>
    %cst_54 = arith.constant -1.45315206 : f32
    %145 = vector.broadcast %cst_54 : f32 to vector<16x64xf32>
    %146 = arith.addf %145, %144 : vector<16x64xf32>
    %147 = arith.mulf %142, %146 : vector<16x64xf32>
    %cst_55 = arith.constant 1.42141378 : f32
    %148 = vector.broadcast %cst_55 : f32 to vector<16x64xf32>
    %149 = arith.addf %148, %147 : vector<16x64xf32>
    %150 = arith.mulf %142, %149 : vector<16x64xf32>
    %cst_56 = arith.constant -0.284496725 : f32
    %151 = vector.broadcast %cst_56 : f32 to vector<16x64xf32>
    %152 = arith.addf %151, %150 : vector<16x64xf32>
    %153 = arith.mulf %142, %152 : vector<16x64xf32>
    %cst_57 = arith.constant 0.254829586 : f32
    %154 = vector.broadcast %cst_57 : f32 to vector<16x64xf32>
    %155 = arith.addf %154, %153 : vector<16x64xf32>
    %156 = arith.mulf %142, %155 : vector<16x64xf32>
    %cst_58 = arith.constant 0.000000e+00 : f32
    %157 = vector.broadcast %cst_58 : f32 to vector<16x64xf32>
    %158 = arith.subf %157, %135 : vector<16x64xf32>
    %159 = arith.mulf %158, %135 : vector<16x64xf32>
    %160 = math.exp %159 : vector<16x64xf32>
    %161 = arith.mulf %156, %160 : vector<16x64xf32>
    %cst_59 = arith.constant 1.000000e+00 : f32
    %162 = vector.broadcast %cst_59 : f32 to vector<16x64xf32>
    %163 = arith.subf %162, %161 : vector<16x64xf32>
    %cst_60 = arith.constant 0.000000e+00 : f32
    %164 = vector.broadcast %cst_60 : f32 to vector<16x64xf32>
    %165 = arith.cmpf oge, %135, %164 : vector<16x64xf32>
    %cst_61 = arith.constant 0.000000e+00 : f32
    %166 = vector.broadcast %cst_61 : f32 to vector<16x64xf32>
    %167 = arith.subf %166, %163 : vector<16x64xf32>
    %168 = arith.select %165, %163, %167 : vector<16x64xi1>, vector<16x64xf32>
    %cst_62 = arith.constant 1.000000e+00 : f32
    %169 = vector.broadcast %cst_62 : f32 to vector<16x64xf32>
    %170 = arith.addf %169, %168 : vector<16x64xf32>
    %171 = arith.mulf %133, %170 : vector<16x64xf32>
    %c0_63 = arith.constant 0 : index
    %c0_64 = arith.constant 0 : index
    %c0_65 = arith.constant 0 : index
    %172 = vector.load %arg13[%c0_63, %c0_64, %c0_65] : memref<2x64x32xf32, #tpu.memory_space<vmem>>, vector<1x64x32xf32>
    %173 = vector.shape_cast %172 : vector<1x64x32xf32> to vector<64x32xf32>
    %cst_66 = arith.constant dense<0.000000e+00> : vector<16x32xf32>
    %174 = tpu.matmul %171, %173, %cst_66 {dimension_numbers = #tpu.dot_dimension_numbers<[1], [0], [0], [1], [0, 0, 1, 1], [], []>} : vector<16x64xf32>, vector<64x32xf32>, vector<16x32xf32> -> vector<16x32xf32>
    %c0_67 = arith.constant 0 : index
    %c0_68 = arith.constant 0 : index
    %c0_69 = arith.constant 0 : index
    %175 = vector.load %arg14[%c0_67, %c0_68, %c0_69] : memref<2x1x32xf32, #tpu.memory_space<vmem>>, vector<1x1x32xf32>
    %176 = vector.shape_cast %175 : vector<1x1x32xf32> to vector<1x32xf32>
    %177 = vector.broadcast %176 : vector<1x32xf32> to vector<16x32xf32>
    %178 = arith.addf %174, %177 : vector<16x32xf32>
    %179 = arith.addf %124, %178 : vector<16x32xf32>
    %c0_70 = arith.constant 0 : index
    %c0_71 = arith.constant 0 : index
    %c0_72 = arith.constant 0 : index
    %180 = vector.load %arg15[%c0_70, %c0_71, %c0_72] : memref<2x1x32xf32, #tpu.memory_space<vmem>>, vector<1x1x32xf32>
    %181 = vector.shape_cast %180 : vector<1x1x32xf32> to vector<1x32xf32>
    %c0_73 = arith.constant 0 : index
    %c0_74 = arith.constant 0 : index
    %c0_75 = arith.constant 0 : index
    %182 = vector.load %arg16[%c0_73, %c0_74, %c0_75] : memref<2x1x32xf32, #tpu.memory_space<vmem>>, vector<1x1x32xf32>
    %183 = vector.shape_cast %182 : vector<1x1x32xf32> to vector<1x32xf32>
    %cst_76 = arith.constant dense<0.000000e+00> : vector<16xf32>
    %184 = vector.multi_reduction <add>, %179, %cst_76 [1] : vector<16x32xf32> to vector<16xf32>
    %185 = vector.shape_cast %184 : vector<16xf32> to vector<16x1xf32>
    %cst_77 = arith.constant 3.200000e+01 : f32
    %186 = vector.broadcast %cst_77 : f32 to vector<16x1xf32>
    %187 = arith.divf %185, %186 : vector<16x1xf32>
    %188 = vector.broadcast %187 : vector<16x1xf32> to vector<16x32xf32>
    %189 = arith.subf %179, %188 : vector<16x32xf32>
    %190 = vector.broadcast %187 : vector<16x1xf32> to vector<16x32xf32>
    %191 = arith.subf %179, %190 : vector<16x32xf32>
    %192 = arith.mulf %189, %191 : vector<16x32xf32>
    %cst_78 = arith.constant dense<0.000000e+00> : vector<16xf32>
    %193 = vector.multi_reduction <add>, %192, %cst_78 [1] : vector<16x32xf32> to vector<16xf32>
    %194 = vector.shape_cast %193 : vector<16xf32> to vector<16x1xf32>
    %cst_79 = arith.constant 3.200000e+01 : f32
    %195 = vector.broadcast %cst_79 : f32 to vector<16x1xf32>
    %196 = arith.divf %194, %195 : vector<16x1xf32>
    %197 = vector.broadcast %187 : vector<16x1xf32> to vector<16x32xf32>
    %198 = arith.subf %179, %197 : vector<16x32xf32>
    %cst_80 = arith.constant 9.99999996E-13 : f32
    %199 = vector.broadcast %cst_80 : f32 to vector<16x1xf32>
    %200 = arith.addf %196, %199 : vector<16x1xf32>
    %201 = math.rsqrt %200 : vector<16x1xf32>
    %202 = vector.broadcast %201 : vector<16x1xf32> to vector<16x32xf32>
    %203 = arith.mulf %198, %202 : vector<16x32xf32>
    %204 = vector.broadcast %181 : vector<1x32xf32> to vector<16x32xf32>
    %205 = arith.mulf %203, %204 : vector<16x32xf32>
    %206 = vector.broadcast %183 : vector<1x32xf32> to vector<16x32xf32>
    %207 = arith.addf %205, %206 : vector<16x32xf32>
    %c1 = arith.constant 1 : index
    %c0_81 = arith.constant 0 : index
    %c0_82 = arith.constant 0 : index
    %208 = vector.load %arg5[%c1, %c0_81, %c0_82] : memref<2x32x96xf32, #tpu.memory_space<vmem>>, vector<1x32x96xf32>
    %209 = vector.shape_cast %208 : vector<1x32x96xf32> to vector<32x96xf32>
    %cst_83 = arith.constant dense<0.000000e+00> : vector<16x96xf32>
    %210 = tpu.matmul %207, %209, %cst_83 {dimension_numbers = #tpu.dot_dimension_numbers<[1], [0], [0], [1], [0, 0, 1, 1], [], []>} : vector<16x32xf32>, vector<32x96xf32>, vector<16x96xf32> -> vector<16x96xf32>
    %c1_84 = arith.constant 1 : index
    %c0_85 = arith.constant 0 : index
    %c0_86 = arith.constant 0 : index
    %211 = vector.load %arg6[%c1_84, %c0_85, %c0_86] : memref<2x1x96xf32, #tpu.memory_space<vmem>>, vector<1x1x96xf32>
    %212 = vector.shape_cast %211 : vector<1x1x96xf32> to vector<1x96xf32>
    %213 = vector.broadcast %212 : vector<1x96xf32> to vector<16x96xf32>
    %214 = arith.addf %210, %213 : vector<16x96xf32>
    %215 = vector.extract_strided_slice %214 {offsets = [0, 0], sizes = [8, 96], strides = [1, 1]} : vector<16x96xf32> to vector<8x96xf32>
    %216 = vector.extract_strided_slice %215 {offsets = [0, 0], sizes = [8, 16], strides = [1, 1]} : vector<8x96xf32> to vector<8x16xf32>
    %217 = vector.shape_cast %216 : vector<8x16xf32> to vector<1x8x16xf32>
    %218 = vector.extract_strided_slice %215 {offsets = [0, 32], sizes = [8, 16], strides = [1, 1]} : vector<8x96xf32> to vector<8x16xf32>
    %219 = vector.shape_cast %218 : vector<8x16xf32> to vector<1x8x16xf32>
    %220 = vector.extract_strided_slice %215 {offsets = [0, 64], sizes = [8, 16], strides = [1, 1]} : vector<8x96xf32> to vector<8x16xf32>
    %221 = vector.shape_cast %220 : vector<8x16xf32> to vector<1x8x16xf32>
    %222 = vector.extract_strided_slice %215 {offsets = [0, 16], sizes = [8, 16], strides = [1, 1]} : vector<8x96xf32> to vector<8x16xf32>
    %223 = vector.shape_cast %222 : vector<8x16xf32> to vector<1x8x16xf32>
    %224 = vector.extract_strided_slice %215 {offsets = [0, 48], sizes = [8, 16], strides = [1, 1]} : vector<8x96xf32> to vector<8x16xf32>
    %225 = vector.shape_cast %224 : vector<8x16xf32> to vector<1x8x16xf32>
    %226 = vector.extract_strided_slice %215 {offsets = [0, 80], sizes = [8, 16], strides = [1, 1]} : vector<8x96xf32> to vector<8x16xf32>
    %227 = vector.shape_cast %226 : vector<8x16xf32> to vector<1x8x16xf32>
    %228 = vector.extract_strided_slice %214 {offsets = [8, 0], sizes = [8, 96], strides = [1, 1]} : vector<16x96xf32> to vector<8x96xf32>
    %229 = vector.extract_strided_slice %228 {offsets = [0, 0], sizes = [8, 16], strides = [1, 1]} : vector<8x96xf32> to vector<8x16xf32>
    %230 = vector.shape_cast %229 : vector<8x16xf32> to vector<1x8x16xf32>
    %231 = vector.extract_strided_slice %228 {offsets = [0, 32], sizes = [8, 16], strides = [1, 1]} : vector<8x96xf32> to vector<8x16xf32>
    %232 = vector.shape_cast %231 : vector<8x16xf32> to vector<1x8x16xf32>
    %233 = vector.extract_strided_slice %228 {offsets = [0, 64], sizes = [8, 16], strides = [1, 1]} : vector<8x96xf32> to vector<8x16xf32>
    %234 = vector.shape_cast %233 : vector<8x16xf32> to vector<1x8x16xf32>
    %235 = vector.extract_strided_slice %228 {offsets = [0, 16], sizes = [8, 16], strides = [1, 1]} : vector<8x96xf32> to vector<8x16xf32>
    %236 = vector.shape_cast %235 : vector<8x16xf32> to vector<1x8x16xf32>
    %237 = vector.extract_strided_slice %228 {offsets = [0, 48], sizes = [8, 16], strides = [1, 1]} : vector<8x96xf32> to vector<8x16xf32>
    %238 = vector.shape_cast %237 : vector<8x16xf32> to vector<1x8x16xf32>
    %239 = vector.extract_strided_slice %228 {offsets = [0, 80], sizes = [8, 16], strides = [1, 1]} : vector<8x96xf32> to vector<8x16xf32>
    %240 = vector.shape_cast %239 : vector<8x16xf32> to vector<1x8x16xf32>
    %241 = tpu.concatenate %217, %223, %230, %236 in 0 : vector<1x8x16xf32>, vector<1x8x16xf32>, vector<1x8x16xf32>, vector<1x8x16xf32> -> vector<4x8x16xf32>
    %242 = tpu.concatenate %219, %225, %232, %238 in 0 : vector<1x8x16xf32>, vector<1x8x16xf32>, vector<1x8x16xf32>, vector<1x8x16xf32> -> vector<4x8x16xf32>
    %243 = tpu.concatenate %221, %227, %234, %240 in 0 : vector<1x8x16xf32>, vector<1x8x16xf32>, vector<1x8x16xf32>, vector<1x8x16xf32> -> vector<4x8x16xf32>
    "tpu.trace_start"() <{level = 10 : i32, message = "bqd,bkd->bqk"}> : () -> ()
    %cst_87 = arith.constant dense<0.000000e+00> : vector<4x8x8xf32>
    %244 = tpu.matmul %241, %242, %cst_87 {dimension_numbers = #tpu.dot_dimension_numbers<[2], [2], [1], [1], [0, 0, 0, 1, 1, 1], [0], [0]>} : vector<4x8x16xf32>, vector<4x8x16xf32>, vector<4x8x8xf32> -> vector<4x8x8xf32>
    "tpu.trace_stop"() : () -> ()
    %245 = vector.broadcast %27 : vector<4x1x8xf32> to vector<4x8x8xf32>
    %246 = arith.addf %244, %245 : vector<4x8x8xf32>
    %cst_88 = arith.constant dense<0xFF800000> : vector<4x8xf32>
    %247 = vector.multi_reduction <maximumf>, %246, %cst_88 [2] : vector<4x8x8xf32> to vector<4x8xf32>
    %248 = vector.shape_cast %247 : vector<4x8xf32> to vector<4x8x1xf32>
    %249 = vector.broadcast %248 : vector<4x8x1xf32> to vector<4x8x8xf32>
    %250 = arith.subf %246, %249 : vector<4x8x8xf32>
    %251 = math.exp %250 : vector<4x8x8xf32>
    %cst_89 = arith.constant dense<0.000000e+00> : vector<4x8xf32>
    %252 = vector.multi_reduction <add>, %251, %cst_89 [2] : vector<4x8x8xf32> to vector<4x8xf32>
    %253 = vector.shape_cast %252 : vector<4x8xf32> to vector<4x8x1xf32>
    %254 = tpu.reciprocal %253 {approx = true} : vector<4x8x1xf32> -> vector<4x8x1xf32>
    %255 = vector.broadcast %254 : vector<4x8x1xf32> to vector<4x8x8xf32>
    %256 = arith.mulf %251, %255 : vector<4x8x8xf32>
    "tpu.trace_start"() <{level = 10 : i32, message = "bqk,bkd->bqd"}> : () -> ()
    %cst_90 = arith.constant dense<0.000000e+00> : vector<4x8x16xf32>
    %257 = tpu.matmul %256, %243, %cst_90 {dimension_numbers = #tpu.dot_dimension_numbers<[2], [1], [1], [2], [0, 0, 0, 1, 1, 2], [0], [0]>} : vector<4x8x8xf32>, vector<4x8x16xf32>, vector<4x8x16xf32> -> vector<4x8x16xf32>
    "tpu.trace_stop"() : () -> ()
    %258 = vector.extract_strided_slice %257 {offsets = [0, 0, 0], sizes = [1, 8, 16], strides = [1, 1, 1]} : vector<4x8x16xf32> to vector<1x8x16xf32>
    %259 = vector.shape_cast %258 : vector<1x8x16xf32> to vector<8x16xf32>
    %260 = vector.extract_strided_slice %257 {offsets = [1, 0, 0], sizes = [1, 8, 16], strides = [1, 1, 1]} : vector<4x8x16xf32> to vector<1x8x16xf32>
    %261 = vector.shape_cast %260 : vector<1x8x16xf32> to vector<8x16xf32>
    %262 = tpu.concatenate %259, %261 in 1 : vector<8x16xf32>, vector<8x16xf32> -> vector<8x32xf32>
    %263 = vector.extract_strided_slice %257 {offsets = [2, 0, 0], sizes = [1, 8, 16], strides = [1, 1, 1]} : vector<4x8x16xf32> to vector<1x8x16xf32>
    %264 = vector.shape_cast %263 : vector<1x8x16xf32> to vector<8x16xf32>
    %265 = vector.extract_strided_slice %257 {offsets = [3, 0, 0], sizes = [1, 8, 16], strides = [1, 1, 1]} : vector<4x8x16xf32> to vector<1x8x16xf32>
    %266 = vector.shape_cast %265 : vector<1x8x16xf32> to vector<8x16xf32>
    %267 = tpu.concatenate %264, %266 in 1 : vector<8x16xf32>, vector<8x16xf32> -> vector<8x32xf32>
    %268 = tpu.concatenate %262, %267 in 0 : vector<8x32xf32>, vector<8x32xf32> -> vector<16x32xf32>
    %c1_91 = arith.constant 1 : index
    %c0_92 = arith.constant 0 : index
    %c0_93 = arith.constant 0 : index
    %269 = vector.load %arg7[%c1_91, %c0_92, %c0_93] : memref<2x32x32xf32, #tpu.memory_space<vmem>>, vector<1x32x32xf32>
    %270 = vector.shape_cast %269 : vector<1x32x32xf32> to vector<32x32xf32>
    %cst_94 = arith.constant dense<0.000000e+00> : vector<16x32xf32>
    %271 = tpu.matmul %268, %270, %cst_94 {dimension_numbers = #tpu.dot_dimension_numbers<[1], [0], [0], [1], [0, 0, 1, 1], [], []>} : vector<16x32xf32>, vector<32x32xf32>, vector<16x32xf32> -> vector<16x32xf32>
    %c1_95 = arith.constant 1 : index
    %c0_96 = arith.constant 0 : index
    %c0_97 = arith.constant 0 : index
    %272 = vector.load %arg8[%c1_95, %c0_96, %c0_97] : memref<2x1x32xf32, #tpu.memory_space<vmem>>, vector<1x1x32xf32>
    %273 = vector.shape_cast %272 : vector<1x1x32xf32> to vector<1x32xf32>
    %274 = vector.broadcast %273 : vector<1x32xf32> to vector<16x32xf32>
    %275 = arith.addf %271, %274 : vector<16x32xf32>
    %276 = arith.addf %207, %275 : vector<16x32xf32>
    %c1_98 = arith.constant 1 : index
    %c0_99 = arith.constant 0 : index
    %c0_100 = arith.constant 0 : index
    %277 = vector.load %arg9[%c1_98, %c0_99, %c0_100] : memref<2x1x32xf32, #tpu.memory_space<vmem>>, vector<1x1x32xf32>
    %278 = vector.shape_cast %277 : vector<1x1x32xf32> to vector<1x32xf32>
    %c1_101 = arith.constant 1 : index
    %c0_102 = arith.constant 0 : index
    %c0_103 = arith.constant 0 : index
    %279 = vector.load %arg10[%c1_101, %c0_102, %c0_103] : memref<2x1x32xf32, #tpu.memory_space<vmem>>, vector<1x1x32xf32>
    %280 = vector.shape_cast %279 : vector<1x1x32xf32> to vector<1x32xf32>
    %cst_104 = arith.constant dense<0.000000e+00> : vector<16xf32>
    %281 = vector.multi_reduction <add>, %276, %cst_104 [1] : vector<16x32xf32> to vector<16xf32>
    %282 = vector.shape_cast %281 : vector<16xf32> to vector<16x1xf32>
    %cst_105 = arith.constant 3.200000e+01 : f32
    %283 = vector.broadcast %cst_105 : f32 to vector<16x1xf32>
    %284 = arith.divf %282, %283 : vector<16x1xf32>
    %285 = vector.broadcast %284 : vector<16x1xf32> to vector<16x32xf32>
    %286 = arith.subf %276, %285 : vector<16x32xf32>
    %287 = vector.broadcast %284 : vector<16x1xf32> to vector<16x32xf32>
    %288 = arith.subf %276, %287 : vector<16x32xf32>
    %289 = arith.mulf %286, %288 : vector<16x32xf32>
    %cst_106 = arith.constant dense<0.000000e+00> : vector<16xf32>
    %290 = vector.multi_reduction <add>, %289, %cst_106 [1] : vector<16x32xf32> to vector<16xf32>
    %291 = vector.shape_cast %290 : vector<16xf32> to vector<16x1xf32>
    %cst_107 = arith.constant 3.200000e+01 : f32
    %292 = vector.broadcast %cst_107 : f32 to vector<16x1xf32>
    %293 = arith.divf %291, %292 : vector<16x1xf32>
    %294 = vector.broadcast %284 : vector<16x1xf32> to vector<16x32xf32>
    %295 = arith.subf %276, %294 : vector<16x32xf32>
    %cst_108 = arith.constant 9.99999996E-13 : f32
    %296 = vector.broadcast %cst_108 : f32 to vector<16x1xf32>
    %297 = arith.addf %293, %296 : vector<16x1xf32>
    %298 = math.rsqrt %297 : vector<16x1xf32>
    %299 = vector.broadcast %298 : vector<16x1xf32> to vector<16x32xf32>
    %300 = arith.mulf %295, %299 : vector<16x32xf32>
    %301 = vector.broadcast %278 : vector<1x32xf32> to vector<16x32xf32>
    %302 = arith.mulf %300, %301 : vector<16x32xf32>
    %303 = vector.broadcast %280 : vector<1x32xf32> to vector<16x32xf32>
    %304 = arith.addf %302, %303 : vector<16x32xf32>
    %c1_109 = arith.constant 1 : index
    %c0_110 = arith.constant 0 : index
    %c0_111 = arith.constant 0 : index
    %305 = vector.load %arg11[%c1_109, %c0_110, %c0_111] : memref<2x32x64xf32, #tpu.memory_space<vmem>>, vector<1x32x64xf32>
    %306 = vector.shape_cast %305 : vector<1x32x64xf32> to vector<32x64xf32>
    %cst_112 = arith.constant dense<0.000000e+00> : vector<16x64xf32>
    %307 = tpu.matmul %304, %306, %cst_112 {dimension_numbers = #tpu.dot_dimension_numbers<[1], [0], [0], [1], [0, 0, 1, 1], [], []>} : vector<16x32xf32>, vector<32x64xf32>, vector<16x64xf32> -> vector<16x64xf32>
    %c1_113 = arith.constant 1 : index
    %c0_114 = arith.constant 0 : index
    %c0_115 = arith.constant 0 : index
    %308 = vector.load %arg12[%c1_113, %c0_114, %c0_115] : memref<2x1x64xf32, #tpu.memory_space<vmem>>, vector<1x1x64xf32>
    %309 = vector.shape_cast %308 : vector<1x1x64xf32> to vector<1x64xf32>
    %310 = vector.broadcast %309 : vector<1x64xf32> to vector<16x64xf32>
    %311 = arith.addf %307, %310 : vector<16x64xf32>
    %cst_116 = arith.constant 5.000000e-01 : f32
    %312 = vector.broadcast %cst_116 : f32 to vector<16x64xf32>
    %313 = arith.mulf %312, %311 : vector<16x64xf32>
    %cst_117 = arith.constant 0.707106769 : f32
    %314 = vector.broadcast %cst_117 : f32 to vector<16x64xf32>
    %315 = arith.mulf %311, %314 : vector<16x64xf32>
    %316 = math.absf %315 : vector<16x64xf32>
    %cst_118 = arith.constant 0.327591091 : f32
    %317 = vector.broadcast %cst_118 : f32 to vector<16x64xf32>
    %318 = arith.mulf %317, %316 : vector<16x64xf32>
    %cst_119 = arith.constant 1.000000e+00 : f32
    %319 = vector.broadcast %cst_119 : f32 to vector<16x64xf32>
    %320 = arith.addf %319, %318 : vector<16x64xf32>
    %cst_120 = arith.constant 1.000000e+00 : f32
    %321 = vector.broadcast %cst_120 : f32 to vector<16x64xf32>
    %322 = arith.divf %321, %320 : vector<16x64xf32>
    %cst_121 = arith.constant 1.06140542 : f32
    %323 = vector.broadcast %cst_121 : f32 to vector<16x64xf32>
    %324 = arith.mulf %322, %323 : vector<16x64xf32>
    %cst_122 = arith.constant -1.45315206 : f32
    %325 = vector.broadcast %cst_122 : f32 to vector<16x64xf32>
    %326 = arith.addf %325, %324 : vector<16x64xf32>
    %327 = arith.mulf %322, %326 : vector<16x64xf32>
    %cst_123 = arith.constant 1.42141378 : f32
    %328 = vector.broadcast %cst_123 : f32 to vector<16x64xf32>
    %329 = arith.addf %328, %327 : vector<16x64xf32>
    %330 = arith.mulf %322, %329 : vector<16x64xf32>
    %cst_124 = arith.constant -0.284496725 : f32
    %331 = vector.broadcast %cst_124 : f32 to vector<16x64xf32>
    %332 = arith.addf %331, %330 : vector<16x64xf32>
    %333 = arith.mulf %322, %332 : vector<16x64xf32>
    %cst_125 = arith.constant 0.254829586 : f32
    %334 = vector.broadcast %cst_125 : f32 to vector<16x64xf32>
    %335 = arith.addf %334, %333 : vector<16x64xf32>
    %336 = arith.mulf %322, %335 : vector<16x64xf32>
    %cst_126 = arith.constant 0.000000e+00 : f32
    %337 = vector.broadcast %cst_126 : f32 to vector<16x64xf32>
    %338 = arith.subf %337, %315 : vector<16x64xf32>
    %339 = arith.mulf %338, %315 : vector<16x64xf32>
    %340 = math.exp %339 : vector<16x64xf32>
    %341 = arith.mulf %336, %340 : vector<16x64xf32>
    %cst_127 = arith.constant 1.000000e+00 : f32
    %342 = vector.broadcast %cst_127 : f32 to vector<16x64xf32>
    %343 = arith.subf %342, %341 : vector<16x64xf32>
    %cst_128 = arith.constant 0.000000e+00 : f32
    %344 = vector.broadcast %cst_128 : f32 to vector<16x64xf32>
    %345 = arith.cmpf oge, %315, %344 : vector<16x64xf32>
    %cst_129 = arith.constant 0.000000e+00 : f32
    %346 = vector.broadcast %cst_129 : f32 to vector<16x64xf32>
    %347 = arith.subf %346, %343 : vector<16x64xf32>
    %348 = arith.select %345, %343, %347 : vector<16x64xi1>, vector<16x64xf32>
    %cst_130 = arith.constant 1.000000e+00 : f32
    %349 = vector.broadcast %cst_130 : f32 to vector<16x64xf32>
    %350 = arith.addf %349, %348 : vector<16x64xf32>
    %351 = arith.mulf %313, %350 : vector<16x64xf32>
    %c1_131 = arith.constant 1 : index
    %c0_132 = arith.constant 0 : index
    %c0_133 = arith.constant 0 : index
    %352 = vector.load %arg13[%c1_131, %c0_132, %c0_133] : memref<2x64x32xf32, #tpu.memory_space<vmem>>, vector<1x64x32xf32>
    %353 = vector.shape_cast %352 : vector<1x64x32xf32> to vector<64x32xf32>
    %cst_134 = arith.constant dense<0.000000e+00> : vector<16x32xf32>
    %354 = tpu.matmul %351, %353, %cst_134 {dimension_numbers = #tpu.dot_dimension_numbers<[1], [0], [0], [1], [0, 0, 1, 1], [], []>} : vector<16x64xf32>, vector<64x32xf32>, vector<16x32xf32> -> vector<16x32xf32>
    %c1_135 = arith.constant 1 : index
    %c0_136 = arith.constant 0 : index
    %c0_137 = arith.constant 0 : index
    %355 = vector.load %arg14[%c1_135, %c0_136, %c0_137] : memref<2x1x32xf32, #tpu.memory_space<vmem>>, vector<1x1x32xf32>
    %356 = vector.shape_cast %355 : vector<1x1x32xf32> to vector<1x32xf32>
    %357 = vector.broadcast %356 : vector<1x32xf32> to vector<16x32xf32>
    %358 = arith.addf %354, %357 : vector<16x32xf32>
    %359 = arith.addf %304, %358 : vector<16x32xf32>
    %c1_138 = arith.constant 1 : index
    %c0_139 = arith.constant 0 : index
    %c0_140 = arith.constant 0 : index
    %360 = vector.load %arg15[%c1_138, %c0_139, %c0_140] : memref<2x1x32xf32, #tpu.memory_space<vmem>>, vector<1x1x32xf32>
    %361 = vector.shape_cast %360 : vector<1x1x32xf32> to vector<1x32xf32>
    %c1_141 = arith.constant 1 : index
    %c0_142 = arith.constant 0 : index
    %c0_143 = arith.constant 0 : index
    %362 = vector.load %arg16[%c1_141, %c0_142, %c0_143] : memref<2x1x32xf32, #tpu.memory_space<vmem>>, vector<1x1x32xf32>
    %363 = vector.shape_cast %362 : vector<1x1x32xf32> to vector<1x32xf32>
    %cst_144 = arith.constant dense<0.000000e+00> : vector<16xf32>
    %364 = vector.multi_reduction <add>, %359, %cst_144 [1] : vector<16x32xf32> to vector<16xf32>
    %365 = vector.shape_cast %364 : vector<16xf32> to vector<16x1xf32>
    %cst_145 = arith.constant 3.200000e+01 : f32
    %366 = vector.broadcast %cst_145 : f32 to vector<16x1xf32>
    %367 = arith.divf %365, %366 : vector<16x1xf32>
    %368 = vector.broadcast %367 : vector<16x1xf32> to vector<16x32xf32>
    %369 = arith.subf %359, %368 : vector<16x32xf32>
    %370 = vector.broadcast %367 : vector<16x1xf32> to vector<16x32xf32>
    %371 = arith.subf %359, %370 : vector<16x32xf32>
    %372 = arith.mulf %369, %371 : vector<16x32xf32>
    %cst_146 = arith.constant dense<0.000000e+00> : vector<16xf32>
    %373 = vector.multi_reduction <add>, %372, %cst_146 [1] : vector<16x32xf32> to vector<16xf32>
    %374 = vector.shape_cast %373 : vector<16xf32> to vector<16x1xf32>
    %cst_147 = arith.constant 3.200000e+01 : f32
    %375 = vector.broadcast %cst_147 : f32 to vector<16x1xf32>
    %376 = arith.divf %374, %375 : vector<16x1xf32>
    %377 = vector.broadcast %367 : vector<16x1xf32> to vector<16x32xf32>
    %378 = arith.subf %359, %377 : vector<16x32xf32>
    %cst_148 = arith.constant 9.99999996E-13 : f32
    %379 = vector.broadcast %cst_148 : f32 to vector<16x1xf32>
    %380 = arith.addf %376, %379 : vector<16x1xf32>
    %381 = math.rsqrt %380 : vector<16x1xf32>
    %382 = vector.broadcast %381 : vector<16x1xf32> to vector<16x32xf32>
    %383 = arith.mulf %378, %382 : vector<16x32xf32>
    %384 = vector.broadcast %361 : vector<1x32xf32> to vector<16x32xf32>
    %385 = arith.mulf %383, %384 : vector<16x32xf32>
    %386 = vector.broadcast %363 : vector<1x32xf32> to vector<16x32xf32>
    %387 = arith.addf %385, %386 : vector<16x32xf32>
    %c0_149 = arith.constant 0 : index
    %c0_150 = arith.constant 0 : index
    %388 = vector.load %arg17[%c0_149, %c0_150] : memref<32x128xf32, #tpu.memory_space<vmem>>, vector<32x128xf32>
    %cst_151 = arith.constant dense<0.000000e+00> : vector<16x128xf32>
    %389 = tpu.matmul %387, %388, %cst_151 {dimension_numbers = #tpu.dot_dimension_numbers<[1], [0], [0], [1], [0, 0, 1, 1], [], []>} : vector<16x32xf32>, vector<32x128xf32>, vector<16x128xf32> -> vector<16x128xf32>
    %c0_152 = arith.constant 0 : index
    %c0_153 = arith.constant 0 : index
    %390 = vector.load %arg18[%c0_152, %c0_153] : memref<1x128xf32, #tpu.memory_space<vmem>>, vector<1x128xf32>
    %391 = vector.broadcast %390 : vector<1x128xf32> to vector<16x128xf32>
    %392 = arith.addf %389, %391 : vector<16x128xf32>
    %393 = vector.shape_cast %392 : vector<16x128xf32> to vector<2x8x128xf32>
    %394 = vector.extract_strided_slice %393 {offsets = [0, 0, 0], sizes = [2, 8, 64], strides = [1, 1, 1]} : vector<2x8x128xf32> to vector<2x8x64xf32>
    %395 = vector.extract_strided_slice %393 {offsets = [0, 0, 64], sizes = [2, 8, 64], strides = [1, 1, 1]} : vector<2x8x128xf32> to vector<2x8x64xf32>
    %c0_154 = arith.constant 0 : index
    %c0_155 = arith.constant 0 : index
    %c0_156 = arith.constant 0 : index
    %396 = vector.load %arg19[%c0_154, %c0_155, %c0_156] : memref<2x16x64xf32, #tpu.memory_space<vmem>>, vector<2x16x64xf32>
    %cst_157 = arith.constant 0.000000e+00 : f32
    %397 = vector.broadcast %cst_157 : f32 to vector<2x2x16xf32>
    %cst_158 = arith.constant 0.000000e+00 : f32
    %398 = vector.broadcast %cst_158 : f32 to vector<2x2x16xf32>
    %399 = vector.extract_strided_slice %394 {offsets = [0, 0, 0], sizes = [2, 1, 64], strides = [1, 1, 1]} : vector<2x8x64xf32> to vector<2x1x64xf32>
    %400 = vector.shape_cast %399 : vector<2x1x64xf32> to vector<2x64xf32>
    %401 = vector.shape_cast %400 : vector<2x64xf32> to vector<1x2x64xf32>
    %402 = vector.extract_strided_slice %395 {offsets = [0, 7, 0], sizes = [2, 1, 64], strides = [1, 1, 1]} : vector<2x8x64xf32> to vector<2x1x64xf32>
    %403 = vector.shape_cast %402 : vector<2x1x64xf32> to vector<2x64xf32>
    %404 = vector.shape_cast %403 : vector<2x64xf32> to vector<1x2x64xf32>
    %405 = tpu.concatenate %401, %404 in 0 : vector<1x2x64xf32>, vector<1x2x64xf32> -> vector<2x2x64xf32>
    "tpu.trace_start"() <{level = 10 : i32, message = "nbh,nhg->nbg"}> : () -> ()
    %cst_159 = arith.constant dense<0.000000e+00> : vector<2x2x64xf32>
    %406 = tpu.matmul %397, %396, %cst_159 {dimension_numbers = #tpu.dot_dimension_numbers<[2], [1], [1], [2], [0, 0, 0, 1, 1, 2], [0], [0]>} : vector<2x2x16xf32>, vector<2x16x64xf32>, vector<2x2x64xf32> -> vector<2x2x64xf32>
    "tpu.trace_stop"() : () -> ()
    %407 = arith.addf %405, %406 : vector<2x2x64xf32>
    %408 = vector.extract_strided_slice %407 {offsets = [0, 0, 0], sizes = [2, 2, 16], strides = [1, 1, 1]} : vector<2x2x64xf32> to vector<2x2x16xf32>
    %cst_160 = arith.constant 0.000000e+00 : f32
    %409 = vector.broadcast %cst_160 : f32 to vector<2x2x16xf32>
    %410 = arith.subf %409, %408 : vector<2x2x16xf32>
    %411 = math.exp %410 : vector<2x2x16xf32>
    %cst_161 = arith.constant 1.000000e+00 : f32
    %412 = vector.broadcast %cst_161 : f32 to vector<2x2x16xf32>
    %413 = arith.addf %412, %411 : vector<2x2x16xf32>
    %cst_162 = arith.constant 1.000000e+00 : f32
    %414 = vector.broadcast %cst_162 : f32 to vector<2x2x16xf32>
    %415 = arith.divf %414, %413 : vector<2x2x16xf32>
    %416 = vector.extract_strided_slice %407 {offsets = [0, 0, 16], sizes = [2, 2, 16], strides = [1, 1, 1]} : vector<2x2x64xf32> to vector<2x2x16xf32>
    %cst_163 = arith.constant 0.000000e+00 : f32
    %417 = vector.broadcast %cst_163 : f32 to vector<2x2x16xf32>
    %418 = arith.subf %417, %416 : vector<2x2x16xf32>
    %419 = math.exp %418 : vector<2x2x16xf32>
    %cst_164 = arith.constant 1.000000e+00 : f32
    %420 = vector.broadcast %cst_164 : f32 to vector<2x2x16xf32>
    %421 = arith.addf %420, %419 : vector<2x2x16xf32>
    %cst_165 = arith.constant 1.000000e+00 : f32
    %422 = vector.broadcast %cst_165 : f32 to vector<2x2x16xf32>
    %423 = arith.divf %422, %421 : vector<2x2x16xf32>
    %424 = vector.extract_strided_slice %407 {offsets = [0, 0, 32], sizes = [2, 2, 16], strides = [1, 1, 1]} : vector<2x2x64xf32> to vector<2x2x16xf32>
    %425 = math.tanh %424 : vector<2x2x16xf32>
    %426 = vector.extract_strided_slice %407 {offsets = [0, 0, 48], sizes = [2, 2, 16], strides = [1, 1, 1]} : vector<2x2x64xf32> to vector<2x2x16xf32>
    %cst_166 = arith.constant 0.000000e+00 : f32
    %427 = vector.broadcast %cst_166 : f32 to vector<2x2x16xf32>
    %428 = arith.subf %427, %426 : vector<2x2x16xf32>
    %429 = math.exp %428 : vector<2x2x16xf32>
    %cst_167 = arith.constant 1.000000e+00 : f32
    %430 = vector.broadcast %cst_167 : f32 to vector<2x2x16xf32>
    %431 = arith.addf %430, %429 : vector<2x2x16xf32>
    %cst_168 = arith.constant 1.000000e+00 : f32
    %432 = vector.broadcast %cst_168 : f32 to vector<2x2x16xf32>
    %433 = arith.divf %432, %431 : vector<2x2x16xf32>
    %434 = arith.mulf %423, %398 : vector<2x2x16xf32>
    %435 = arith.mulf %415, %425 : vector<2x2x16xf32>
    %436 = arith.addf %434, %435 : vector<2x2x16xf32>
    %437 = math.tanh %436 : vector<2x2x16xf32>
    %438 = arith.mulf %433, %437 : vector<2x2x16xf32>
    %439 = vector.extract_strided_slice %438 {offsets = [0, 0, 0], sizes = [1, 2, 16], strides = [1, 1, 1]} : vector<2x2x16xf32> to vector<1x2x16xf32>
    %440 = vector.shape_cast %439 : vector<1x2x16xf32> to vector<2x16xf32>
    %441 = vector.extract_strided_slice %438 {offsets = [1, 0, 0], sizes = [1, 2, 16], strides = [1, 1, 1]} : vector<2x2x16xf32> to vector<1x2x16xf32>
    %442 = vector.shape_cast %441 : vector<1x2x16xf32> to vector<2x16xf32>
    %443 = vector.extract_strided_slice %394 {offsets = [0, 1, 0], sizes = [2, 1, 64], strides = [1, 1, 1]} : vector<2x8x64xf32> to vector<2x1x64xf32>
    %444 = vector.shape_cast %443 : vector<2x1x64xf32> to vector<2x64xf32>
    %445 = vector.shape_cast %444 : vector<2x64xf32> to vector<1x2x64xf32>
    %446 = vector.extract_strided_slice %395 {offsets = [0, 6, 0], sizes = [2, 1, 64], strides = [1, 1, 1]} : vector<2x8x64xf32> to vector<2x1x64xf32>
    %447 = vector.shape_cast %446 : vector<2x1x64xf32> to vector<2x64xf32>
    %448 = vector.shape_cast %447 : vector<2x64xf32> to vector<1x2x64xf32>
    %449 = tpu.concatenate %445, %448 in 0 : vector<1x2x64xf32>, vector<1x2x64xf32> -> vector<2x2x64xf32>
    "tpu.trace_start"() <{level = 10 : i32, message = "nbh,nhg->nbg"}> : () -> ()
    %cst_169 = arith.constant dense<0.000000e+00> : vector<2x2x64xf32>
    %450 = tpu.matmul %438, %396, %cst_169 {dimension_numbers = #tpu.dot_dimension_numbers<[2], [1], [1], [2], [0, 0, 0, 1, 1, 2], [0], [0]>} : vector<2x2x16xf32>, vector<2x16x64xf32>, vector<2x2x64xf32> -> vector<2x2x64xf32>
    "tpu.trace_stop"() : () -> ()
    %451 = arith.addf %449, %450 : vector<2x2x64xf32>
    %452 = vector.extract_strided_slice %451 {offsets = [0, 0, 0], sizes = [2, 2, 16], strides = [1, 1, 1]} : vector<2x2x64xf32> to vector<2x2x16xf32>
    %cst_170 = arith.constant 0.000000e+00 : f32
    %453 = vector.broadcast %cst_170 : f32 to vector<2x2x16xf32>
    %454 = arith.subf %453, %452 : vector<2x2x16xf32>
    %455 = math.exp %454 : vector<2x2x16xf32>
    %cst_171 = arith.constant 1.000000e+00 : f32
    %456 = vector.broadcast %cst_171 : f32 to vector<2x2x16xf32>
    %457 = arith.addf %456, %455 : vector<2x2x16xf32>
    %cst_172 = arith.constant 1.000000e+00 : f32
    %458 = vector.broadcast %cst_172 : f32 to vector<2x2x16xf32>
    %459 = arith.divf %458, %457 : vector<2x2x16xf32>
    %460 = vector.extract_strided_slice %451 {offsets = [0, 0, 16], sizes = [2, 2, 16], strides = [1, 1, 1]} : vector<2x2x64xf32> to vector<2x2x16xf32>
    %cst_173 = arith.constant 0.000000e+00 : f32
    %461 = vector.broadcast %cst_173 : f32 to vector<2x2x16xf32>
    %462 = arith.subf %461, %460 : vector<2x2x16xf32>
    %463 = math.exp %462 : vector<2x2x16xf32>
    %cst_174 = arith.constant 1.000000e+00 : f32
    %464 = vector.broadcast %cst_174 : f32 to vector<2x2x16xf32>
    %465 = arith.addf %464, %463 : vector<2x2x16xf32>
    %cst_175 = arith.constant 1.000000e+00 : f32
    %466 = vector.broadcast %cst_175 : f32 to vector<2x2x16xf32>
    %467 = arith.divf %466, %465 : vector<2x2x16xf32>
    %468 = vector.extract_strided_slice %451 {offsets = [0, 0, 32], sizes = [2, 2, 16], strides = [1, 1, 1]} : vector<2x2x64xf32> to vector<2x2x16xf32>
    %469 = math.tanh %468 : vector<2x2x16xf32>
    %470 = vector.extract_strided_slice %451 {offsets = [0, 0, 48], sizes = [2, 2, 16], strides = [1, 1, 1]} : vector<2x2x64xf32> to vector<2x2x16xf32>
    %cst_176 = arith.constant 0.000000e+00 : f32
    %471 = vector.broadcast %cst_176 : f32 to vector<2x2x16xf32>
    %472 = arith.subf %471, %470 : vector<2x2x16xf32>
    %473 = math.exp %472 : vector<2x2x16xf32>
    %cst_177 = arith.constant 1.000000e+00 : f32
    %474 = vector.broadcast %cst_177 : f32 to vector<2x2x16xf32>
    %475 = arith.addf %474, %473 : vector<2x2x16xf32>
    %cst_178 = arith.constant 1.000000e+00 : f32
    %476 = vector.broadcast %cst_178 : f32 to vector<2x2x16xf32>
    %477 = arith.divf %476, %475 : vector<2x2x16xf32>
    %478 = arith.mulf %467, %436 : vector<2x2x16xf32>
    %479 = arith.mulf %459, %469 : vector<2x2x16xf32>
    %480 = arith.addf %478, %479 : vector<2x2x16xf32>
    %481 = math.tanh %480 : vector<2x2x16xf32>
    %482 = arith.mulf %477, %481 : vector<2x2x16xf32>
    %483 = vector.extract_strided_slice %482 {offsets = [0, 0, 0], sizes = [1, 2, 16], strides = [1, 1, 1]} : vector<2x2x16xf32> to vector<1x2x16xf32>
    %484 = vector.shape_cast %483 : vector<1x2x16xf32> to vector<2x16xf32>
    %485 = vector.extract_strided_slice %482 {offsets = [1, 0, 0], sizes = [1, 2, 16], strides = [1, 1, 1]} : vector<2x2x16xf32> to vector<1x2x16xf32>
    %486 = vector.shape_cast %485 : vector<1x2x16xf32> to vector<2x16xf32>
    %487 = vector.extract_strided_slice %394 {offsets = [0, 2, 0], sizes = [2, 1, 64], strides = [1, 1, 1]} : vector<2x8x64xf32> to vector<2x1x64xf32>
    %488 = vector.shape_cast %487 : vector<2x1x64xf32> to vector<2x64xf32>
    %489 = vector.shape_cast %488 : vector<2x64xf32> to vector<1x2x64xf32>
    %490 = vector.extract_strided_slice %395 {offsets = [0, 5, 0], sizes = [2, 1, 64], strides = [1, 1, 1]} : vector<2x8x64xf32> to vector<2x1x64xf32>
    %491 = vector.shape_cast %490 : vector<2x1x64xf32> to vector<2x64xf32>
    %492 = vector.shape_cast %491 : vector<2x64xf32> to vector<1x2x64xf32>
    %493 = tpu.concatenate %489, %492 in 0 : vector<1x2x64xf32>, vector<1x2x64xf32> -> vector<2x2x64xf32>
    "tpu.trace_start"() <{level = 10 : i32, message = "nbh,nhg->nbg"}> : () -> ()
    %cst_179 = arith.constant dense<0.000000e+00> : vector<2x2x64xf32>
    %494 = tpu.matmul %482, %396, %cst_179 {dimension_numbers = #tpu.dot_dimension_numbers<[2], [1], [1], [2], [0, 0, 0, 1, 1, 2], [0], [0]>} : vector<2x2x16xf32>, vector<2x16x64xf32>, vector<2x2x64xf32> -> vector<2x2x64xf32>
    "tpu.trace_stop"() : () -> ()
    %495 = arith.addf %493, %494 : vector<2x2x64xf32>
    %496 = vector.extract_strided_slice %495 {offsets = [0, 0, 0], sizes = [2, 2, 16], strides = [1, 1, 1]} : vector<2x2x64xf32> to vector<2x2x16xf32>
    %cst_180 = arith.constant 0.000000e+00 : f32
    %497 = vector.broadcast %cst_180 : f32 to vector<2x2x16xf32>
    %498 = arith.subf %497, %496 : vector<2x2x16xf32>
    %499 = math.exp %498 : vector<2x2x16xf32>
    %cst_181 = arith.constant 1.000000e+00 : f32
    %500 = vector.broadcast %cst_181 : f32 to vector<2x2x16xf32>
    %501 = arith.addf %500, %499 : vector<2x2x16xf32>
    %cst_182 = arith.constant 1.000000e+00 : f32
    %502 = vector.broadcast %cst_182 : f32 to vector<2x2x16xf32>
    %503 = arith.divf %502, %501 : vector<2x2x16xf32>
    %504 = vector.extract_strided_slice %495 {offsets = [0, 0, 16], sizes = [2, 2, 16], strides = [1, 1, 1]} : vector<2x2x64xf32> to vector<2x2x16xf32>
    %cst_183 = arith.constant 0.000000e+00 : f32
    %505 = vector.broadcast %cst_183 : f32 to vector<2x2x16xf32>
    %506 = arith.subf %505, %504 : vector<2x2x16xf32>
    %507 = math.exp %506 : vector<2x2x16xf32>
    %cst_184 = arith.constant 1.000000e+00 : f32
    %508 = vector.broadcast %cst_184 : f32 to vector<2x2x16xf32>
    %509 = arith.addf %508, %507 : vector<2x2x16xf32>
    %cst_185 = arith.constant 1.000000e+00 : f32
    %510 = vector.broadcast %cst_185 : f32 to vector<2x2x16xf32>
    %511 = arith.divf %510, %509 : vector<2x2x16xf32>
    %512 = vector.extract_strided_slice %495 {offsets = [0, 0, 32], sizes = [2, 2, 16], strides = [1, 1, 1]} : vector<2x2x64xf32> to vector<2x2x16xf32>
    %513 = math.tanh %512 : vector<2x2x16xf32>
    %514 = vector.extract_strided_slice %495 {offsets = [0, 0, 48], sizes = [2, 2, 16], strides = [1, 1, 1]} : vector<2x2x64xf32> to vector<2x2x16xf32>
    %cst_186 = arith.constant 0.000000e+00 : f32
    %515 = vector.broadcast %cst_186 : f32 to vector<2x2x16xf32>
    %516 = arith.subf %515, %514 : vector<2x2x16xf32>
    %517 = math.exp %516 : vector<2x2x16xf32>
    %cst_187 = arith.constant 1.000000e+00 : f32
    %518 = vector.broadcast %cst_187 : f32 to vector<2x2x16xf32>
    %519 = arith.addf %518, %517 : vector<2x2x16xf32>
    %cst_188 = arith.constant 1.000000e+00 : f32
    %520 = vector.broadcast %cst_188 : f32 to vector<2x2x16xf32>
    %521 = arith.divf %520, %519 : vector<2x2x16xf32>
    %522 = arith.mulf %511, %480 : vector<2x2x16xf32>
    %523 = arith.mulf %503, %513 : vector<2x2x16xf32>
    %524 = arith.addf %522, %523 : vector<2x2x16xf32>
    %525 = math.tanh %524 : vector<2x2x16xf32>
    %526 = arith.mulf %521, %525 : vector<2x2x16xf32>
    %527 = vector.extract_strided_slice %526 {offsets = [0, 0, 0], sizes = [1, 2, 16], strides = [1, 1, 1]} : vector<2x2x16xf32> to vector<1x2x16xf32>
    %528 = vector.shape_cast %527 : vector<1x2x16xf32> to vector<2x16xf32>
    %529 = vector.extract_strided_slice %526 {offsets = [1, 0, 0], sizes = [1, 2, 16], strides = [1, 1, 1]} : vector<2x2x16xf32> to vector<1x2x16xf32>
    %530 = vector.shape_cast %529 : vector<1x2x16xf32> to vector<2x16xf32>
    %531 = vector.extract_strided_slice %394 {offsets = [0, 3, 0], sizes = [2, 1, 64], strides = [1, 1, 1]} : vector<2x8x64xf32> to vector<2x1x64xf32>
    %532 = vector.shape_cast %531 : vector<2x1x64xf32> to vector<2x64xf32>
    %533 = vector.shape_cast %532 : vector<2x64xf32> to vector<1x2x64xf32>
    %534 = vector.extract_strided_slice %395 {offsets = [0, 4, 0], sizes = [2, 1, 64], strides = [1, 1, 1]} : vector<2x8x64xf32> to vector<2x1x64xf32>
    %535 = vector.shape_cast %534 : vector<2x1x64xf32> to vector<2x64xf32>
    %536 = vector.shape_cast %535 : vector<2x64xf32> to vector<1x2x64xf32>
    %537 = tpu.concatenate %533, %536 in 0 : vector<1x2x64xf32>, vector<1x2x64xf32> -> vector<2x2x64xf32>
    "tpu.trace_start"() <{level = 10 : i32, message = "nbh,nhg->nbg"}> : () -> ()
    %cst_189 = arith.constant dense<0.000000e+00> : vector<2x2x64xf32>
    %538 = tpu.matmul %526, %396, %cst_189 {dimension_numbers = #tpu.dot_dimension_numbers<[2], [1], [1], [2], [0, 0, 0, 1, 1, 2], [0], [0]>} : vector<2x2x16xf32>, vector<2x16x64xf32>, vector<2x2x64xf32> -> vector<2x2x64xf32>
    "tpu.trace_stop"() : () -> ()
    %539 = arith.addf %537, %538 : vector<2x2x64xf32>
    %540 = vector.extract_strided_slice %539 {offsets = [0, 0, 0], sizes = [2, 2, 16], strides = [1, 1, 1]} : vector<2x2x64xf32> to vector<2x2x16xf32>
    %cst_190 = arith.constant 0.000000e+00 : f32
    %541 = vector.broadcast %cst_190 : f32 to vector<2x2x16xf32>
    %542 = arith.subf %541, %540 : vector<2x2x16xf32>
    %543 = math.exp %542 : vector<2x2x16xf32>
    %cst_191 = arith.constant 1.000000e+00 : f32
    %544 = vector.broadcast %cst_191 : f32 to vector<2x2x16xf32>
    %545 = arith.addf %544, %543 : vector<2x2x16xf32>
    %cst_192 = arith.constant 1.000000e+00 : f32
    %546 = vector.broadcast %cst_192 : f32 to vector<2x2x16xf32>
    %547 = arith.divf %546, %545 : vector<2x2x16xf32>
    %548 = vector.extract_strided_slice %539 {offsets = [0, 0, 16], sizes = [2, 2, 16], strides = [1, 1, 1]} : vector<2x2x64xf32> to vector<2x2x16xf32>
    %cst_193 = arith.constant 0.000000e+00 : f32
    %549 = vector.broadcast %cst_193 : f32 to vector<2x2x16xf32>
    %550 = arith.subf %549, %548 : vector<2x2x16xf32>
    %551 = math.exp %550 : vector<2x2x16xf32>
    %cst_194 = arith.constant 1.000000e+00 : f32
    %552 = vector.broadcast %cst_194 : f32 to vector<2x2x16xf32>
    %553 = arith.addf %552, %551 : vector<2x2x16xf32>
    %cst_195 = arith.constant 1.000000e+00 : f32
    %554 = vector.broadcast %cst_195 : f32 to vector<2x2x16xf32>
    %555 = arith.divf %554, %553 : vector<2x2x16xf32>
    %556 = vector.extract_strided_slice %539 {offsets = [0, 0, 32], sizes = [2, 2, 16], strides = [1, 1, 1]} : vector<2x2x64xf32> to vector<2x2x16xf32>
    %557 = math.tanh %556 : vector<2x2x16xf32>
    %558 = vector.extract_strided_slice %539 {offsets = [0, 0, 48], sizes = [2, 2, 16], strides = [1, 1, 1]} : vector<2x2x64xf32> to vector<2x2x16xf32>
    %cst_196 = arith.constant 0.000000e+00 : f32
    %559 = vector.broadcast %cst_196 : f32 to vector<2x2x16xf32>
    %560 = arith.subf %559, %558 : vector<2x2x16xf32>
    %561 = math.exp %560 : vector<2x2x16xf32>
    %cst_197 = arith.constant 1.000000e+00 : f32
    %562 = vector.broadcast %cst_197 : f32 to vector<2x2x16xf32>
    %563 = arith.addf %562, %561 : vector<2x2x16xf32>
    %cst_198 = arith.constant 1.000000e+00 : f32
    %564 = vector.broadcast %cst_198 : f32 to vector<2x2x16xf32>
    %565 = arith.divf %564, %563 : vector<2x2x16xf32>
    %566 = arith.mulf %555, %524 : vector<2x2x16xf32>
    %567 = arith.mulf %547, %557 : vector<2x2x16xf32>
    %568 = arith.addf %566, %567 : vector<2x2x16xf32>
    %569 = math.tanh %568 : vector<2x2x16xf32>
    %570 = arith.mulf %565, %569 : vector<2x2x16xf32>
    %571 = vector.extract_strided_slice %570 {offsets = [0, 0, 0], sizes = [1, 2, 16], strides = [1, 1, 1]} : vector<2x2x16xf32> to vector<1x2x16xf32>
    %572 = vector.shape_cast %571 : vector<1x2x16xf32> to vector<2x16xf32>
    %573 = vector.extract_strided_slice %570 {offsets = [1, 0, 0], sizes = [1, 2, 16], strides = [1, 1, 1]} : vector<2x2x16xf32> to vector<1x2x16xf32>
    %574 = vector.shape_cast %573 : vector<1x2x16xf32> to vector<2x16xf32>
    %575 = vector.extract_strided_slice %394 {offsets = [0, 4, 0], sizes = [2, 1, 64], strides = [1, 1, 1]} : vector<2x8x64xf32> to vector<2x1x64xf32>
    %576 = vector.shape_cast %575 : vector<2x1x64xf32> to vector<2x64xf32>
    %577 = vector.shape_cast %576 : vector<2x64xf32> to vector<1x2x64xf32>
    %578 = vector.extract_strided_slice %395 {offsets = [0, 3, 0], sizes = [2, 1, 64], strides = [1, 1, 1]} : vector<2x8x64xf32> to vector<2x1x64xf32>
    %579 = vector.shape_cast %578 : vector<2x1x64xf32> to vector<2x64xf32>
    %580 = vector.shape_cast %579 : vector<2x64xf32> to vector<1x2x64xf32>
    %581 = tpu.concatenate %577, %580 in 0 : vector<1x2x64xf32>, vector<1x2x64xf32> -> vector<2x2x64xf32>
    "tpu.trace_start"() <{level = 10 : i32, message = "nbh,nhg->nbg"}> : () -> ()
    %cst_199 = arith.constant dense<0.000000e+00> : vector<2x2x64xf32>
    %582 = tpu.matmul %570, %396, %cst_199 {dimension_numbers = #tpu.dot_dimension_numbers<[2], [1], [1], [2], [0, 0, 0, 1, 1, 2], [0], [0]>} : vector<2x2x16xf32>, vector<2x16x64xf32>, vector<2x2x64xf32> -> vector<2x2x64xf32>
    "tpu.trace_stop"() : () -> ()
    %583 = arith.addf %581, %582 : vector<2x2x64xf32>
    %584 = vector.extract_strided_slice %583 {offsets = [0, 0, 0], sizes = [2, 2, 16], strides = [1, 1, 1]} : vector<2x2x64xf32> to vector<2x2x16xf32>
    %cst_200 = arith.constant 0.000000e+00 : f32
    %585 = vector.broadcast %cst_200 : f32 to vector<2x2x16xf32>
    %586 = arith.subf %585, %584 : vector<2x2x16xf32>
    %587 = math.exp %586 : vector<2x2x16xf32>
    %cst_201 = arith.constant 1.000000e+00 : f32
    %588 = vector.broadcast %cst_201 : f32 to vector<2x2x16xf32>
    %589 = arith.addf %588, %587 : vector<2x2x16xf32>
    %cst_202 = arith.constant 1.000000e+00 : f32
    %590 = vector.broadcast %cst_202 : f32 to vector<2x2x16xf32>
    %591 = arith.divf %590, %589 : vector<2x2x16xf32>
    %592 = vector.extract_strided_slice %583 {offsets = [0, 0, 16], sizes = [2, 2, 16], strides = [1, 1, 1]} : vector<2x2x64xf32> to vector<2x2x16xf32>
    %cst_203 = arith.constant 0.000000e+00 : f32
    %593 = vector.broadcast %cst_203 : f32 to vector<2x2x16xf32>
    %594 = arith.subf %593, %592 : vector<2x2x16xf32>
    %595 = math.exp %594 : vector<2x2x16xf32>
    %cst_204 = arith.constant 1.000000e+00 : f32
    %596 = vector.broadcast %cst_204 : f32 to vector<2x2x16xf32>
    %597 = arith.addf %596, %595 : vector<2x2x16xf32>
    %cst_205 = arith.constant 1.000000e+00 : f32
    %598 = vector.broadcast %cst_205 : f32 to vector<2x2x16xf32>
    %599 = arith.divf %598, %597 : vector<2x2x16xf32>
    %600 = vector.extract_strided_slice %583 {offsets = [0, 0, 32], sizes = [2, 2, 16], strides = [1, 1, 1]} : vector<2x2x64xf32> to vector<2x2x16xf32>
    %601 = math.tanh %600 : vector<2x2x16xf32>
    %602 = vector.extract_strided_slice %583 {offsets = [0, 0, 48], sizes = [2, 2, 16], strides = [1, 1, 1]} : vector<2x2x64xf32> to vector<2x2x16xf32>
    %cst_206 = arith.constant 0.000000e+00 : f32
    %603 = vector.broadcast %cst_206 : f32 to vector<2x2x16xf32>
    %604 = arith.subf %603, %602 : vector<2x2x16xf32>
    %605 = math.exp %604 : vector<2x2x16xf32>
    %cst_207 = arith.constant 1.000000e+00 : f32
    %606 = vector.broadcast %cst_207 : f32 to vector<2x2x16xf32>
    %607 = arith.addf %606, %605 : vector<2x2x16xf32>
    %cst_208 = arith.constant 1.000000e+00 : f32
    %608 = vector.broadcast %cst_208 : f32 to vector<2x2x16xf32>
    %609 = arith.divf %608, %607 : vector<2x2x16xf32>
    %610 = arith.mulf %599, %568 : vector<2x2x16xf32>
    %611 = arith.mulf %591, %601 : vector<2x2x16xf32>
    %612 = arith.addf %610, %611 : vector<2x2x16xf32>
    %613 = math.tanh %612 : vector<2x2x16xf32>
    %614 = arith.mulf %609, %613 : vector<2x2x16xf32>
    %615 = vector.extract_strided_slice %614 {offsets = [0, 0, 0], sizes = [1, 2, 16], strides = [1, 1, 1]} : vector<2x2x16xf32> to vector<1x2x16xf32>
    %616 = vector.shape_cast %615 : vector<1x2x16xf32> to vector<2x16xf32>
    %617 = vector.extract_strided_slice %614 {offsets = [1, 0, 0], sizes = [1, 2, 16], strides = [1, 1, 1]} : vector<2x2x16xf32> to vector<1x2x16xf32>
    %618 = vector.shape_cast %617 : vector<1x2x16xf32> to vector<2x16xf32>
    %619 = vector.extract_strided_slice %394 {offsets = [0, 5, 0], sizes = [2, 1, 64], strides = [1, 1, 1]} : vector<2x8x64xf32> to vector<2x1x64xf32>
    %620 = vector.shape_cast %619 : vector<2x1x64xf32> to vector<2x64xf32>
    %621 = vector.shape_cast %620 : vector<2x64xf32> to vector<1x2x64xf32>
    %622 = vector.extract_strided_slice %395 {offsets = [0, 2, 0], sizes = [2, 1, 64], strides = [1, 1, 1]} : vector<2x8x64xf32> to vector<2x1x64xf32>
    %623 = vector.shape_cast %622 : vector<2x1x64xf32> to vector<2x64xf32>
    %624 = vector.shape_cast %623 : vector<2x64xf32> to vector<1x2x64xf32>
    %625 = tpu.concatenate %621, %624 in 0 : vector<1x2x64xf32>, vector<1x2x64xf32> -> vector<2x2x64xf32>
    "tpu.trace_start"() <{level = 10 : i32, message = "nbh,nhg->nbg"}> : () -> ()
    %cst_209 = arith.constant dense<0.000000e+00> : vector<2x2x64xf32>
    %626 = tpu.matmul %614, %396, %cst_209 {dimension_numbers = #tpu.dot_dimension_numbers<[2], [1], [1], [2], [0, 0, 0, 1, 1, 2], [0], [0]>} : vector<2x2x16xf32>, vector<2x16x64xf32>, vector<2x2x64xf32> -> vector<2x2x64xf32>
    "tpu.trace_stop"() : () -> ()
    %627 = arith.addf %625, %626 : vector<2x2x64xf32>
    %628 = vector.extract_strided_slice %627 {offsets = [0, 0, 0], sizes = [2, 2, 16], strides = [1, 1, 1]} : vector<2x2x64xf32> to vector<2x2x16xf32>
    %cst_210 = arith.constant 0.000000e+00 : f32
    %629 = vector.broadcast %cst_210 : f32 to vector<2x2x16xf32>
    %630 = arith.subf %629, %628 : vector<2x2x16xf32>
    %631 = math.exp %630 : vector<2x2x16xf32>
    %cst_211 = arith.constant 1.000000e+00 : f32
    %632 = vector.broadcast %cst_211 : f32 to vector<2x2x16xf32>
    %633 = arith.addf %632, %631 : vector<2x2x16xf32>
    %cst_212 = arith.constant 1.000000e+00 : f32
    %634 = vector.broadcast %cst_212 : f32 to vector<2x2x16xf32>
    %635 = arith.divf %634, %633 : vector<2x2x16xf32>
    %636 = vector.extract_strided_slice %627 {offsets = [0, 0, 16], sizes = [2, 2, 16], strides = [1, 1, 1]} : vector<2x2x64xf32> to vector<2x2x16xf32>
    %cst_213 = arith.constant 0.000000e+00 : f32
    %637 = vector.broadcast %cst_213 : f32 to vector<2x2x16xf32>
    %638 = arith.subf %637, %636 : vector<2x2x16xf32>
    %639 = math.exp %638 : vector<2x2x16xf32>
    %cst_214 = arith.constant 1.000000e+00 : f32
    %640 = vector.broadcast %cst_214 : f32 to vector<2x2x16xf32>
    %641 = arith.addf %640, %639 : vector<2x2x16xf32>
    %cst_215 = arith.constant 1.000000e+00 : f32
    %642 = vector.broadcast %cst_215 : f32 to vector<2x2x16xf32>
    %643 = arith.divf %642, %641 : vector<2x2x16xf32>
    %644 = vector.extract_strided_slice %627 {offsets = [0, 0, 32], sizes = [2, 2, 16], strides = [1, 1, 1]} : vector<2x2x64xf32> to vector<2x2x16xf32>
    %645 = math.tanh %644 : vector<2x2x16xf32>
    %646 = vector.extract_strided_slice %627 {offsets = [0, 0, 48], sizes = [2, 2, 16], strides = [1, 1, 1]} : vector<2x2x64xf32> to vector<2x2x16xf32>
    %cst_216 = arith.constant 0.000000e+00 : f32
    %647 = vector.broadcast %cst_216 : f32 to vector<2x2x16xf32>
    %648 = arith.subf %647, %646 : vector<2x2x16xf32>
    %649 = math.exp %648 : vector<2x2x16xf32>
    %cst_217 = arith.constant 1.000000e+00 : f32
    %650 = vector.broadcast %cst_217 : f32 to vector<2x2x16xf32>
    %651 = arith.addf %650, %649 : vector<2x2x16xf32>
    %cst_218 = arith.constant 1.000000e+00 : f32
    %652 = vector.broadcast %cst_218 : f32 to vector<2x2x16xf32>
    %653 = arith.divf %652, %651 : vector<2x2x16xf32>
    %654 = arith.mulf %643, %612 : vector<2x2x16xf32>
    %655 = arith.mulf %635, %645 : vector<2x2x16xf32>
    %656 = arith.addf %654, %655 : vector<2x2x16xf32>
    %657 = math.tanh %656 : vector<2x2x16xf32>
    %658 = arith.mulf %653, %657 : vector<2x2x16xf32>
    %659 = vector.extract_strided_slice %658 {offsets = [0, 0, 0], sizes = [1, 2, 16], strides = [1, 1, 1]} : vector<2x2x16xf32> to vector<1x2x16xf32>
    %660 = vector.shape_cast %659 : vector<1x2x16xf32> to vector<2x16xf32>
    %661 = vector.extract_strided_slice %658 {offsets = [1, 0, 0], sizes = [1, 2, 16], strides = [1, 1, 1]} : vector<2x2x16xf32> to vector<1x2x16xf32>
    %662 = vector.shape_cast %661 : vector<1x2x16xf32> to vector<2x16xf32>
    %663 = vector.extract_strided_slice %394 {offsets = [0, 6, 0], sizes = [2, 1, 64], strides = [1, 1, 1]} : vector<2x8x64xf32> to vector<2x1x64xf32>
    %664 = vector.shape_cast %663 : vector<2x1x64xf32> to vector<2x64xf32>
    %665 = vector.shape_cast %664 : vector<2x64xf32> to vector<1x2x64xf32>
    %666 = vector.extract_strided_slice %395 {offsets = [0, 1, 0], sizes = [2, 1, 64], strides = [1, 1, 1]} : vector<2x8x64xf32> to vector<2x1x64xf32>
    %667 = vector.shape_cast %666 : vector<2x1x64xf32> to vector<2x64xf32>
    %668 = vector.shape_cast %667 : vector<2x64xf32> to vector<1x2x64xf32>
    %669 = tpu.concatenate %665, %668 in 0 : vector<1x2x64xf32>, vector<1x2x64xf32> -> vector<2x2x64xf32>
    "tpu.trace_start"() <{level = 10 : i32, message = "nbh,nhg->nbg"}> : () -> ()
    %cst_219 = arith.constant dense<0.000000e+00> : vector<2x2x64xf32>
    %670 = tpu.matmul %658, %396, %cst_219 {dimension_numbers = #tpu.dot_dimension_numbers<[2], [1], [1], [2], [0, 0, 0, 1, 1, 2], [0], [0]>} : vector<2x2x16xf32>, vector<2x16x64xf32>, vector<2x2x64xf32> -> vector<2x2x64xf32>
    "tpu.trace_stop"() : () -> ()
    %671 = arith.addf %669, %670 : vector<2x2x64xf32>
    %672 = vector.extract_strided_slice %671 {offsets = [0, 0, 0], sizes = [2, 2, 16], strides = [1, 1, 1]} : vector<2x2x64xf32> to vector<2x2x16xf32>
    %cst_220 = arith.constant 0.000000e+00 : f32
    %673 = vector.broadcast %cst_220 : f32 to vector<2x2x16xf32>
    %674 = arith.subf %673, %672 : vector<2x2x16xf32>
    %675 = math.exp %674 : vector<2x2x16xf32>
    %cst_221 = arith.constant 1.000000e+00 : f32
    %676 = vector.broadcast %cst_221 : f32 to vector<2x2x16xf32>
    %677 = arith.addf %676, %675 : vector<2x2x16xf32>
    %cst_222 = arith.constant 1.000000e+00 : f32
    %678 = vector.broadcast %cst_222 : f32 to vector<2x2x16xf32>
    %679 = arith.divf %678, %677 : vector<2x2x16xf32>
    %680 = vector.extract_strided_slice %671 {offsets = [0, 0, 16], sizes = [2, 2, 16], strides = [1, 1, 1]} : vector<2x2x64xf32> to vector<2x2x16xf32>
    %cst_223 = arith.constant 0.000000e+00 : f32
    %681 = vector.broadcast %cst_223 : f32 to vector<2x2x16xf32>
    %682 = arith.subf %681, %680 : vector<2x2x16xf32>
    %683 = math.exp %682 : vector<2x2x16xf32>
    %cst_224 = arith.constant 1.000000e+00 : f32
    %684 = vector.broadcast %cst_224 : f32 to vector<2x2x16xf32>
    %685 = arith.addf %684, %683 : vector<2x2x16xf32>
    %cst_225 = arith.constant 1.000000e+00 : f32
    %686 = vector.broadcast %cst_225 : f32 to vector<2x2x16xf32>
    %687 = arith.divf %686, %685 : vector<2x2x16xf32>
    %688 = vector.extract_strided_slice %671 {offsets = [0, 0, 32], sizes = [2, 2, 16], strides = [1, 1, 1]} : vector<2x2x64xf32> to vector<2x2x16xf32>
    %689 = math.tanh %688 : vector<2x2x16xf32>
    %690 = vector.extract_strided_slice %671 {offsets = [0, 0, 48], sizes = [2, 2, 16], strides = [1, 1, 1]} : vector<2x2x64xf32> to vector<2x2x16xf32>
    %cst_226 = arith.constant 0.000000e+00 : f32
    %691 = vector.broadcast %cst_226 : f32 to vector<2x2x16xf32>
    %692 = arith.subf %691, %690 : vector<2x2x16xf32>
    %693 = math.exp %692 : vector<2x2x16xf32>
    %cst_227 = arith.constant 1.000000e+00 : f32
    %694 = vector.broadcast %cst_227 : f32 to vector<2x2x16xf32>
    %695 = arith.addf %694, %693 : vector<2x2x16xf32>
    %cst_228 = arith.constant 1.000000e+00 : f32
    %696 = vector.broadcast %cst_228 : f32 to vector<2x2x16xf32>
    %697 = arith.divf %696, %695 : vector<2x2x16xf32>
    %698 = arith.mulf %687, %656 : vector<2x2x16xf32>
    %699 = arith.mulf %679, %689 : vector<2x2x16xf32>
    %700 = arith.addf %698, %699 : vector<2x2x16xf32>
    %701 = math.tanh %700 : vector<2x2x16xf32>
    %702 = arith.mulf %697, %701 : vector<2x2x16xf32>
    %703 = vector.extract_strided_slice %702 {offsets = [0, 0, 0], sizes = [1, 2, 16], strides = [1, 1, 1]} : vector<2x2x16xf32> to vector<1x2x16xf32>
    %704 = vector.shape_cast %703 : vector<1x2x16xf32> to vector<2x16xf32>
    %705 = vector.extract_strided_slice %702 {offsets = [1, 0, 0], sizes = [1, 2, 16], strides = [1, 1, 1]} : vector<2x2x16xf32> to vector<1x2x16xf32>
    %706 = vector.shape_cast %705 : vector<1x2x16xf32> to vector<2x16xf32>
    %707 = vector.extract_strided_slice %394 {offsets = [0, 7, 0], sizes = [2, 1, 64], strides = [1, 1, 1]} : vector<2x8x64xf32> to vector<2x1x64xf32>
    %708 = vector.shape_cast %707 : vector<2x1x64xf32> to vector<2x64xf32>
    %709 = vector.shape_cast %708 : vector<2x64xf32> to vector<1x2x64xf32>
    %710 = vector.extract_strided_slice %395 {offsets = [0, 0, 0], sizes = [2, 1, 64], strides = [1, 1, 1]} : vector<2x8x64xf32> to vector<2x1x64xf32>
    %711 = vector.shape_cast %710 : vector<2x1x64xf32> to vector<2x64xf32>
    %712 = vector.shape_cast %711 : vector<2x64xf32> to vector<1x2x64xf32>
    %713 = tpu.concatenate %709, %712 in 0 : vector<1x2x64xf32>, vector<1x2x64xf32> -> vector<2x2x64xf32>
    "tpu.trace_start"() <{level = 10 : i32, message = "nbh,nhg->nbg"}> : () -> ()
    %cst_229 = arith.constant dense<0.000000e+00> : vector<2x2x64xf32>
    %714 = tpu.matmul %702, %396, %cst_229 {dimension_numbers = #tpu.dot_dimension_numbers<[2], [1], [1], [2], [0, 0, 0, 1, 1, 2], [0], [0]>} : vector<2x2x16xf32>, vector<2x16x64xf32>, vector<2x2x64xf32> -> vector<2x2x64xf32>
    "tpu.trace_stop"() : () -> ()
    %715 = arith.addf %713, %714 : vector<2x2x64xf32>
    %716 = vector.extract_strided_slice %715 {offsets = [0, 0, 0], sizes = [2, 2, 16], strides = [1, 1, 1]} : vector<2x2x64xf32> to vector<2x2x16xf32>
    %cst_230 = arith.constant 0.000000e+00 : f32
    %717 = vector.broadcast %cst_230 : f32 to vector<2x2x16xf32>
    %718 = arith.subf %717, %716 : vector<2x2x16xf32>
    %719 = math.exp %718 : vector<2x2x16xf32>
    %cst_231 = arith.constant 1.000000e+00 : f32
    %720 = vector.broadcast %cst_231 : f32 to vector<2x2x16xf32>
    %721 = arith.addf %720, %719 : vector<2x2x16xf32>
    %cst_232 = arith.constant 1.000000e+00 : f32
    %722 = vector.broadcast %cst_232 : f32 to vector<2x2x16xf32>
    %723 = arith.divf %722, %721 : vector<2x2x16xf32>
    %724 = vector.extract_strided_slice %715 {offsets = [0, 0, 16], sizes = [2, 2, 16], strides = [1, 1, 1]} : vector<2x2x64xf32> to vector<2x2x16xf32>
    %cst_233 = arith.constant 0.000000e+00 : f32
    %725 = vector.broadcast %cst_233 : f32 to vector<2x2x16xf32>
    %726 = arith.subf %725, %724 : vector<2x2x16xf32>
    %727 = math.exp %726 : vector<2x2x16xf32>
    %cst_234 = arith.constant 1.000000e+00 : f32
    %728 = vector.broadcast %cst_234 : f32 to vector<2x2x16xf32>
    %729 = arith.addf %728, %727 : vector<2x2x16xf32>
    %cst_235 = arith.constant 1.000000e+00 : f32
    %730 = vector.broadcast %cst_235 : f32 to vector<2x2x16xf32>
    %731 = arith.divf %730, %729 : vector<2x2x16xf32>
    %732 = vector.extract_strided_slice %715 {offsets = [0, 0, 32], sizes = [2, 2, 16], strides = [1, 1, 1]} : vector<2x2x64xf32> to vector<2x2x16xf32>
    %733 = math.tanh %732 : vector<2x2x16xf32>
    %734 = vector.extract_strided_slice %715 {offsets = [0, 0, 48], sizes = [2, 2, 16], strides = [1, 1, 1]} : vector<2x2x64xf32> to vector<2x2x16xf32>
    %cst_236 = arith.constant 0.000000e+00 : f32
    %735 = vector.broadcast %cst_236 : f32 to vector<2x2x16xf32>
    %736 = arith.subf %735, %734 : vector<2x2x16xf32>
    %737 = math.exp %736 : vector<2x2x16xf32>
    %cst_237 = arith.constant 1.000000e+00 : f32
    %738 = vector.broadcast %cst_237 : f32 to vector<2x2x16xf32>
    %739 = arith.addf %738, %737 : vector<2x2x16xf32>
    %cst_238 = arith.constant 1.000000e+00 : f32
    %740 = vector.broadcast %cst_238 : f32 to vector<2x2x16xf32>
    %741 = arith.divf %740, %739 : vector<2x2x16xf32>
    %742 = arith.mulf %731, %700 : vector<2x2x16xf32>
    %743 = arith.mulf %723, %733 : vector<2x2x16xf32>
    %744 = arith.addf %742, %743 : vector<2x2x16xf32>
    %745 = math.tanh %744 : vector<2x2x16xf32>
    %746 = arith.mulf %741, %745 : vector<2x2x16xf32>
    %747 = vector.extract_strided_slice %746 {offsets = [0, 0, 0], sizes = [1, 2, 16], strides = [1, 1, 1]} : vector<2x2x16xf32> to vector<1x2x16xf32>
    %748 = vector.shape_cast %747 : vector<1x2x16xf32> to vector<2x16xf32>
    %749 = vector.extract_strided_slice %746 {offsets = [1, 0, 0], sizes = [1, 2, 16], strides = [1, 1, 1]} : vector<2x2x16xf32> to vector<1x2x16xf32>
    %750 = vector.shape_cast %749 : vector<1x2x16xf32> to vector<2x16xf32>
    %751 = tpu.concatenate %440, %484, %528, %572, %616, %660, %704, %748 in 0 : vector<2x16xf32>, vector<2x16xf32>, vector<2x16xf32>, vector<2x16xf32>, vector<2x16xf32>, vector<2x16xf32>, vector<2x16xf32>, vector<2x16xf32> -> vector<16x16xf32>
    %752 = tpu.concatenate %750, %706, %662, %618, %574, %530, %486, %442 in 0 : vector<2x16xf32>, vector<2x16xf32>, vector<2x16xf32>, vector<2x16xf32>, vector<2x16xf32>, vector<2x16xf32>, vector<2x16xf32>, vector<2x16xf32> -> vector<16x16xf32>
    %753 = tpu.concatenate %751, %752 in 1 : vector<16x16xf32>, vector<16x16xf32> -> vector<16x32xf32>
    %c0_239 = arith.constant 0 : index
    %c0_240 = arith.constant 0 : index
    %754 = vector.load %arg20[%c0_239, %c0_240] : memref<32x8xf32, #tpu.memory_space<vmem>>, vector<32x8xf32>
    %cst_241 = arith.constant dense<0.000000e+00> : vector<16x8xf32>
    %755 = tpu.matmul %753, %754, %cst_241 {dimension_numbers = #tpu.dot_dimension_numbers<[1], [0], [0], [1], [0, 0, 1, 1], [], []>} : vector<16x32xf32>, vector<32x8xf32>, vector<16x8xf32> -> vector<16x8xf32>
    %c0_242 = arith.constant 0 : index
    %c0_243 = arith.constant 0 : index
    %756 = vector.load %arg21[%c0_242, %c0_243] : memref<1x8xf32, #tpu.memory_space<vmem>>, vector<1x8xf32>
    %757 = vector.broadcast %756 : vector<1x8xf32> to vector<16x8xf32>
    %758 = arith.addf %755, %757 : vector<16x8xf32>
    %c0_244 = arith.constant 0 : index
    %c0_245 = arith.constant 0 : index
    %759 = vector.load %arg22[%c0_244, %c0_245] : memref<16x8xf32, #tpu.memory_space<vmem>>, vector<16x8xf32>
    tpu.vector_store %arg22[%c0_244, %c0_245], %758 {strides = array<i32>} : memref<16x8xf32, #tpu.memory_space<vmem>>, vector<16x8xf32>,
    return
  }
  func.func @transform_0(%arg0: i32) -> (i32, i32) {
    %c0_i32 = arith.constant 0 : i32
    %c0_i32_0 = arith.constant 0 : i32
    %c0_i32_1 = arith.constant 0 : i32
    return %c0_i32, %c0_i32_0 : i32, i32
  }
  func.func @transform_1(%arg0: i32) -> (i32, i32, i32) {
    %c0_i32 = arith.constant 0 : i32
    %c0_i32_0 = arith.constant 0 : i32
    %c0_i32_1 = arith.constant 0 : i32
    %c0_i32_2 = arith.constant 0 : i32
    return %c0_i32, %c0_i32_0, %c0_i32_1 : i32, i32, i32
  }
  func.func @transform_2(%arg0: i32) -> (i32, i32) {
    %c0_i32 = arith.constant 0 : i32
    %c0_i32_0 = arith.constant 0 : i32
    %c0_i32_1 = arith.constant 0 : i32
    return %c0_i32, %c0_i32_0 : i32, i32
  }
  func.func @transform_3(%arg0: i32) -> (i32, i32) {
    %c0_i32 = arith.constant 0 : i32
    %c0_i32_0 = arith.constant 0 : i32
    %c0_i32_1 = arith.constant 0 : i32
    return %c0_i32, %c0_i32_0 : i32, i32
  }
  func.func @transform_4(%arg0: i32) -> (i32, i32, i32) {
    %c0_i32 = arith.constant 0 : i32
    %c0_i32_0 = arith.constant 0 : i32
    %c0_i32_1 = arith.constant 0 : i32
    %c0_i32_2 = arith.constant 0 : i32
    return %c0_i32, %c0_i32_0, %c0_i32_1 : i32, i32, i32
  }
  func.func @transform_5(%arg0: i32) -> (i32, i32, i32) {
    %c0_i32 = arith.constant 0 : i32
    %c0_i32_0 = arith.constant 0 : i32
    %c0_i32_1 = arith.constant 0 : i32
    %c0_i32_2 = arith.constant 0 : i32
    return %c0_i32, %c0_i32_0, %c0_i32_1 : i32, i32, i32
  }
  func.func @transform_6(%arg0: i32) -> (i32, i32, i32) {
    %c0_i32 = arith.constant 0 : i32
    %c0_i32_0 = arith.constant 0 : i32
    %c0_i32_1 = arith.constant 0 : i32
    %c0_i32_2 = arith.constant 0 : i32
    return %c0_i32, %c0_i32_0, %c0_i32_1 : i32, i32, i32
  }
  func.func @transform_7(%arg0: i32) -> (i32, i32, i32) {
    %c0_i32 = arith.constant 0 : i32
    %c0_i32_0 = arith.constant 0 : i32
    %c0_i32_1 = arith.constant 0 : i32
    %c0_i32_2 = arith.constant 0 : i32
    return %c0_i32, %c0_i32_0, %c0_i32_1 : i32, i32, i32
  }
  func.func @transform_8(%arg0: i32) -> (i32, i32, i32) {
    %c0_i32 = arith.constant 0 : i32
    %c0_i32_0 = arith.constant 0 : i32
    %c0_i32_1 = arith.constant 0 : i32
    %c0_i32_2 = arith.constant 0 : i32
    return %c0_i32, %c0_i32_0, %c0_i32_1 : i32, i32, i32
  }
  func.func @transform_9(%arg0: i32) -> (i32, i32, i32) {
    %c0_i32 = arith.constant 0 : i32
    %c0_i32_0 = arith.constant 0 : i32
    %c0_i32_1 = arith.constant 0 : i32
    %c0_i32_2 = arith.constant 0 : i32
    return %c0_i32, %c0_i32_0, %c0_i32_1 : i32, i32, i32
  }
  func.func @transform_10(%arg0: i32) -> (i32, i32, i32) {
    %c0_i32 = arith.constant 0 : i32
    %c0_i32_0 = arith.constant 0 : i32
    %c0_i32_1 = arith.constant 0 : i32
    %c0_i32_2 = arith.constant 0 : i32
    return %c0_i32, %c0_i32_0, %c0_i32_1 : i32, i32, i32
  }
  func.func @transform_11(%arg0: i32) -> (i32, i32, i32) {
    %c0_i32 = arith.constant 0 : i32
    %c0_i32_0 = arith.constant 0 : i32
    %c0_i32_1 = arith.constant 0 : i32
    %c0_i32_2 = arith.constant 0 : i32
    return %c0_i32, %c0_i32_0, %c0_i32_1 : i32, i32, i32
  }
  func.func @transform_12(%arg0: i32) -> (i32, i32, i32) {
    %c0_i32 = arith.constant 0 : i32
    %c0_i32_0 = arith.constant 0 : i32
    %c0_i32_1 = arith.constant 0 : i32
    %c0_i32_2 = arith.constant 0 : i32
    return %c0_i32, %c0_i32_0, %c0_i32_1 : i32, i32, i32
  }
  func.func @transform_13(%arg0: i32) -> (i32, i32, i32) {
    %c0_i32 = arith.constant 0 : i32
    %c0_i32_0 = arith.constant 0 : i32
    %c0_i32_1 = arith.constant 0 : i32
    %c0_i32_2 = arith.constant 0 : i32
    return %c0_i32, %c0_i32_0, %c0_i32_1 : i32, i32, i32
  }
  func.func @transform_14(%arg0: i32) -> (i32, i32, i32) {
    %c0_i32 = arith.constant 0 : i32
    %c0_i32_0 = arith.constant 0 : i32
    %c0_i32_1 = arith.constant 0 : i32
    %c0_i32_2 = arith.constant 0 : i32
    return %c0_i32, %c0_i32_0, %c0_i32_1 : i32, i32, i32
  }
  func.func @transform_15(%arg0: i32) -> (i32, i32, i32) {
    %c0_i32 = arith.constant 0 : i32
    %c0_i32_0 = arith.constant 0 : i32
    %c0_i32_1 = arith.constant 0 : i32
    %c0_i32_2 = arith.constant 0 : i32
    return %c0_i32, %c0_i32_0, %c0_i32_1 : i32, i32, i32
  }
  func.func @transform_16(%arg0: i32) -> (i32, i32) {
    %c0_i32 = arith.constant 0 : i32
    %c0_i32_0 = arith.constant 0 : i32
    %c0_i32_1 = arith.constant 0 : i32
    return %c0_i32, %c0_i32_0 : i32, i32
  }
  func.func @transform_17(%arg0: i32) -> (i32, i32) {
    %c0_i32 = arith.constant 0 : i32
    %c0_i32_0 = arith.constant 0 : i32
    %c0_i32_1 = arith.constant 0 : i32
    return %c0_i32, %c0_i32_0 : i32, i32
  }
  func.func @transform_18(%arg0: i32) -> (i32, i32, i32) {
    %c0_i32 = arith.constant 0 : i32
    %c0_i32_0 = arith.constant 0 : i32
    %c0_i32_1 = arith.constant 0 : i32
    %c0_i32_2 = arith.constant 0 : i32
    return %c0_i32, %c0_i32_0, %c0_i32_1 : i32, i32, i32
  }
  func.func @transform_19(%arg0: i32) -> (i32, i32) {
    %c0_i32 = arith.constant 0 : i32
    %c0_i32_0 = arith.constant 0 : i32
    %c0_i32_1 = arith.constant 0 : i32
    return %c0_i32, %c0_i32_0 : i32, i32
  }
  func.func @transform_20(%arg0: i32) -> (i32, i32) {
    %c0_i32 = arith.constant 0 : i32
    %c0_i32_0 = arith.constant 0 : i32
    %c0_i32_1 = arith.constant 0 : i32
    return %c0_i32, %c0_i32_0 : i32, i32
  }
  func.func @transform_21(%arg0: i32) -> (i32, i32) {
    %c0_i32 = arith.constant 0 : i32
    %c0_i32_0 = arith.constant 0 : i32
    %c0_i32_1 = arith.constant 0 : i32
    return %c0_i32, %c0_i32_0 : i32, i32
  }
}

</mosaic_0001>

<llo_original>
// kernel: custom-call.4
$region0: #{custom-call.4}
  %s0 = inlined_call_operand.vmem [shape: s32[7,2,5], index: 0, kind: output, shape index: {}]

// kernel: custom-call.5
$region0: #{custom-call.5}
  %s0 = inlined_call_operand.vmem [shape: s32[7,2], index: 0, kind: output, shape index: {}]

// kernel: kobert_bilstm_crf_forward.1
$region0: #{kobert_bilstm_crf_forward.1}
  #allocation0 [shape = 'u32[]', space=smem, size = 0x4, offset = 0x4, fixed_abs, tag = 'smem constant byte address 0x4 - core index']
  #allocation1 [shape = 'u32[72,128]{1,0:T(1,128)}', space=vmem, size = 0x9000, scoped, tag = 'internal scratch']
  %s0 = inlined_call_operand.vmem [shape: f32[16,32], index: 0, kind: input, shape index: {}]
  %s1 = inlined_call_operand.vmem [shape: f32[4,1,8], index: 1, kind: input, shape index: {}]
  %s2 = inlined_call_operand.vmem [shape: f32[1,32], index: 2, kind: input, shape index: {}]
  %s3 = inlined_call_operand.vmem [shape: f32[1,32], index: 3, kind: input, shape index: {}]
  %s4 = inlined_call_operand.vmem [shape: f32[2,32,96], index: 4, kind: input, shape index: {}]
  %s5 = inlined_call_operand.vmem [shape: f32[2,1,96], index: 5, kind: input, shape index: {}]
  %s6 = inlined_call_operand.hbm [shape: f32[2,32,32], index: 6, kind: input, shape index: {}]
  %s7 = inlined_call_operand.vmem [shape: f32[2,1,32], index: 7, kind: input, shape index: {}, may-alias: {7,9,13,15}]
  %s8 = inlined_call_operand.vmem [shape: f32[2,1,32], index: 8, kind: input, shape index: {}, may-alias: {8,14}]
  %s9 = inlined_call_operand.vmem [shape: f32[2,1,32], index: 9, kind: input, shape index: {}, may-alias: {7,9,13,15}]
  %s10 = inlined_call_operand.hbm [shape: f32[2,32,64], index: 10, kind: input, shape index: {}]
  %s11 = inlined_call_operand.vmem [shape: f32[2,1,64], index: 11, kind: input, shape index: {}]
  %s12 = inlined_call_operand.vmem [shape: f32[2,64,32], index: 12, kind: input, shape index: {}]
  %s13 = inlined_call_operand.vmem [shape: f32[2,1,32], index: 13, kind: input, shape index: {}, may-alias: {7,9,13,15}]
  %s14 = inlined_call_operand.vmem [shape: f32[2,1,32], index: 14, kind: input, shape index: {}, may-alias: {8,14}]
  %s15 = inlined_call_operand.vmem [shape: f32[2,1,32], index: 15, kind: input, shape index: {}, may-alias: {7,9,13,15}]
  %s16 = inlined_call_operand.vmem [shape: f32[32,128], index: 16, kind: input, shape index: {}]
  %s17 = inlined_call_operand.vmem [shape: f32[1,128], index: 17, kind: input, shape index: {}]
  %s18 = inlined_call_operand.hbm [shape: f32[2,16,64], index: 18, kind: input, shape index: {}]
  %s19 = inlined_call_operand.hbm [shape: f32[32,8], index: 19, kind: input, shape index: {}]
  %s20 = inlined_call_operand.vmem [shape: f32[1,8], index: 20, kind: input, shape index: {}]
  %s21 = inlined_call_operand.vmem [shape: f32[16,8], index: 21, kind: output, shape index: {}]
  %s22 = sld [smem:[#allocation0]]
  $region110: #{kobert_bilstm_crf_forward.1} parent=0
    _
  %s24 = ssub.s32 1, %s22
  %s25 = scalar_select 0, %s24, %s22
  $region1: #{kobert_bilstm_crf_forward.1} parent=0
    #allocation2 [shape = 'u8[32768]{0}', space=vmem, size = 0x8000, scoped, tag = 'input window, operand 6, single buffered']
    #allocation3 [shape = 's32[1]{0}', space=sflag, size = 0x4, scoped, tag = 'scoped memory for kobert_bilstm_crf_forward.1']
    #allocation4 [shape = 'u8[32768]{0}', space=vmem, size = 0x8000, scoped, tag = 'input window, operand 10, single buffered']
    #allocation5 [shape = 's32[1]{0}', space=sflag, size = 0x4, scoped, tag = 'scoped memory for kobert_bilstm_crf_forward.1']
    #allocation6 [shape = 'u8[16384]{0}', space=vmem, size = 0x4000, scoped, tag = 'input window, operand 18, single buffered']
    #allocation7 [shape = 'u8[16384]{0}', space=vmem, size = 0x4000, scoped, tag = 'input window, operand 19, single buffered']
    #allocation8 [shape = 's32[1]{0}', space=sflag, size = 0x4, scoped, tag = 'scoped memory for kobert_bilstm_crf_forward.1']
    %26 = vsyncpa [#allocation3], 0
    %27 = vsyncpa [#allocation5], 0
    %28 = vsyncpa [#allocation8], 0
    // Predicated region
    $region2: #{kobert_bilstm_crf_forward.1} parent=1 // pred_check
      _
    $region3: #{kobert_bilstm_crf_forward.1} parent=1 // pred_check_branch
      %30 = sbr.rel (0) target = $region5
    $region4: #{kobert_bilstm_crf_forward.1} parent=1 // pred_region
      _
    $region5: #{kobert_bilstm_crf_forward.1} parent=1 // pred_fallthru
      _
    // Predicated region
    $region6: #{kobert_bilstm_crf_forward.1} parent=1 // pred_check
      _
    $region7: #{kobert_bilstm_crf_forward.1} parent=1 // pred_check_branch
      %32 = sbr.rel (0) target = $region9
    $region8: #{kobert_bilstm_crf_forward.1} parent=1 // pred_region
      _
    $region9: #{kobert_bilstm_crf_forward.1} parent=1 // pred_fallthru
      _
    // Predicated region
    $region10: #{kobert_bilstm_crf_forward.1} parent=1 // pred_check
      _
    $region11: #{kobert_bilstm_crf_forward.1} parent=1 // pred_check_branch
      %34 = sbr.rel (0) target = $region13
    $region12: #{kobert_bilstm_crf_forward.1} parent=1 // pred_region
      _
    $region13: #{kobert_bilstm_crf_forward.1} parent=1 // pred_fallthru
      _
    // Predicated region
    $region14: #{kobert_bilstm_crf_forward.1} parent=1 // pred_check
      _
    $region15: #{kobert_bilstm_crf_forward.1} parent=1 // pred_check_branch
      %36 = sbr.rel (0) target = $region17
    $region16: #{kobert_bilstm_crf_forward.1} parent=1 // pred_region
      _
    $region17: #{kobert_bilstm_crf_forward.1} parent=1 // pred_fallthru
      _
    // Predicated region
    $region18: #{kobert_bilstm_crf_forward.1} parent=1 // pred_check
      _
    $region19: #{kobert_bilstm_crf_forward.1} parent=1 // pred_check_branch
      %38 = sbr.rel (0) target = $region21
    $region20: #{kobert_bilstm_crf_forward.1} parent=1 // pred_region
      _
    $region21: #{kobert_bilstm_crf_forward.1} parent=1 // pred_fallthru
      _
    // Predicated region
    $region22: #{kobert_bilstm_crf_forward.1} parent=1 // pred_check
      _
    $region23: #{kobert_bilstm_crf_forward.1} parent=1 // pred_check_branch
      %40 = sbr.rel (0) target = $region25
    $region24: #{kobert_bilstm_crf_forward.1} parent=1 // pred_region
      _
    $region25: #{kobert_bilstm_crf_forward.1} parent=1 // pred_fallthru
      _
    // Predicated region
    $region26: #{kobert_bilstm_crf_forward.1} parent=1 // pred_check
      _
    $region27: #{kobert_bilstm_crf_forward.1} parent=1 // pred_check_branch
      %42 = sbr.rel (0) target = $region29
    $region28: #{kobert_bilstm_crf_forward.1} parent=1 // pred_region
      %44 = vsyncadd [#allocation3], 0
      %s45 = sshll.u32 %s6, 4
      %s46 = int_to_ptr.hbm [resolvable:$true] %s45
      %s47 = sshll.u32 [#allocation2], 4
      %s48 = int_to_ptr.vmem [resolvable:$true] %s47
      %53 = dma.hbm_to_vmem [thread:$0]  %s46, 1024, %s48, [#allocation3], 128, 128, 8
    $region29: #{kobert_bilstm_crf_forward.1} parent=1 // pred_fallthru
      _
    // Predicated region
    $region30: #{kobert_bilstm_crf_forward.1} parent=1 // pred_check
      _
    $region31: #{kobert_bilstm_crf_forward.1} parent=1 // pred_check_branch
      %55 = sbr.rel (0) target = $region33
    $region32: #{kobert_bilstm_crf_forward.1} parent=1 // pred_region
      _
    $region33: #{kobert_bilstm_crf_forward.1} parent=1 // pred_fallthru
      _
    // Predicated region
    $region34: #{kobert_bilstm_crf_forward.1} parent=1 // pred_check
      _
    $region35: #{kobert_bilstm_crf_forward.1} parent=1 // pred_check_branch
      %57 = sbr.rel (0) target = $region37
    $region36: #{kobert_bilstm_crf_forward.1} parent=1 // pred_region
      _
    $region37: #{kobert_bilstm_crf_forward.1} parent=1 // pred_fallthru
      _
    // Predicated region
    $region38: #{kobert_bilstm_crf_forward.1} parent=1 // pred_check
      _
    $region39: #{kobert_bilstm_crf_forward.1} parent=1 // pred_check_branch
      %59 = sbr.rel (0) target = $region41
    $region40: #{kobert_bilstm_crf_forward.1} parent=1 // pred_region
      _
    $region41: #{kobert_bilstm_crf_forward.1} parent=1 // pred_fallthru
      _
    // Predicated region
    $region42: #{kobert_bilstm_crf_forward.1} parent=1 // pred_check
      _
    $region43: #{kobert_bilstm_crf_forward.1} parent=1 // pred_check_branch
      %61 = sbr.rel (0) target = $region45
    $region44: #{kobert_bilstm_crf_forward.1} parent=1 // pred_region
      %63 = vsyncadd [#allocation5], 0
      %s64 = sshll.u32 %s10, 4
      %s65 = int_to_ptr.hbm [resolvable:$true] %s64
      %s66 = sshll.u32 [#allocation4], 4
      %s67 = int_to_ptr.vmem [resolvable:$true] %s66
      %72 = dma.hbm_to_vmem [thread:$0]  %s65, 1024, %s67, [#allocation5], 128, 128, 8
    $region45: #{kobert_bilstm_crf_forward.1} parent=1 // pred_fallthru
      _
    // Predicated region
    $region46: #{kobert_bilstm_crf_forward.1} parent=1 // pred_check
      _
    $region47: #{kobert_bilstm_crf_forward.1} parent=1 // pred_check_branch
      %74 = sbr.rel (0) target = $region49
    $region48: #{kobert_bilstm_crf_forward.1} parent=1 // pred_region
      _
    $region49: #{kobert_bilstm_crf_forward.1} parent=1 // pred_fallthru
      _
    // Predicated region
    $region50: #{kobert_bilstm_crf_forward.1} parent=1 // pred_check
      _
    $region51: #{kobert_bilstm_crf_forward.1} parent=1 // pred_check_branch
      %76 = sbr.rel (0) target = $region53
    $region52: #{kobert_bilstm_crf_forward.1} parent=1 // pred_region
      _
    $region53: #{kobert_bilstm_crf_forward.1} parent=1 // pred_fallthru
      _
    // Predicated region
    $region54: #{kobert_bilstm_crf_forward.1} parent=1 // pred_check
      _
    $region55: #{kobert_bilstm_crf_forward.1} parent=1 // pred_check_branch
      %78 = sbr.rel (0) target = $region57
    $region56: #{kobert_bilstm_crf_forward.1} parent=1 // pred_region
      _
    $region57: #{kobert_bilstm_crf_forward.1} parent=1 // pred_fallthru
      _
    // Predicated region
    $region58: #{kobert_bilstm_crf_forward.1} parent=1 // pred_check
      _
    $region59: #{kobert_bilstm_crf_forward.1} parent=1 // pred_check_branch
      %80 = sbr.rel (0) target = $region61
    $region60: #{kobert_bilstm_crf_forward.1} parent=1 // pred_region
      _
    $region61: #{kobert_bilstm_crf_forward.1} parent=1 // pred_fallthru
      _
    // Predicated region
    $region62: #{kobert_bilstm_crf_forward.1} parent=1 // pred_check
      _
    $region63: #{kobert_bilstm_crf_forward.1} parent=1 // pred_check_branch
      %82 = sbr.rel (0) target = $region65
    $region64: #{kobert_bilstm_crf_forward.1} parent=1 // pred_region
      _
    $region65: #{kobert_bilstm_crf_forward.1} parent=1 // pred_fallthru
      _
    // Predicated region
    $region66: #{kobert_bilstm_crf_forward.1} parent=1 // pred_check
      _
    $region67: #{kobert_bilstm_crf_forward.1} parent=1 // pred_check_branch
      %84 = sbr.rel (0) target = $region69
    $region68: #{kobert_bilstm_crf_forward.1} parent=1 // pred_region
      _
    $region69: #{kobert_bilstm_crf_forward.1} parent=1 // pred_fallthru
      _
    // Predicated region
    $region70: #{kobert_bilstm_crf_forward.1} parent=1 // pred_check
      _
    $region71: #{kobert_bilstm_crf_forward.1} parent=1 // pred_check_branch
      %86 = sbr.rel (0) target = $region73
    $region72: #{kobert_bilstm_crf_forward.1} parent=1 // pred_region
      _
    $region73: #{kobert_bilstm_crf_forward.1} parent=1 // pred_fallthru
      _
    // Predicated region
    $region74: #{kobert_bilstm_crf_forward.1} parent=1 // pred_check
      _
    $region75: #{kobert_bilstm_crf_forward.1} parent=1 // pred_check_branch
      %88 = sbr.rel (0) target = $region77
    $region76: #{kobert_bilstm_crf_forward.1} parent=1 // pred_region
      %90 = vsyncadd [#allocation5], 0
      %s91 = sshll.u32 %s18, 4
      %s92 = int_to_ptr.hbm [resolvable:$true] %s91
      %s93 = sshll.u32 [#allocation6], 4
      %s94 = int_to_ptr.vmem [resolvable:$true] %s93
      %99 = dma.hbm_to_vmem [thread:$0]  %s92, 512, %s94, [#allocation5], 128, 128, 8
    $region77: #{kobert_bilstm_crf_forward.1} parent=1 // pred_fallthru
      _
    // Predicated region
    $region78: #{kobert_bilstm_crf_forward.1} parent=1 // pred_check
      _
    $region79: #{kobert_bilstm_crf_forward.1} parent=1 // pred_check_branch
      %101 = sbr.rel (0) target = $region81
    $region80: #{kobert_bilstm_crf_forward.1} parent=1 // pred_region
      %103 = vsyncadd [#allocation8], 0
      %s104 = sshll.u32 %s19, 4
      %s105 = int_to_ptr.hbm [resolvable:$true] %s104
      %s106 = sshll.u32 [#allocation7], 4
      %s107 = int_to_ptr.vmem [resolvable:$true] %s106
      %112 = dma.hbm_to_vmem [thread:$0]  %s105, 512, %s107, [#allocation8], 128, 128, 8
    $region81: #{kobert_bilstm_crf_forward.1} parent=1 // pred_fallthru
      _
    // Predicated region
    $region82: #{kobert_bilstm_crf_forward.1} parent=1 // pred_check
      _
    $region83: #{kobert_bilstm_crf_forward.1} parent=1 // pred_check_branch
      %114 = sbr.rel (0) target = $region85
    $region84: #{kobert_bilstm_crf_forward.1} parent=1 // pred_region
      _
    $region85: #{kobert_bilstm_crf_forward.1} parent=1 // pred_fallthru
      _
    // Predicated region
    $region86: #{kobert_bilstm_crf_forward.1} parent=1 // pred_check
      _
    $region87: #{kobert_bilstm_crf_forward.1} parent=1 // pred_check_branch
      %116 = sbr.rel (0) target = $region89
    $region88: #{kobert_bilstm_crf_forward.1} parent=1 // pred_region
      %118 = dma.done [#allocation3], 1024
    $region89: #{kobert_bilstm_crf_forward.1} parent=1 // pred_fallthru
      _
    // Predicated region
    $region90: #{kobert_bilstm_crf_forward.1} parent=1 // pred_check
      _
    $region91: #{kobert_bilstm_crf_forward.1} parent=1 // pred_check_branch
      %120 = sbr.rel (0) target = $region93
    $region92: #{kobert_bilstm_crf_forward.1} parent=1 // pred_region
      %122 = dma.done [#allocation5], 1024
    $region93: #{kobert_bilstm_crf_forward.1} parent=1 // pred_fallthru
      _
    // Predicated region
    $region94: #{kobert_bilstm_crf_forward.1} parent=1 // pred_check
      _
    $region95: #{kobert_bilstm_crf_forward.1} parent=1 // pred_check_branch
      %124 = sbr.rel (0) target = $region97
    $region96: #{kobert_bilstm_crf_forward.1} parent=1 // pred_region
      %126 = dma.done [#allocation5], 512
    $region97: #{kobert_bilstm_crf_forward.1} parent=1 // pred_fallthru
      _
    // Predicated region
    $region98: #{kobert_bilstm_crf_forward.1} parent=1 // pred_check
      _
    $region99: #{kobert_bilstm_crf_forward.1} parent=1 // pred_check_branch
      %128 = sbr.rel (0) target = $region101
    $region100: #{kobert_bilstm_crf_forward.1} parent=1 // pred_region
      %130 = dma.done [#allocation8], 512
    $region101: #{kobert_bilstm_crf_forward.1} parent=1 // pred_fallthru
      _
    %v131 = vld [vmem:[%s0] sm:$0xff]
    %v132 = vld [vmem:[%s0 + $0x8] sm:$0xff]
    %v133 = vld [vmem:[%s2] sm:$0x1]
    %v134 = vld [vmem:[%s3] sm:$0x1]
    %vm135 = vcmask 261120
    %v136 = vsel %vm135, %v131, 0.0
    %137 = vadd.xlane.f32.xlu0 %v136
    %v138 = vpop.xlane.xlu0 %137
    %v139 = vsel %vm135, %v132, 0.0
    %140 = vadd.xlane.f32.xlu0 %v139
    %v141 = vpop.xlane.xlu0 %140
    %v142 = vrcp.pop 32.0
    %v143 = vmul.f32 32.0, %v142
    %v144 = vsub.f32 1.0, %v143
    %v145 = vmul.f32 %v142, %v144
    %v146 = vadd.f32 %v142, %v145
    %vm147 = vweird.f32 %v142
    %v148 = vsel %vm147, %v142, %v146
    %v149 = vmul.f32 %v138, %v148
    %v150 = vmul.f32 %v141, %v148
    %v151 = vsub.f32 %v131, %v149
    %v152 = vsub.f32 %v132, %v150
    %v153 = vmul.f32 %v151, %v151
    %v154 = vmul.f32 %v152, %v152
    %v155 = vsel %vm135, %v153, 0.0
    %156 = vadd.xlane.f32.xlu0 %v155
    %v157 = vpop.xlane.xlu0 %156
    %v158 = vsel %vm135, %v154, 0.0
    %159 = vadd.xlane.f32.xlu0 %v158
    %v160 = vpop.xlane.xlu0 %159
    %v161 = vmul.f32 %v157, %v148
    %v162 = vmul.f32 %v160, %v148
    %v163 = vadd.f32 %v161, 1e-12
    %v164 = vadd.f32 %v162, 1e-12
    %v165 = vrsqrt.pop %v163
    %v166 = vmul.f32 %v165, %v163
    %v167 = vmul.f32 %v166, %v165
    %v168 = vmul.f32 0.5, %v167
    %v169 = vsub.f32 1.5, %v168
    %v170 = vmul.f32 %v165, %v169
    %vm171 = vweird.f32 %v163
    %vm172 = vweird.f32 %v165
    %vm173 = vmor %vm171, %vm172
    %v174 = vsel %vm173, %v165, %v170
    %v175 = vrsqrt.pop %v164
    %v176 = vmul.f32 %v175, %v164
    %v177 = vmul.f32 %v176, %v175
    %v178 = vmul.f32 0.5, %v177
    %v179 = vsub.f32 1.5, %v178
    %v180 = vmul.f32 %v175, %v179
    %vm181 = vweird.f32 %v164
    %vm182 = vweird.f32 %v175
    %vm183 = vmor %vm181, %vm182
    %v184 = vsel %vm183, %v175, %v180
    %v185 = vmul.f32 %v151, %v174
    %v186 = vmul.f32 %v152, %v184
    %v188 = vperm.slane %v133, 0
    %v190 = vmul.f32 %v185, %v188
    %v191 = vmul.f32 %v186, %v188
    %v193 = vperm.slane %v134, 0
    %v195 = vadd.f32 %v190, %v193
    %v196 = vadd.f32 %v191, %v193
    %v197 = vld [vmem:[%s1] sm:$0x1]
    %v198 = vld [vmem:[%s1 + $0x1] sm:$0x1]
    %v199 = vld [vmem:[%s1 + $0x2] sm:$0x1]
    %v200 = vld [vmem:[%s1 + $0x3] sm:$0x1]
    %v201 = vld [vmem:[%s4] sm:$0xff]
    %v202 = vld [vmem:[%s4 + $0x8] sm:$0xff]
    %v203 = vld [vmem:[%s4 + $0x10] sm:$0xff]
    %v204 = vld [vmem:[%s4 + $0x18] sm:$0xff]
    %v205 = vld [vmem:[%s5] sm:$0x1]
    %v207 = vperm.slane %v205, 0
    %v210 = vsel %vm135, %v195, 0
    %v213 = vsel %vm135, %v196, 0
    %215 = vmatpush.msra.mxu0 0.0
    %216 = vmatpush.msra.mxu0 0.0
    %217 = vmatpush.msra.mxu0 0.0
    %218 = vmatpush.msra.mxu0 0.0
    %219 = vmatpush.msra.mxu0 0.0
    %220 = vmatpush.msra.mxu0 0.0
    %221 = vmatpush.msra.mxu0 0.0
    %222 = vmatpush.msra.mxu0 0.0
    %223 = vmatpush.msra.mxu0 0.0
    %224 = vmatpush.msra.mxu0 0.0
    %225 = vmatpush.msra.mxu0 0.0
    %226 = vmatpush.msra.mxu0 0.0
    %227 = vmatpush.msra.mxu0 %v204
    %228 = vmatpush.msra.mxu0 %v203
    %229 = vmatpush.msra.mxu0 %v202
    %230 = vmatpush.msra.mxu0 %v201
    %231 = vmatmul.f32.gmra.mxu0 %v210
    %v232 = vpop.f32.mrf.mxu0
    %v233 = vadd.f32 %v207, %v232
    %234 = vmatmul.f32.gmra.mxu0 %v213
    %v235 = vpop.f32.mrf.mxu0
    %v236 = vadd.f32 %v207, %v235
    %237 = vdwg.mxu0
    %239 = vrot.lane.b32.xlu0 %v233, 112
    %v240 = vpop.permute.xlu0 %239
    %242 = vrot.lane.b32.xlu0 %v236, 112
    %v243 = vpop.permute.xlu0 %242
    %v248 = vperm.slane %v197, 0
    %v249 = vperm.slane %v198, 0
    %v250 = vperm.slane %v199, 0
    %v251 = vperm.slane %v200, 0
    %256 = vrot.lane.b32.xlu0 %v233, 96
    %v257 = vpop.permute.xlu0 %256
    %vm258 = vcmask 130048
    %v259 = vsel %vm258, %v233, 0
    %v261 = vsel %vm258, %v257, 0
    %263 = vmatpush.xpose.msra.mxu0 0.0
    %264 = vmatpush.xpose.msra.mxu0 0.0
    %265 = vmatpush.xpose.msra.mxu0 0.0
    %266 = vmatpush.xpose.msra.mxu0 0.0
    %267 = vmatpush.xpose.msra.mxu0 0.0
    %268 = vmatpush.xpose.msra.mxu0 0.0
    %269 = vmatpush.xpose.msra.mxu0 0.0
    %270 = vmatpush.xpose.msra.mxu0 0.0
    %271 = vmatpush.xpose.msra.mxu0 0.0
    %272 = vmatpush.xpose.msra.mxu0 0.0
    %273 = vmatpush.xpose.msra.mxu0 0.0
    %274 = vmatpush.xpose.msra.mxu0 0.0
    %275 = vmatpush.xpose.msra.mxu0 0.0
    %276 = vmatpush.xpose.msra.mxu0 0.0
    %277 = vmatpush.xpose.msra.mxu0 0.0
    %278 = vmatpush.xpose.msra.mxu0 %v261
    %279 = vmatmul.f32.gmra.mxu0 %v259
    %v280 = vpop.f32.mrf.mxu0
    %v281 = vadd.f32 %v248, %v280
    %282 = vdwg.mxu0
    %283 = vrot.lane.b32.xlu0 %v240, 96
    %v284 = vpop.permute.xlu0 %283
    %v285 = vsel %vm258, %v240, 0
    %v287 = vsel %vm258, %v284, 0
    %289 = vmatpush.xpose.msra.mxu0 0.0
    %290 = vmatpush.xpose.msra.mxu0 0.0
    %291 = vmatpush.xpose.msra.mxu0 0.0
    %292 = vmatpush.xpose.msra.mxu0 0.0
    %293 = vmatpush.xpose.msra.mxu0 0.0
    %294 = vmatpush.xpose.msra.mxu0 0.0
    %295 = vmatpush.xpose.msra.mxu0 0.0
    %296 = vmatpush.xpose.msra.mxu0 0.0
    %297 = vmatpush.xpose.msra.mxu0 0.0
    %298 = vmatpush.xpose.msra.mxu0 0.0
    %299 = vmatpush.xpose.msra.mxu0 0.0
    %300 = vmatpush.xpose.msra.mxu0 0.0
    %301 = vmatpush.xpose.msra.mxu0 0.0
    %302 = vmatpush.xpose.msra.mxu0 0.0
    %303 = vmatpush.xpose.msra.mxu0 0.0
    %304 = vmatpush.xpose.msra.mxu0 %v287
    %305 = vmatmul.f32.gmra.mxu0 %v285
    %v306 = vpop.f32.mrf.mxu0
    %v307 = vadd.f32 %v249, %v306
    %308 = vdwg.mxu0
    %309 = vrot.lane.b32.xlu0 %v236, 96
    %v310 = vpop.permute.xlu0 %309
    %v311 = vsel %vm258, %v236, 0
    %v313 = vsel %vm258, %v310, 0
    %315 = vmatpush.xpose.msra.mxu0 0.0
    %316 = vmatpush.xpose.msra.mxu0 0.0
    %317 = vmatpush.xpose.msra.mxu0 0.0
    %318 = vmatpush.xpose.msra.mxu0 0.0
    %319 = vmatpush.xpose.msra.mxu0 0.0
    %320 = vmatpush.xpose.msra.mxu0 0.0
    %321 = vmatpush.xpose.msra.mxu0 0.0
    %322 = vmatpush.xpose.msra.mxu0 0.0
    %323 = vmatpush.xpose.msra.mxu0 0.0
    %324 = vmatpush.xpose.msra.mxu0 0.0
    %325 = vmatpush.xpose.msra.mxu0 0.0
    %326 = vmatpush.xpose.msra.mxu0 0.0
    %327 = vmatpush.xpose.msra.mxu0 0.0
    %328 = vmatpush.xpose.msra.mxu0 0.0
    %329 = vmatpush.xpose.msra.mxu0 0.0
    %330 = vmatpush.xpose.msra.mxu0 %v313
    %331 = vmatmul.f32.gmra.mxu0 %v311
    %v332 = vpop.f32.mrf.mxu0
    %v333 = vadd.f32 %v250, %v332
    %334 = vdwg.mxu0
    %335 = vrot.lane.b32.xlu0 %v243, 96
    %v336 = vpop.permute.xlu0 %335
    %v337 = vsel %vm258, %v243, 0
    %v339 = vsel %vm258, %v336, 0
    %341 = vmatpush.xpose.msra.mxu0 0.0
    %342 = vmatpush.xpose.msra.mxu0 0.0
    %343 = vmatpush.xpose.msra.mxu0 0.0
    %344 = vmatpush.xpose.msra.mxu0 0.0
    %345 = vmatpush.xpose.msra.mxu0 0.0
    %346 = vmatpush.xpose.msra.mxu0 0.0
    %347 = vmatpush.xpose.msra.mxu0 0.0
    %348 = vmatpush.xpose.msra.mxu0 0.0
    %349 = vmatpush.xpose.msra.mxu0 0.0
    %350 = vmatpush.xpose.msra.mxu0 0.0
    %351 = vmatpush.xpose.msra.mxu0 0.0
    %352 = vmatpush.xpose.msra.mxu0 0.0
    %353 = vmatpush.xpose.msra.mxu0 0.0
    %354 = vmatpush.xpose.msra.mxu0 0.0
    %355 = vmatpush.xpose.msra.mxu0 0.0
    %356 = vmatpush.xpose.msra.mxu0 %v339
    %357 = vmatmul.f32.gmra.mxu0 %v337
    %v358 = vpop.f32.mrf.mxu0
    %v359 = vadd.f32 %v251, %v358
    %360 = vdwg.mxu0
    %vm361 = vcmask 64512
    %v362 = vsel %vm361, %v281, -inf
    %363 = vmax.xlane.f32.xlu0 %v362
    %v364 = vpop.xlane.xlu0 %363
    %v365 = vsel %vm361, %v307, -inf
    %366 = vmax.xlane.f32.xlu0 %v365
    %v367 = vpop.xlane.xlu0 %366
    %v368 = vsel %vm361, %v333, -inf
    %369 = vmax.xlane.f32.xlu0 %v368
    %v370 = vpop.xlane.xlu0 %369
    %v371 = vsel %vm361, %v359, -inf
    %372 = vmax.xlane.f32.xlu0 %v371
    %v373 = vpop.xlane.xlu0 %372
    %v374 = vsub.f32 %v281, %v364
    %v375 = vsub.f32 %v307, %v367
    %v376 = vsub.f32 %v333, %v370
    %v377 = vsub.f32 %v359, %v373
    %v378 = vmul.f32 %v374, 1.442695
    %v379 = vpow.pop %v378
    %v380 = vmul.f32 %v375, 1.442695
    %v381 = vpow.pop %v380
    %v382 = vmul.f32 %v376, 1.442695
    %v383 = vpow.pop %v382
    %v384 = vmul.f32 %v377, 1.442695
    %v385 = vpow.pop %v384
    %v386 = vsel %vm361, %v379, 0.0
    %387 = vadd.xlane.f32.xlu0 %v386
    %v388 = vpop.xlane.xlu0 %387
    %v389 = vsel %vm361, %v381, 0.0
    %390 = vadd.xlane.f32.xlu0 %v389
    %v391 = vpop.xlane.xlu0 %390
    %v392 = vsel %vm361, %v383, 0.0
    %393 = vadd.xlane.f32.xlu0 %v392
    %v394 = vpop.xlane.xlu0 %393
    %v395 = vsel %vm361, %v385, 0.0
    %396 = vadd.xlane.f32.xlu0 %v395
    %v397 = vpop.xlane.xlu0 %396
    %v398 = vrcp.pop %v388
    %v399 = vrcp.pop %v391
    %v400 = vrcp.pop %v394
    %v401 = vrcp.pop %v397
    %v402 = vmul.f32 %v379, %v398
    %v403 = vmul.f32 %v381, %v399
    %v404 = vmul.f32 %v383, %v400
    %v405 = vmul.f32 %v385, %v401
    %406 = vrot.lane.b32.xlu0 %v233, 64
    %v407 = vpop.permute.xlu0 %406
    %v410 = vsel %vm361, %v402, 0
    %412 = vmatpush.msra.mxu0 0.0
    %413 = vmatpush.msra.mxu0 0.0
    %414 = vmatpush.msra.mxu0 0.0
    %415 = vmatpush.msra.mxu0 0.0
    %416 = vmatpush.msra.mxu0 0.0
    %417 = vmatpush.msra.mxu0 0.0
    %418 = vmatpush.msra.mxu0 0.0
    %419 = vmatpush.msra.mxu0 0.0
    %420 = vmatpush.msra.mxu0 0.0
    %421 = vmatpush.msra.mxu0 0.0
    %422 = vmatpush.msra.mxu0 0.0
    %423 = vmatpush.msra.mxu0 0.0
    %424 = vmatpush.msra.mxu0 0.0
    %425 = vmatpush.msra.mxu0 0.0
    %426 = vmatpush.msra.mxu0 0.0
    %427 = vmatpush.msra.mxu0 %v407
    %428 = vmatmul.f32.gmra.mxu0 %v410
    %v429 = vpop.f32.mrf.mxu0
    %v430 = vadd.f32 0.0, %v429
    %431 = vdwg.mxu0
    %432 = vrot.lane.b32.xlu0 %v240, 64
    %v433 = vpop.permute.xlu0 %432
    %v436 = vsel %vm361, %v403, 0
    %438 = vmatpush.msra.mxu0 0.0
    %439 = vmatpush.msra.mxu0 0.0
    %440 = vmatpush.msra.mxu0 0.0
    %441 = vmatpush.msra.mxu0 0.0
    %442 = vmatpush.msra.mxu0 0.0
    %443 = vmatpush.msra.mxu0 0.0
    %444 = vmatpush.msra.mxu0 0.0
    %445 = vmatpush.msra.mxu0 0.0
    %446 = vmatpush.msra.mxu0 0.0
    %447 = vmatpush.msra.mxu0 0.0
    %448 = vmatpush.msra.mxu0 0.0
    %449 = vmatpush.msra.mxu0 0.0
    %450 = vmatpush.msra.mxu0 0.0
    %451 = vmatpush.msra.mxu0 0.0
    %452 = vmatpush.msra.mxu0 0.0
    %453 = vmatpush.msra.mxu0 %v433
    %454 = vmatmul.f32.gmra.mxu0 %v436
    %v455 = vpop.f32.mrf.mxu0
    %v456 = vadd.f32 0.0, %v455
    %457 = vdwg.mxu0
    %458 = vrot.lane.b32.xlu0 %v236, 64
    %v459 = vpop.permute.xlu0 %458
    %v462 = vsel %vm361, %v404, 0
    %464 = vmatpush.msra.mxu0 0.0
    %465 = vmatpush.msra.mxu0 0.0
    %466 = vmatpush.msra.mxu0 0.0
    %467 = vmatpush.msra.mxu0 0.0
    %468 = vmatpush.msra.mxu0 0.0
    %469 = vmatpush.msra.mxu0 0.0
    %470 = vmatpush.msra.mxu0 0.0
    %471 = vmatpush.msra.mxu0 0.0
    %472 = vmatpush.msra.mxu0 0.0
    %473 = vmatpush.msra.mxu0 0.0
    %474 = vmatpush.msra.mxu0 0.0
    %475 = vmatpush.msra.mxu0 0.0
    %476 = vmatpush.msra.mxu0 0.0
    %477 = vmatpush.msra.mxu0 0.0
    %478 = vmatpush.msra.mxu0 0.0
    %479 = vmatpush.msra.mxu0 %v459
    %480 = vmatmul.f32.gmra.mxu0 %v462
    %v481 = vpop.f32.mrf.mxu0
    %v482 = vadd.f32 0.0, %v481
    %483 = vdwg.mxu0
    %484 = vrot.lane.b32.xlu0 %v243, 64
    %v485 = vpop.permute.xlu0 %484
    %v488 = vsel %vm361, %v405, 0
    %490 = vmatpush.msra.mxu0 0.0
    %491 = vmatpush.msra.mxu0 0.0
    %492 = vmatpush.msra.mxu0 0.0
    %493 = vmatpush.msra.mxu0 0.0
    %494 = vmatpush.msra.mxu0 0.0
    %495 = vmatpush.msra.mxu0 0.0
    %496 = vmatpush.msra.mxu0 0.0
    %497 = vmatpush.msra.mxu0 0.0
    %498 = vmatpush.msra.mxu0 0.0
    %499 = vmatpush.msra.mxu0 0.0
    %500 = vmatpush.msra.mxu0 0.0
    %501 = vmatpush.msra.mxu0 0.0
    %502 = vmatpush.msra.mxu0 0.0
    %503 = vmatpush.msra.mxu0 0.0
    %504 = vmatpush.msra.mxu0 0.0
    %505 = vmatpush.msra.mxu0 %v485
    %506 = vmatmul.f32.gmra.mxu0 %v488
    %v507 = vpop.f32.mrf.mxu0
    %v508 = vadd.f32 0.0, %v507
    %509 = vdwg.mxu0
    %511 = vrot.lane.b32.xlu0 %v456, 16
    %v512 = vpop.permute.xlu0 %511
    %v514 = vsel %vm258, %v430, %v512
    %516 = vrot.lane.b32.xlu0 %v508, 16
    %v517 = vpop.permute.xlu0 %516
    %v519 = vsel %vm258, %v482, %v517
    %v520 = vld [vmem:[#allocation2] sm:$0xff]
    %v521 = vld [vmem:[#allocation2 + $0x8] sm:$0xff]
    %v522 = vld [vmem:[#allocation2 + $0x10] sm:$0xff]
    %v523 = vld [vmem:[#allocation2 + $0x18] sm:$0xff]
    %v524 = vld [vmem:[%s7] sm:$0x1]
    %v526 = vperm.slane %v524, 0
    %v529 = vsel %vm135, %v514, 0
    %v532 = vsel %vm135, %v519, 0
    %534 = vmatpush.msra.mxu0 0.0
    %535 = vmatpush.msra.mxu0 0.0
    %536 = vmatpush.msra.mxu0 0.0
    %537 = vmatpush.msra.mxu0 0.0
    %538 = vmatpush.msra.mxu0 0.0
    %539 = vmatpush.msra.mxu0 0.0
    %540 = vmatpush.msra.mxu0 0.0
    %541 = vmatpush.msra.mxu0 0.0
    %542 = vmatpush.msra.mxu0 0.0
    %543 = vmatpush.msra.mxu0 0.0
    %544 = vmatpush.msra.mxu0 0.0
    %545 = vmatpush.msra.mxu0 0.0
    %546 = vmatpush.msra.mxu0 %v523
    %547 = vmatpush.msra.mxu0 %v522
    %548 = vmatpush.msra.mxu0 %v521
    %549 = vmatpush.msra.mxu0 %v520
    %550 = vmatmul.f32.gmra.mxu0 %v529
    %v551 = vpop.f32.mrf.mxu0
    %v552 = vadd.f32 %v526, %v551
    %553 = vmatmul.f32.gmra.mxu0 %v532
    %v554 = vpop.f32.mrf.mxu0
    %v555 = vadd.f32 %v526, %v554
    %556 = vdwg.mxu0
    %v557 = vadd.f32 %v195, %v552
    %v558 = vadd.f32 %v196, %v555
    %v559 = vld [vmem:[%s8] sm:$0x1]
    %v560 = vld [vmem:[%s9] sm:$0x1]
    %v561 = vsel %vm135, %v557, 0.0
    %562 = vadd.xlane.f32.xlu0 %v561
    %v563 = vpop.xlane.xlu0 %562
    %v564 = vsel %vm135, %v558, 0.0
    %565 = vadd.xlane.f32.xlu0 %v564
    %v566 = vpop.xlane.xlu0 %565
    %v567 = vmul.f32 %v563, %v148
    %v568 = vmul.f32 %v566, %v148
    %v569 = vsub.f32 %v557, %v567
    %v570 = vsub.f32 %v558, %v568
    %v571 = vmul.f32 %v569, %v569
    %v572 = vmul.f32 %v570, %v570
    %v573 = vsel %vm135, %v571, 0.0
    %574 = vadd.xlane.f32.xlu0 %v573
    %v575 = vpop.xlane.xlu0 %574
    %v576 = vsel %vm135, %v572, 0.0
    %577 = vadd.xlane.f32.xlu0 %v576
    %v578 = vpop.xlane.xlu0 %577
    %v579 = vmul.f32 %v575, %v148
    %v580 = vmul.f32 %v578, %v148
    %v581 = vadd.f32 %v579, 1e-12
    %v582 = vadd.f32 %v580, 1e-12
    %v583 = vrsqrt.pop %v581
    %v584 = vmul.f32 %v583, %v581
    %v585 = vmul.f32 %v584, %v583
    %v586 = vmul.f32 0.5, %v585
    %v587 = vsub.f32 1.5, %v586
    %v588 = vmul.f32 %v583, %v587
    %vm589 = vweird.f32 %v581
    %vm590 = vweird.f32 %v583
    %vm591 = vmor %vm589, %vm590
    %v592 = vsel %vm591, %v583, %v588
    %v593 = vrsqrt.pop %v582
    %v594 = vmul.f32 %v593, %v582
    %v595 = vmul.f32 %v594, %v593
    %v596 = vmul.f32 0.5, %v595
    %v597 = vsub.f32 1.5, %v596
    %v598 = vmul.f32 %v593, %v597
    %vm599 = vweird.f32 %v582
    %vm600 = vweird.f32 %v593
    %vm601 = vmor %vm599, %vm600
    %v602 = vsel %vm601, %v593, %v598
    %v603 = vmul.f32 %v569, %v592
    %v604 = vmul.f32 %v570, %v602
    %v606 = vperm.slane %v559, 0
    %v608 = vmul.f32 %v603, %v606
    %v609 = vmul.f32 %v604, %v606
    %v611 = vperm.slane %v560, 0
    %v613 = vadd.f32 %v608, %v611
    %v614 = vadd.f32 %v609, %v611
    %v615 = vld [vmem:[#allocation4] sm:$0xff]
    %v616 = vld [vmem:[#allocation4 + $0x8] sm:$0xff]
    %v617 = vld [vmem:[#allocation4 + $0x10] sm:$0xff]
    %v618 = vld [vmem:[#allocation4 + $0x18] sm:$0xff]
    %v619 = vld [vmem:[%s11] sm:$0x1]
    %v621 = vperm.slane %v619, 0
    %v624 = vsel %vm135, %v613, 0
    %v627 = vsel %vm135, %v614, 0
    %629 = vmatpush.msra.mxu0 0.0
    %630 = vmatpush.msra.mxu0 0.0
    %631 = vmatpush.msra.mxu0 0.0
    %632 = vmatpush.msra.mxu0 0.0
    %633 = vmatpush.msra.mxu0 0.0
    %634 = vmatpush.msra.mxu0 0.0
    %635 = vmatpush.msra.mxu0 0.0
    %636 = vmatpush.msra.mxu0 0.0
    %637 = vmatpush.msra.mxu0 0.0
    %638 = vmatpush.msra.mxu0 0.0
    %639 = vmatpush.msra.mxu0 0.0
    %640 = vmatpush.msra.mxu0 0.0
    %641 = vmatpush.msra.mxu0 %v618
    %642 = vmatpush.msra.mxu0 %v617
    %643 = vmatpush.msra.mxu0 %v616
    %644 = vmatpush.msra.mxu0 %v615
    %645 = vmatmul.f32.gmra.mxu0 %v624
    %v646 = vpop.f32.mrf.mxu0
    %v647 = vadd.f32 %v621, %v646
    %648 = vmatmul.f32.gmra.mxu0 %v627
    %v649 = vpop.f32.mrf.mxu0
    %v650 = vadd.f32 %v621, %v649
    %651 = vdwg.mxu0
    %v652 = vmul.f32 %v647, 0.5
    %v653 = vmul.f32 %v650, 0.5
    %v654 = vmul.f32 %v647, 0.70710677
    %v655 = vmul.f32 %v650, 0.70710677
    %v656 = vand.u32 2147483647, %v654
    %v657 = vand.u32 2147483647, %v655
    %v658 = vmul.f32 %v656, 0.3275911
    %v659 = vmul.f32 %v657, 0.3275911
    %v660 = vadd.f32 %v658, 1.0
    %v661 = vadd.f32 %v659, 1.0
    %v662 = vrcp.pop %v660
    %v663 = vmul.f32 %v660, %v662
    %v664 = vsub.f32 1.0, %v663
    %v665 = vmul.f32 %v662, %v664
    %v666 = vadd.f32 %v662, %v665
    %vm667 = vweird.f32 %v660
    %vm668 = vweird.f32 %v662
    %vm669 = vmor %vm667, %vm668
    %v670 = vsel %vm669, %v662, %v666
    %v671 = vand.u32 2147483647, %v660
    %vm672 = vcmp.eq.f32.partialorder %v671, 8.507059e+37
    %v673 = vand.u32 %v660, 2147483648
    %v674 = vor.u32 1.1754944e-38, %v673
    %v675 = vsel %vm672, %v674, %v670
    %v676 = vmul.f32 1.0, %v675
    %v677 = vrcp.pop %v661
    %v678 = vmul.f32 %v661, %v677
    %v679 = vsub.f32 1.0, %v678
    %v680 = vmul.f32 %v677, %v679
    %v681 = vadd.f32 %v677, %v680
    %vm682 = vweird.f32 %v661
    %vm683 = vweird.f32 %v677
    %vm684 = vmor %vm682, %vm683
    %v685 = vsel %vm684, %v677, %v681
    %v686 = vand.u32 2147483647, %v661
    %vm687 = vcmp.eq.f32.partialorder %v686, 8.507059e+37
    %v688 = vand.u32 %v661, 2147483648
    %v689 = vor.u32 1.1754944e-38, %v688
    %v690 = vsel %vm687, %v689, %v685
    %v691 = vmul.f32 1.0, %v690
    %v692 = vmul.f32 %v676, 1.0614054
    %v693 = vmul.f32 %v691, 1.0614054
    %v694 = vadd.f32 %v692, -1.4531521
    %v695 = vadd.f32 %v693, -1.4531521
    %v696 = vmul.f32 %v676, %v694
    %v697 = vmul.f32 %v691, %v695
    %v698 = vadd.f32 %v696, 1.4214138
    %v699 = vadd.f32 %v697, 1.4214138
    %v700 = vmul.f32 %v676, %v698
    %v701 = vmul.f32 %v691, %v699
    %v702 = vadd.f32 %v700, -0.28449672
    %v703 = vadd.f32 %v701, -0.28449672
    %v704 = vmul.f32 %v676, %v702
    %v705 = vmul.f32 %v691, %v703
    %v706 = vadd.f32 %v704, 0.2548296
    %v707 = vadd.f32 %v705, 0.2548296
    %v708 = vmul.f32 %v676, %v706
    %v709 = vmul.f32 %v691, %v707
    %v710 = vsub.f32 0.0, %v654
    %v711 = vsub.f32 0.0, %v655
    %v712 = vmul.f32 %v710, %v654
    %v713 = vmul.f32 %v711, %v655
    %v714 = vmul.f32 %v712, 1.442695
    %v715 = vpow.pop %v714
    %v716 = vmul.f32 %v713, 1.442695
    %v717 = vpow.pop %v716
    %v718 = vmul.f32 %v708, %v715
    %v719 = vmul.f32 %v709, %v717
    %v720 = vsub.f32 1.0, %v718
    %v721 = vsub.f32 1.0, %v719
    %vm722 = vcmp.ge.f32.partialorder %v654, 0.0
    %vm723 = vcmp.ge.f32.partialorder %v655, 0.0
    %v724 = vsub.f32 0.0, %v720
    %v725 = vsub.f32 0.0, %v721
    %v726 = vsel %vm722, %v720, %v724
    %v727 = vsel %vm723, %v721, %v725
    %v728 = vadd.f32 %v726, 1.0
    %v729 = vadd.f32 %v727, 1.0
    %v730 = vmul.f32 %v652, %v728
    %v731 = vmul.f32 %v653, %v729
    %v732 = vld [vmem:[%s12] sm:$0xff]
    %v733 = vld [vmem:[%s12 + $0x8] sm:$0xff]
    %v734 = vld [vmem:[%s12 + $0x10] sm:$0xff]
    %v735 = vld [vmem:[%s12 + $0x18] sm:$0xff]
    %v736 = vld [vmem:[%s12 + $0x20] sm:$0xff]
    %v737 = vld [vmem:[%s12 + $0x28] sm:$0xff]
    %v738 = vld [vmem:[%s12 + $0x30] sm:$0xff]
    %v739 = vld [vmem:[%s12 + $0x38] sm:$0xff]
    %v740 = vld [vmem:[%s13] sm:$0x1]
    %v742 = vperm.slane %v740, 0
    %vm744 = vcmask 523264
    %v746 = vsel %vm744, %v730, 0
    %v749 = vsel %vm744, %v731, 0
    %751 = vmatpush.msra.mxu0 0.0
    %752 = vmatpush.msra.mxu0 0.0
    %753 = vmatpush.msra.mxu0 0.0
    %754 = vmatpush.msra.mxu0 0.0
    %755 = vmatpush.msra.mxu0 0.0
    %756 = vmatpush.msra.mxu0 0.0
    %757 = vmatpush.msra.mxu0 0.0
    %758 = vmatpush.msra.mxu0 0.0
    %759 = vmatpush.msra.mxu0 %v739
    %760 = vmatpush.msra.mxu0 %v738
    %761 = vmatpush.msra.mxu0 %v737
    %762 = vmatpush.msra.mxu0 %v736
    %763 = vmatpush.msra.mxu0 %v735
    %764 = vmatpush.msra.mxu0 %v734
    %765 = vmatpush.msra.mxu0 %v733
    %766 = vmatpush.msra.mxu0 %v732
    %767 = vmatmul.f32.gmra.mxu0 %v746
    %v768 = vpop.f32.mrf.mxu0
    %v769 = vadd.f32 %v742, %v768
    %770 = vmatmul.f32.gmra.mxu0 %v749
    %v771 = vpop.f32.mrf.mxu0
    %v772 = vadd.f32 %v742, %v771
    %773 = vdwg.mxu0
    %v774 = vadd.f32 %v613, %v769
    %v775 = vadd.f32 %v614, %v772
    %v776 = vld [vmem:[%s14] sm:$0x1]
    %v777 = vld [vmem:[%s15] sm:$0x1]
    %v778 = vsel %vm135, %v774, 0.0
    %779 = vadd.xlane.f32.xlu0 %v778
    %v780 = vpop.xlane.xlu0 %779
    %v781 = vsel %vm135, %v775, 0.0
    %782 = vadd.xlane.f32.xlu0 %v781
    %v783 = vpop.xlane.xlu0 %782
    %v784 = vmul.f32 %v780, %v148
    %v785 = vmul.f32 %v783, %v148
    %v786 = vsub.f32 %v774, %v784
    %v787 = vsub.f32 %v775, %v785
    %v788 = vmul.f32 %v786, %v786
    %v789 = vmul.f32 %v787, %v787
    %v790 = vsel %vm135, %v788, 0.0
    %791 = vadd.xlane.f32.xlu0 %v790
    %v792 = vpop.xlane.xlu0 %791
    %v793 = vsel %vm135, %v789, 0.0
    %794 = vadd.xlane.f32.xlu0 %v793
    %v795 = vpop.xlane.xlu0 %794
    %v796 = vmul.f32 %v792, %v148
    %v797 = vmul.f32 %v795, %v148
    %v798 = vadd.f32 %v796, 1e-12
    %v799 = vadd.f32 %v797, 1e-12
    %v800 = vrsqrt.pop %v798
    %v801 = vmul.f32 %v800, %v798
    %v802 = vmul.f32 %v801, %v800
    %v803 = vmul.f32 0.5, %v802
    %v804 = vsub.f32 1.5, %v803
    %v805 = vmul.f32 %v800, %v804
    %vm806 = vweird.f32 %v798
    %vm807 = vweird.f32 %v800
    %vm808 = vmor %vm806, %vm807
    %v809 = vsel %vm808, %v800, %v805
    %v810 = vrsqrt.pop %v799
    %v811 = vmul.f32 %v810, %v799
    %v812 = vmul.f32 %v811, %v810
    %v813 = vmul.f32 0.5, %v812
    %v814 = vsub.f32 1.5, %v813
    %v815 = vmul.f32 %v810, %v814
    %vm816 = vweird.f32 %v799
    %vm817 = vweird.f32 %v810
    %vm818 = vmor %vm816, %vm817
    %v819 = vsel %vm818, %v810, %v815
    %v820 = vmul.f32 %v786, %v809
    %v821 = vmul.f32 %v787, %v819
    %v823 = vperm.slane %v776, 0
    %v825 = vmul.f32 %v820, %v823
    %v826 = vmul.f32 %v821, %v823
    %v828 = vperm.slane %v777, 0
    %v830 = vadd.f32 %v825, %v828
    %v831 = vadd.f32 %v826, %v828
    %s832 = scalar_lea.vmem %s4, 32
    %v833 = vld [vmem:[%s832] sm:$0xff]
    %v834 = vld [vmem:[%s832 + $0x8] sm:$0xff]
    %v835 = vld [vmem:[%s832 + $0x10] sm:$0xff]
    %v836 = vld [vmem:[%s832 + $0x18] sm:$0xff]
    %s837 = scalar_lea.vmem %s5, 1
    %v838 = vld [vmem:[%s837] sm:$0x1]
    %v840 = vperm.slane %v838, 0
    %v843 = vsel %vm135, %v830, 0
    %v846 = vsel %vm135, %v831, 0
    %848 = vmatpush.msra.mxu0 0.0
    %849 = vmatpush.msra.mxu0 0.0
    %850 = vmatpush.msra.mxu0 0.0
    %851 = vmatpush.msra.mxu0 0.0
    %852 = vmatpush.msra.mxu0 0.0
    %853 = vmatpush.msra.mxu0 0.0
    %854 = vmatpush.msra.mxu0 0.0
    %855 = vmatpush.msra.mxu0 0.0
    %856 = vmatpush.msra.mxu0 0.0
    %857 = vmatpush.msra.mxu0 0.0
    %858 = vmatpush.msra.mxu0 0.0
    %859 = vmatpush.msra.mxu0 0.0
    %860 = vmatpush.msra.mxu0 %v836
    %861 = vmatpush.msra.mxu0 %v835
    %862 = vmatpush.msra.mxu0 %v834
    %863 = vmatpush.msra.mxu0 %v833
    %864 = vmatmul.f32.gmra.mxu0 %v843
    %v865 = vpop.f32.mrf.mxu0
    %v866 = vadd.f32 %v840, %v865
    %867 = vmatmul.f32.gmra.mxu0 %v846
    %v868 = vpop.f32.mrf.mxu0
    %v869 = vadd.f32 %v840, %v868
    %870 = vdwg.mxu0
    %872 = vrot.lane.b32.xlu0 %v866, 112
    %v873 = vpop.permute.xlu0 %872
    %875 = vrot.lane.b32.xlu0 %v869, 112
    %v876 = vpop.permute.xlu0 %875
    %877 = vrot.lane.b32.xlu0 %v866, 96
    %v878 = vpop.permute.xlu0 %877
    %v879 = vsel %vm258, %v866, 0
    %v881 = vsel %vm258, %v878, 0
    %883 = vmatpush.xpose.msra.mxu0 0.0
    %884 = vmatpush.xpose.msra.mxu0 0.0
    %885 = vmatpush.xpose.msra.mxu0 0.0
    %886 = vmatpush.xpose.msra.mxu0 0.0
    %887 = vmatpush.xpose.msra.mxu0 0.0
    %888 = vmatpush.xpose.msra.mxu0 0.0
    %889 = vmatpush.xpose.msra.mxu0 0.0
    %890 = vmatpush.xpose.msra.mxu0 0.0
    %891 = vmatpush.xpose.msra.mxu0 0.0
    %892 = vmatpush.xpose.msra.mxu0 0.0
    %893 = vmatpush.xpose.msra.mxu0 0.0
    %894 = vmatpush.xpose.msra.mxu0 0.0
    %895 = vmatpush.xpose.msra.mxu0 0.0
    %896 = vmatpush.xpose.msra.mxu0 0.0
    %897 = vmatpush.xpose.msra.mxu0 0.0
    %898 = vmatpush.xpose.msra.mxu0 %v881
    %899 = vmatmul.f32.gmra.mxu0 %v879
    %v900 = vpop.f32.mrf.mxu0
    %v901 = vadd.f32 %v248, %v900
    %902 = vdwg.mxu0
    %903 = vrot.lane.b32.xlu0 %v873, 96
    %v904 = vpop.permute.xlu0 %903
    %v905 = vsel %vm258, %v873, 0
    %v907 = vsel %vm258, %v904, 0
    %909 = vmatpush.xpose.msra.mxu0 0.0
    %910 = vmatpush.xpose.msra.mxu0 0.0
    %911 = vmatpush.xpose.msra.mxu0 0.0
    %912 = vmatpush.xpose.msra.mxu0 0.0
    %913 = vmatpush.xpose.msra.mxu0 0.0
    %914 = vmatpush.xpose.msra.mxu0 0.0
    %915 = vmatpush.xpose.msra.mxu0 0.0
    %916 = vmatpush.xpose.msra.mxu0 0.0
    %917 = vmatpush.xpose.msra.mxu0 0.0
    %918 = vmatpush.xpose.msra.mxu0 0.0
    %919 = vmatpush.xpose.msra.mxu0 0.0
    %920 = vmatpush.xpose.msra.mxu0 0.0
    %921 = vmatpush.xpose.msra.mxu0 0.0
    %922 = vmatpush.xpose.msra.mxu0 0.0
    %923 = vmatpush.xpose.msra.mxu0 0.0
    %924 = vmatpush.xpose.msra.mxu0 %v907
    %925 = vmatmul.f32.gmra.mxu0 %v905
    %v926 = vpop.f32.mrf.mxu0
    %v927 = vadd.f32 %v249, %v926
    %928 = vdwg.mxu0
    %929 = vrot.lane.b32.xlu0 %v869, 96
    %v930 = vpop.permute.xlu0 %929
    %v931 = vsel %vm258, %v869, 0
    %v933 = vsel %vm258, %v930, 0
    %935 = vmatpush.xpose.msra.mxu0 0.0
    %936 = vmatpush.xpose.msra.mxu0 0.0
    %937 = vmatpush.xpose.msra.mxu0 0.0
    %938 = vmatpush.xpose.msra.mxu0 0.0
    %939 = vmatpush.xpose.msra.mxu0 0.0
    %940 = vmatpush.xpose.msra.mxu0 0.0
    %941 = vmatpush.xpose.msra.mxu0 0.0
    %942 = vmatpush.xpose.msra.mxu0 0.0
    %943 = vmatpush.xpose.msra.mxu0 0.0
    %944 = vmatpush.xpose.msra.mxu0 0.0
    %945 = vmatpush.xpose.msra.mxu0 0.0
    %946 = vmatpush.xpose.msra.mxu0 0.0
    %947 = vmatpush.xpose.msra.mxu0 0.0
    %948 = vmatpush.xpose.msra.mxu0 0.0
    %949 = vmatpush.xpose.msra.mxu0 0.0
    %950 = vmatpush.xpose.msra.mxu0 %v933
    %951 = vmatmul.f32.gmra.mxu0 %v931
    %v952 = vpop.f32.mrf.mxu0
    %v953 = vadd.f32 %v250, %v952
    %954 = vdwg.mxu0
    %955 = vrot.lane.b32.xlu0 %v876, 96
    %v956 = vpop.permute.xlu0 %955
    %v957 = vsel %vm258, %v876, 0
    %v959 = vsel %vm258, %v956, 0
    %961 = vmatpush.xpose.msra.mxu0 0.0
    %962 = vmatpush.xpose.msra.mxu0 0.0
    %963 = vmatpush.xpose.msra.mxu0 0.0
    %964 = vmatpush.xpose.msra.mxu0 0.0
    %965 = vmatpush.xpose.msra.mxu0 0.0
    %966 = vmatpush.xpose.msra.mxu0 0.0
    %967 = vmatpush.xpose.msra.mxu0 0.0
    %968 = vmatpush.xpose.msra.mxu0 0.0
    %969 = vmatpush.xpose.msra.mxu0 0.0
    %970 = vmatpush.xpose.msra.mxu0 0.0
    %971 = vmatpush.xpose.msra.mxu0 0.0
    %972 = vmatpush.xpose.msra.mxu0 0.0
    %973 = vmatpush.xpose.msra.mxu0 0.0
    %974 = vmatpush.xpose.msra.mxu0 0.0
    %975 = vmatpush.xpose.msra.mxu0 0.0
    %976 = vmatpush.xpose.msra.mxu0 %v959
    %977 = vmatmul.f32.gmra.mxu0 %v957
    %v978 = vpop.f32.mrf.mxu0
    %v979 = vadd.f32 %v251, %v978
    %980 = vdwg.mxu0
    %v981 = vsel %vm361, %v901, -inf
    %982 = vmax.xlane.f32.xlu0 %v981
    %v983 = vpop.xlane.xlu0 %982
    %v984 = vsel %vm361, %v927, -inf
    %985 = vmax.xlane.f32.xlu0 %v984
    %v986 = vpop.xlane.xlu0 %985
    %v987 = vsel %vm361, %v953, -inf
    %988 = vmax.xlane.f32.xlu0 %v987
    %v989 = vpop.xlane.xlu0 %988
    %v990 = vsel %vm361, %v979, -inf
    %991 = vmax.xlane.f32.xlu0 %v990
    %v992 = vpop.xlane.xlu0 %991
    %v993 = vsub.f32 %v901, %v983
    %v994 = vsub.f32 %v927, %v986
    %v995 = vsub.f32 %v953, %v989
    %v996 = vsub.f32 %v979, %v992
    %v997 = vmul.f32 %v993, 1.442695
    %v998 = vpow.pop %v997
    %v999 = vmul.f32 %v994, 1.442695
    %v1000 = vpow.pop %v999
    %v1001 = vmul.f32 %v995, 1.442695
    %v1002 = vpow.pop %v1001
    %v1003 = vmul.f32 %v996, 1.442695
    %v1004 = vpow.pop %v1003
    %v1005 = vsel %vm361, %v998, 0.0
    %1006 = vadd.xlane.f32.xlu0 %v1005
    %v1007 = vpop.xlane.xlu0 %1006
    %v1008 = vsel %vm361, %v1000, 0.0
    %1009 = vadd.xlane.f32.xlu0 %v1008
    %v1010 = vpop.xlane.xlu0 %1009
    %v1011 = vsel %vm361, %v1002, 0.0
    %1012 = vadd.xlane.f32.xlu0 %v1011
    %v1013 = vpop.xlane.xlu0 %1012
    %v1014 = vsel %vm361, %v1004, 0.0
    %1015 = vadd.xlane.f32.xlu0 %v1014
    %v1016 = vpop.xlane.xlu0 %1015
    %v1017 = vrcp.pop %v1007
    %v1018 = vrcp.pop %v1010
    %v1019 = vrcp.pop %v1013
    %v1020 = vrcp.pop %v1016
    %v1021 = vmul.f32 %v998, %v1017
    %v1022 = vmul.f32 %v1000, %v1018
    %v1023 = vmul.f32 %v1002, %v1019
    %v1024 = vmul.f32 %v1004, %v1020
    %1025 = vrot.lane.b32.xlu0 %v866, 64
    %v1026 = vpop.permute.xlu0 %1025
    %v1029 = vsel %vm361, %v1021, 0
    %1031 = vmatpush.msra.mxu0 0.0
    %1032 = vmatpush.msra.mxu0 0.0
    %1033 = vmatpush.msra.mxu0 0.0
    %1034 = vmatpush.msra.mxu0 0.0
    %1035 = vmatpush.msra.mxu0 0.0
    %1036 = vmatpush.msra.mxu0 0.0
    %1037 = vmatpush.msra.mxu0 0.0
    %1038 = vmatpush.msra.mxu0 0.0
    %1039 = vmatpush.msra.mxu0 0.0
    %1040 = vmatpush.msra.mxu0 0.0
    %1041 = vmatpush.msra.mxu0 0.0
    %1042 = vmatpush.msra.mxu0 0.0
    %1043 = vmatpush.msra.mxu0 0.0
    %1044 = vmatpush.msra.mxu0 0.0
    %1045 = vmatpush.msra.mxu0 0.0
    %1046 = vmatpush.msra.mxu0 %v1026
    %1047 = vmatmul.f32.gmra.mxu0 %v1029
    %v1048 = vpop.f32.mrf.mxu0
    %v1049 = vadd.f32 0.0, %v1048
    %1050 = vdwg.mxu0
    %1051 = vrot.lane.b32.xlu0 %v873, 64
    %v1052 = vpop.permute.xlu0 %1051
    %v1055 = vsel %vm361, %v1022, 0
    %1057 = vmatpush.msra.mxu0 0.0
    %1058 = vmatpush.msra.mxu0 0.0
    %1059 = vmatpush.msra.mxu0 0.0
    %1060 = vmatpush.msra.mxu0 0.0
    %1061 = vmatpush.msra.mxu0 0.0
    %1062 = vmatpush.msra.mxu0 0.0
    %1063 = vmatpush.msra.mxu0 0.0
    %1064 = vmatpush.msra.mxu0 0.0
    %1065 = vmatpush.msra.mxu0 0.0
    %1066 = vmatpush.msra.mxu0 0.0
    %1067 = vmatpush.msra.mxu0 0.0
    %1068 = vmatpush.msra.mxu0 0.0
    %1069 = vmatpush.msra.mxu0 0.0
    %1070 = vmatpush.msra.mxu0 0.0
    %1071 = vmatpush.msra.mxu0 0.0
    %1072 = vmatpush.msra.mxu0 %v1052
    %1073 = vmatmul.f32.gmra.mxu0 %v1055
    %v1074 = vpop.f32.mrf.mxu0
    %v1075 = vadd.f32 0.0, %v1074
    %1076 = vdwg.mxu0
    %1077 = vrot.lane.b32.xlu0 %v869, 64
    %v1078 = vpop.permute.xlu0 %1077
    %v1081 = vsel %vm361, %v1023, 0
    %1083 = vmatpush.msra.mxu0 0.0
    %1084 = vmatpush.msra.mxu0 0.0
    %1085 = vmatpush.msra.mxu0 0.0
    %1086 = vmatpush.msra.mxu0 0.0
    %1087 = vmatpush.msra.mxu0 0.0
    %1088 = vmatpush.msra.mxu0 0.0
    %1089 = vmatpush.msra.mxu0 0.0
    %1090 = vmatpush.msra.mxu0 0.0
    %1091 = vmatpush.msra.mxu0 0.0
    %1092 = vmatpush.msra.mxu0 0.0
    %1093 = vmatpush.msra.mxu0 0.0
    %1094 = vmatpush.msra.mxu0 0.0
    %1095 = vmatpush.msra.mxu0 0.0
    %1096 = vmatpush.msra.mxu0 0.0
    %1097 = vmatpush.msra.mxu0 0.0
    %1098 = vmatpush.msra.mxu0 %v1078
    %1099 = vmatmul.f32.gmra.mxu0 %v1081
    %v1100 = vpop.f32.mrf.mxu0
    %v1101 = vadd.f32 0.0, %v1100
    %1102 = vdwg.mxu0
    %1103 = vrot.lane.b32.xlu0 %v876, 64
    %v1104 = vpop.permute.xlu0 %1103
    %v1107 = vsel %vm361, %v1024, 0
    %1109 = vmatpush.msra.mxu0 0.0
    %1110 = vmatpush.msra.mxu0 0.0
    %1111 = vmatpush.msra.mxu0 0.0
    %1112 = vmatpush.msra.mxu0 0.0
    %1113 = vmatpush.msra.mxu0 0.0
    %1114 = vmatpush.msra.mxu0 0.0
    %1115 = vmatpush.msra.mxu0 0.0
    %1116 = vmatpush.msra.mxu0 0.0
    %1117 = vmatpush.msra.mxu0 0.0
    %1118 = vmatpush.msra.mxu0 0.0
    %1119 = vmatpush.msra.mxu0 0.0
    %1120 = vmatpush.msra.mxu0 0.0
    %1121 = vmatpush.msra.mxu0 0.0
    %1122 = vmatpush.msra.mxu0 0.0
    %1123 = vmatpush.msra.mxu0 0.0
    %1124 = vmatpush.msra.mxu0 %v1104
    %1125 = vmatmul.f32.gmra.mxu0 %v1107
    %v1126 = vpop.f32.mrf.mxu0
    %v1127 = vadd.f32 0.0, %v1126
    %1128 = vdwg.mxu0
    %1130 = vrot.lane.b32.xlu0 %v1075, 16
    %v1131 = vpop.permute.xlu0 %1130
    %v1133 = vsel %vm258, %v1049, %v1131
    %1135 = vrot.lane.b32.xlu0 %v1127, 16
    %v1136 = vpop.permute.xlu0 %1135
    %v1138 = vsel %vm258, %v1101, %v1136
    %s1139 = scalar_lea.vmem [#allocation2], 32
    %v1140 = vld [vmem:[%s1139] sm:$0xff]
    %v1141 = vld [vmem:[%s1139 + $0x8] sm:$0xff]
    %v1142 = vld [vmem:[%s1139 + $0x10] sm:$0xff]
    %v1143 = vld [vmem:[%s1139 + $0x18] sm:$0xff]
    %s1144 = scalar_lea.vmem %s7, 1
    %v1145 = vld [vmem:[%s1144] sm:$0x1]
    %v1147 = vperm.slane %v1145, 0
    %v1150 = vsel %vm135, %v1133, 0
    %v1153 = vsel %vm135, %v1138, 0
    %1155 = vmatpush.msra.mxu0 0.0
    %1156 = vmatpush.msra.mxu0 0.0
    %1157 = vmatpush.msra.mxu0 0.0
    %1158 = vmatpush.msra.mxu0 0.0
    %1159 = vmatpush.msra.mxu0 0.0
    %1160 = vmatpush.msra.mxu0 0.0
    %1161 = vmatpush.msra.mxu0 0.0
    %1162 = vmatpush.msra.mxu0 0.0
    %1163 = vmatpush.msra.mxu0 0.0
    %1164 = vmatpush.msra.mxu0 0.0
    %1165 = vmatpush.msra.mxu0 0.0
    %1166 = vmatpush.msra.mxu0 0.0
    %1167 = vmatpush.msra.mxu0 %v1143
    %1168 = vmatpush.msra.mxu0 %v1142
    %1169 = vmatpush.msra.mxu0 %v1141
    %1170 = vmatpush.msra.mxu0 %v1140
    %1171 = vmatmul.f32.gmra.mxu0 %v1150
    %v1172 = vpop.f32.mrf.mxu0
    %v1173 = vadd.f32 %v1147, %v1172
    %1174 = vmatmul.f32.gmra.mxu0 %v1153
    %v1175 = vpop.f32.mrf.mxu0
    %v1176 = vadd.f32 %v1147, %v1175
    %1177 = vdwg.mxu0
    %v1178 = vadd.f32 %v830, %v1173
    %v1179 = vadd.f32 %v831, %v1176
    %s1180 = scalar_lea.vmem %s8, 1
    %v1181 = vld [vmem:[%s1180] sm:$0x1]
    %s1182 = scalar_lea.vmem %s9, 1
    %v1183 = vld [vmem:[%s1182] sm:$0x1]
    %v1184 = vsel %vm135, %v1178, 0.0
    %1185 = vadd.xlane.f32.xlu0 %v1184
    %v1186 = vpop.xlane.xlu0 %1185
    %v1187 = vsel %vm135, %v1179, 0.0
    %1188 = vadd.xlane.f32.xlu0 %v1187
    %v1189 = vpop.xlane.xlu0 %1188
    %v1190 = vmul.f32 %v1186, %v148
    %v1191 = vmul.f32 %v1189, %v148
    %v1192 = vsub.f32 %v1178, %v1190
    %v1193 = vsub.f32 %v1179, %v1191
    %v1194 = vmul.f32 %v1192, %v1192
    %v1195 = vmul.f32 %v1193, %v1193
    %v1196 = vsel %vm135, %v1194, 0.0
    %1197 = vadd.xlane.f32.xlu0 %v1196
    %v1198 = vpop.xlane.xlu0 %1197
    %v1199 = vsel %vm135, %v1195, 0.0
    %1200 = vadd.xlane.f32.xlu0 %v1199
    %v1201 = vpop.xlane.xlu0 %1200
    %v1202 = vmul.f32 %v1198, %v148
    %v1203 = vmul.f32 %v1201, %v148
    %v1204 = vadd.f32 %v1202, 1e-12
    %v1205 = vadd.f32 %v1203, 1e-12
    %v1206 = vrsqrt.pop %v1204
    %v1207 = vmul.f32 %v1206, %v1204
    %v1208 = vmul.f32 %v1207, %v1206
    %v1209 = vmul.f32 0.5, %v1208
    %v1210 = vsub.f32 1.5, %v1209
    %v1211 = vmul.f32 %v1206, %v1210
    %vm1212 = vweird.f32 %v1204
    %vm1213 = vweird.f32 %v1206
    %vm1214 = vmor %vm1212, %vm1213
    %v1215 = vsel %vm1214, %v1206, %v1211
    %v1216 = vrsqrt.pop %v1205
    %v1217 = vmul.f32 %v1216, %v1205
    %v1218 = vmul.f32 %v1217, %v1216
    %v1219 = vmul.f32 0.5, %v1218
    %v1220 = vsub.f32 1.5, %v1219
    %v1221 = vmul.f32 %v1216, %v1220
    %vm1222 = vweird.f32 %v1205
    %vm1223 = vweird.f32 %v1216
    %vm1224 = vmor %vm1222, %vm1223
    %v1225 = vsel %vm1224, %v1216, %v1221
    %v1226 = vmul.f32 %v1192, %v1215
    %v1227 = vmul.f32 %v1193, %v1225
    %v1229 = vperm.slane %v1181, 0
    %v1231 = vmul.f32 %v1226, %v1229
    %v1232 = vmul.f32 %v1227, %v1229
    %v1234 = vperm.slane %v1183, 0
    %v1236 = vadd.f32 %v1231, %v1234
    %v1237 = vadd.f32 %v1232, %v1234
    %s1238 = scalar_lea.vmem [#allocation4], 32
    %v1239 = vld [vmem:[%s1238] sm:$0xff]
    %v1240 = vld [vmem:[%s1238 + $0x8] sm:$0xff]
    %v1241 = vld [vmem:[%s1238 + $0x10] sm:$0xff]
    %v1242 = vld [vmem:[%s1238 + $0x18] sm:$0xff]
    %s1243 = scalar_lea.vmem %s11, 1
    %v1244 = vld [vmem:[%s1243] sm:$0x1]
    %v1246 = vperm.slane %v1244, 0
    %v1249 = vsel %vm135, %v1236, 0
    %v1252 = vsel %vm135, %v1237, 0
    %1254 = vmatpush.msra.mxu0 0.0
    %1255 = vmatpush.msra.mxu0 0.0
    %1256 = vmatpush.msra.mxu0 0.0
    %1257 = vmatpush.msra.mxu0 0.0
    %1258 = vmatpush.msra.mxu0 0.0
    %1259 = vmatpush.msra.mxu0 0.0
    %1260 = vmatpush.msra.mxu0 0.0
    %1261 = vmatpush.msra.mxu0 0.0
    %1262 = vmatpush.msra.mxu0 0.0
    %1263 = vmatpush.msra.mxu0 0.0
    %1264 = vmatpush.msra.mxu0 0.0
    %1265 = vmatpush.msra.mxu0 0.0
    %1266 = vmatpush.msra.mxu0 %v1242
    %1267 = vmatpush.msra.mxu0 %v1241
    %1268 = vmatpush.msra.mxu0 %v1240
    %1269 = vmatpush.msra.mxu0 %v1239
    %1270 = vmatmul.f32.gmra.mxu0 %v1249
    %v1271 = vpop.f32.mrf.mxu0
    %v1272 = vadd.f32 %v1246, %v1271
    %1273 = vmatmul.f32.gmra.mxu0 %v1252
    %v1274 = vpop.f32.mrf.mxu0
    %v1275 = vadd.f32 %v1246, %v1274
    %1276 = vdwg.mxu0
    %v1277 = vmul.f32 %v1272, 0.5
    %v1278 = vmul.f32 %v1275, 0.5
    %v1279 = vmul.f32 %v1272, 0.70710677
    %v1280 = vmul.f32 %v1275, 0.70710677
    %v1281 = vand.u32 2147483647, %v1279
    %v1282 = vand.u32 2147483647, %v1280
    %v1283 = vmul.f32 %v1281, 0.3275911
    %v1284 = vmul.f32 %v1282, 0.3275911
    %v1285 = vadd.f32 %v1283, 1.0
    %v1286 = vadd.f32 %v1284, 1.0
    %v1287 = vrcp.pop %v1285
    %v1288 = vmul.f32 %v1285, %v1287
    %v1289 = vsub.f32 1.0, %v1288
    %v1290 = vmul.f32 %v1287, %v1289
    %v1291 = vadd.f32 %v1287, %v1290
    %vm1292 = vweird.f32 %v1285
    %vm1293 = vweird.f32 %v1287
    %vm1294 = vmor %vm1292, %vm1293
    %v1295 = vsel %vm1294, %v1287, %v1291
    %v1296 = vand.u32 2147483647, %v1285
    %vm1297 = vcmp.eq.f32.partialorder %v1296, 8.507059e+37
    %v1298 = vand.u32 %v1285, 2147483648
    %v1299 = vor.u32 1.1754944e-38, %v1298
    %v1300 = vsel %vm1297, %v1299, %v1295
    %v1301 = vmul.f32 1.0, %v1300
    %v1302 = vrcp.pop %v1286
    %v1303 = vmul.f32 %v1286, %v1302
    %v1304 = vsub.f32 1.0, %v1303
    %v1305 = vmul.f32 %v1302, %v1304
    %v1306 = vadd.f32 %v1302, %v1305
    %vm1307 = vweird.f32 %v1286
    %vm1308 = vweird.f32 %v1302
    %vm1309 = vmor %vm1307, %vm1308
    %v1310 = vsel %vm1309, %v1302, %v1306
    %v1311 = vand.u32 2147483647, %v1286
    %vm1312 = vcmp.eq.f32.partialorder %v1311, 8.507059e+37
    %v1313 = vand.u32 %v1286, 2147483648
    %v1314 = vor.u32 1.1754944e-38, %v1313
    %v1315 = vsel %vm1312, %v1314, %v1310
    %v1316 = vmul.f32 1.0, %v1315
    %v1317 = vmul.f32 %v1301, 1.0614054
    %v1318 = vmul.f32 %v1316, 1.0614054
    %v1319 = vadd.f32 %v1317, -1.4531521
    %v1320 = vadd.f32 %v1318, -1.4531521
    %v1321 = vmul.f32 %v1301, %v1319
    %v1322 = vmul.f32 %v1316, %v1320
    %v1323 = vadd.f32 %v1321, 1.4214138
    %v1324 = vadd.f32 %v1322, 1.4214138
    %v1325 = vmul.f32 %v1301, %v1323
    %v1326 = vmul.f32 %v1316, %v1324
    %v1327 = vadd.f32 %v1325, -0.28449672
    %v1328 = vadd.f32 %v1326, -0.28449672
    %v1329 = vmul.f32 %v1301, %v1327
    %v1330 = vmul.f32 %v1316, %v1328
    %v1331 = vadd.f32 %v1329, 0.2548296
    %v1332 = vadd.f32 %v1330, 0.2548296
    %v1333 = vmul.f32 %v1301, %v1331
    %v1334 = vmul.f32 %v1316, %v1332
    %v1335 = vsub.f32 0.0, %v1279
    %v1336 = vsub.f32 0.0, %v1280
    %v1337 = vmul.f32 %v1335, %v1279
    %v1338 = vmul.f32 %v1336, %v1280
    %v1339 = vmul.f32 %v1337, 1.442695
    %v1340 = vpow.pop %v1339
    %v1341 = vmul.f32 %v1338, 1.442695
    %v1342 = vpow.pop %v1341
    %v1343 = vmul.f32 %v1333, %v1340
    %v1344 = vmul.f32 %v1334, %v1342
    %v1345 = vsub.f32 1.0, %v1343
    %v1346 = vsub.f32 1.0, %v1344
    %vm1347 = vcmp.ge.f32.partialorder %v1279, 0.0
    %vm1348 = vcmp.ge.f32.partialorder %v1280, 0.0
    %v1349 = vsub.f32 0.0, %v1345
    %v1350 = vsub.f32 0.0, %v1346
    %v1351 = vsel %vm1347, %v1345, %v1349
    %v1352 = vsel %vm1348, %v1346, %v1350
    %v1353 = vadd.f32 %v1351, 1.0
    %v1354 = vadd.f32 %v1352, 1.0
    %v1355 = vmul.f32 %v1277, %v1353
    %v1356 = vmul.f32 %v1278, %v1354
    %s1357 = scalar_lea.vmem %s12, 64
    %v1358 = vld [vmem:[%s1357] sm:$0xff]
    %v1359 = vld [vmem:[%s1357 + $0x8] sm:$0xff]
    %v1360 = vld [vmem:[%s1357 + $0x10] sm:$0xff]
    %v1361 = vld [vmem:[%s1357 + $0x18] sm:$0xff]
    %v1362 = vld [vmem:[%s1357 + $0x20] sm:$0xff]
    %v1363 = vld [vmem:[%s1357 + $0x28] sm:$0xff]
    %v1364 = vld [vmem:[%s1357 + $0x30] sm:$0xff]
    %v1365 = vld [vmem:[%s1357 + $0x38] sm:$0xff]
    %s1366 = scalar_lea.vmem %s13, 1
    %v1367 = vld [vmem:[%s1366] sm:$0x1]
    %v1369 = vperm.slane %v1367, 0
    %v1372 = vsel %vm744, %v1355, 0
    %v1375 = vsel %vm744, %v1356, 0
    %1377 = vmatpush.msra.mxu0 0.0
    %1378 = vmatpush.msra.mxu0 0.0
    %1379 = vmatpush.msra.mxu0 0.0
    %1380 = vmatpush.msra.mxu0 0.0
    %1381 = vmatpush.msra.mxu0 0.0
    %1382 = vmatpush.msra.mxu0 0.0
    %1383 = vmatpush.msra.mxu0 0.0
    %1384 = vmatpush.msra.mxu0 0.0
    %1385 = vmatpush.msra.mxu0 %v1365
    %1386 = vmatpush.msra.mxu0 %v1364
    %1387 = vmatpush.msra.mxu0 %v1363
    %1388 = vmatpush.msra.mxu0 %v1362
    %1389 = vmatpush.msra.mxu0 %v1361
    %1390 = vmatpush.msra.mxu0 %v1360
    %1391 = vmatpush.msra.mxu0 %v1359
    %1392 = vmatpush.msra.mxu0 %v1358
    %1393 = vmatmul.f32.gmra.mxu0 %v1372
    %v1394 = vpop.f32.mrf.mxu0
    %v1395 = vadd.f32 %v1369, %v1394
    %1396 = vmatmul.f32.gmra.mxu0 %v1375
    %v1397 = vpop.f32.mrf.mxu0
    %v1398 = vadd.f32 %v1369, %v1397
    %1399 = vdwg.mxu0
    %v1400 = vadd.f32 %v1236, %v1395
    %v1401 = vadd.f32 %v1237, %v1398
    %s1402 = scalar_lea.vmem %s14, 1
    %v1403 = vld [vmem:[%s1402] sm:$0x1]
    %s1404 = scalar_lea.vmem %s15, 1
    %v1405 = vld [vmem:[%s1404] sm:$0x1]
    %v1406 = vsel %vm135, %v1400, 0.0
    %1407 = vadd.xlane.f32.xlu0 %v1406
    %v1408 = vpop.xlane.xlu0 %1407
    %v1409 = vsel %vm135, %v1401, 0.0
    %1410 = vadd.xlane.f32.xlu0 %v1409
    %v1411 = vpop.xlane.xlu0 %1410
    %v1412 = vmul.f32 %v1408, %v148
    %v1413 = vmul.f32 %v1411, %v148
    %v1414 = vsub.f32 %v1400, %v1412
    %v1415 = vsub.f32 %v1401, %v1413
    %v1416 = vmul.f32 %v1414, %v1414
    %v1417 = vmul.f32 %v1415, %v1415
    %v1418 = vsel %vm135, %v1416, 0.0
    %1419 = vadd.xlane.f32.xlu0 %v1418
    %v1420 = vpop.xlane.xlu0 %1419
    %v1421 = vsel %vm135, %v1417, 0.0
    %1422 = vadd.xlane.f32.xlu0 %v1421
    %v1423 = vpop.xlane.xlu0 %1422
    %v1424 = vmul.f32 %v1420, %v148
    %v1425 = vmul.f32 %v1423, %v148
    %v1426 = vadd.f32 %v1424, 1e-12
    %v1427 = vadd.f32 %v1425, 1e-12
    %v1428 = vrsqrt.pop %v1426
    %v1429 = vmul.f32 %v1428, %v1426
    %v1430 = vmul.f32 %v1429, %v1428
    %v1431 = vmul.f32 0.5, %v1430
    %v1432 = vsub.f32 1.5, %v1431
    %v1433 = vmul.f32 %v1428, %v1432
    %vm1434 = vweird.f32 %v1426
    %vm1435 = vweird.f32 %v1428
    %vm1436 = vmor %vm1434, %vm1435
    %v1437 = vsel %vm1436, %v1428, %v1433
    %v1438 = vrsqrt.pop %v1427
    %v1439 = vmul.f32 %v1438, %v1427
    %v1440 = vmul.f32 %v1439, %v1438
    %v1441 = vmul.f32 0.5, %v1440
    %v1442 = vsub.f32 1.5, %v1441
    %v1443 = vmul.f32 %v1438, %v1442
    %vm1444 = vweird.f32 %v1427
    %vm1445 = vweird.f32 %v1438
    %vm1446 = vmor %vm1444, %vm1445
    %v1447 = vsel %vm1446, %v1438, %v1443
    %v1448 = vmul.f32 %v1414, %v1437
    %v1449 = vmul.f32 %v1415, %v1447
    %v1451 = vperm.slane %v1403, 0
    %v1453 = vmul.f32 %v1448, %v1451
    %v1454 = vmul.f32 %v1449, %v1451
    %v1456 = vperm.slane %v1405, 0
    %v1458 = vadd.f32 %v1453, %v1456
    %v1459 = vadd.f32 %v1454, %v1456
    %v1460 = vld [vmem:[%s16] sm:$0xff]
    %v1461 = vld [vmem:[%s16 + $0x8] sm:$0xff]
    %v1462 = vld [vmem:[%s16 + $0x10] sm:$0xff]
    %v1463 = vld [vmem:[%s16 + $0x18] sm:$0xff]
    %v1464 = vld [vmem:[%s17] sm:$0x1]
    %v1466 = vperm.slane %v1464, 0
    %v1469 = vsel %vm135, %v1458, 0
    %v1472 = vsel %vm135, %v1459, 0
    %1474 = vmatpush.msra.mxu0 0.0
    %1475 = vmatpush.msra.mxu0 0.0
    %1476 = vmatpush.msra.mxu0 0.0
    %1477 = vmatpush.msra.mxu0 0.0
    %1478 = vmatpush.msra.mxu0 0.0
    %1479 = vmatpush.msra.mxu0 0.0
    %1480 = vmatpush.msra.mxu0 0.0
    %1481 = vmatpush.msra.mxu0 0.0
    %1482 = vmatpush.msra.mxu0 0.0
    %1483 = vmatpush.msra.mxu0 0.0
    %1484 = vmatpush.msra.mxu0 0.0
    %1485 = vmatpush.msra.mxu0 0.0
    %1486 = vmatpush.msra.mxu0 %v1463
    %1487 = vmatpush.msra.mxu0 %v1462
    %1488 = vmatpush.msra.mxu0 %v1461
    %1489 = vmatpush.msra.mxu0 %v1460
    %1490 = vmatmul.f32.gmra.mxu0 %v1469
    %v1491 = vpop.f32.mrf.mxu0
    %v1492 = vadd.f32 %v1466, %v1491
    %1493 = vmatmul.f32.gmra.mxu0 %v1472
    %v1494 = vpop.f32.mrf.mxu0
    %v1495 = vadd.f32 %v1466, %v1494
    %1496 = vdwg.mxu0
    %v1497 = vld [vmem:[#allocation6] sm:$0xff]
    %v1498 = vld [vmem:[#allocation6 + $0x8] sm:$0xff]
    %v1499 = vld [vmem:[#allocation6 + $0x10] sm:$0xff]
    %v1500 = vld [vmem:[#allocation6 + $0x18] sm:$0xff]
    %v1503 = vrot.slane %v1492, 7
    %v1504 = vrot.slane %v1495, 7
    %1505 = vrot.lane.b32.xlu0 %v1503, 64
    %v1506 = vpop.permute.xlu0 %1505
    %1507 = vrot.lane.b32.xlu0 %v1504, 64
    %v1508 = vpop.permute.xlu0 %1507
    %v1512 = vsel %vm258, 0.0, 0
    %1514 = vmatpush.msra.mxu0 0.0
    %1515 = vmatpush.msra.mxu0 0.0
    %1516 = vmatpush.msra.mxu0 0.0
    %1517 = vmatpush.msra.mxu0 0.0
    %1518 = vmatpush.msra.mxu0 0.0
    %1519 = vmatpush.msra.mxu0 0.0
    %1520 = vmatpush.msra.mxu0 0.0
    %1521 = vmatpush.msra.mxu0 0.0
    %1522 = vmatpush.msra.mxu0 0.0
    %1523 = vmatpush.msra.mxu0 0.0
    %1524 = vmatpush.msra.mxu0 0.0
    %1525 = vmatpush.msra.mxu0 0.0
    %1526 = vmatpush.msra.mxu0 0.0
    %1527 = vmatpush.msra.mxu0 0.0
    %1528 = vmatpush.msra.mxu0 %v1498
    %1529 = vmatpush.msra.mxu0 %v1497
    %1530 = vmatmul.f32.gmra.mxu0 %v1512
    %v1531 = vpop.f32.mrf.mxu0
    %v1532 = vadd.f32 0.0, %v1531
    %1533 = vdwg.mxu0
    %1534 = vmatpush.msra.mxu0 0.0
    %1535 = vmatpush.msra.mxu0 0.0
    %1536 = vmatpush.msra.mxu0 0.0
    %1537 = vmatpush.msra.mxu0 0.0
    %1538 = vmatpush.msra.mxu0 0.0
    %1539 = vmatpush.msra.mxu0 0.0
    %1540 = vmatpush.msra.mxu0 0.0
    %1541 = vmatpush.msra.mxu0 0.0
    %1542 = vmatpush.msra.mxu0 0.0
    %1543 = vmatpush.msra.mxu0 0.0
    %1544 = vmatpush.msra.mxu0 0.0
    %1545 = vmatpush.msra.mxu0 0.0
    %1546 = vmatpush.msra.mxu0 0.0
    %1547 = vmatpush.msra.mxu0 0.0
    %1548 = vmatpush.msra.mxu0 %v1500
    %1549 = vmatpush.msra.mxu0 %v1499
    %1550 = vmatmul.f32.gmra.mxu0 %v1512
    %v1551 = vpop.f32.mrf.mxu0
    %v1552 = vadd.f32 0.0, %v1551
    %1553 = vdwg.mxu0
    %v1556 = vrot.slane %v1532, 1
    %v1557 = vrot.slane %v1552, 1
    %v1562 = vadd.f32 %v1492, %v1532
    %v1563 = vadd.f32 %v1495, %v1556
    %v1564 = vadd.f32 %v1506, %v1552
    %v1565 = vadd.f32 %v1508, %v1557
    %v1566 = vsub.f32 0.0, %v1562
    %v1567 = vsub.f32 0.0, %v1563
    %v1568 = vsub.f32 0.0, %v1564
    %v1569 = vsub.f32 0.0, %v1565
    %v1570 = vmul.f32 %v1566, 1.442695
    %v1571 = vpow.pop %v1570
    %v1572 = vmul.f32 %v1567, 1.442695
    %v1573 = vpow.pop %v1572
    %v1574 = vmul.f32 %v1568, 1.442695
    %v1575 = vpow.pop %v1574
    %v1576 = vmul.f32 %v1569, 1.442695
    %v1577 = vpow.pop %v1576
    %v1578 = vadd.f32 %v1571, 1.0
    %v1579 = vadd.f32 %v1573, 1.0
    %v1580 = vadd.f32 %v1575, 1.0
    %v1581 = vadd.f32 %v1577, 1.0
    %v1582 = vrcp.pop %v1578
    %v1583 = vmul.f32 %v1578, %v1582
    %v1584 = vsub.f32 1.0, %v1583
    %v1585 = vmul.f32 %v1582, %v1584
    %v1586 = vadd.f32 %v1582, %v1585
    %vm1587 = vweird.f32 %v1578
    %vm1588 = vweird.f32 %v1582
    %vm1589 = vmor %vm1587, %vm1588
    %v1590 = vsel %vm1589, %v1582, %v1586
    %v1591 = vand.u32 2147483647, %v1578
    %vm1592 = vcmp.eq.f32.partialorder %v1591, 8.507059e+37
    %v1593 = vand.u32 %v1578, 2147483648
    %v1594 = vor.u32 1.1754944e-38, %v1593
    %v1595 = vsel %vm1592, %v1594, %v1590
    %v1596 = vmul.f32 1.0, %v1595
    %v1597 = vrcp.pop %v1579
    %v1598 = vmul.f32 %v1579, %v1597
    %v1599 = vsub.f32 1.0, %v1598
    %v1600 = vmul.f32 %v1597, %v1599
    %v1601 = vadd.f32 %v1597, %v1600
    %vm1602 = vweird.f32 %v1579
    %vm1603 = vweird.f32 %v1597
    %vm1604 = vmor %vm1602, %vm1603
    %v1605 = vsel %vm1604, %v1597, %v1601
    %v1606 = vand.u32 2147483647, %v1579
    %vm1607 = vcmp.eq.f32.partialorder %v1606, 8.507059e+37
    %v1608 = vand.u32 %v1579, 2147483648
    %v1609 = vor.u32 1.1754944e-38, %v1608
    %v1610 = vsel %vm1607, %v1609, %v1605
    %v1611 = vmul.f32 1.0, %v1610
    %v1612 = vrcp.pop %v1580
    %v1613 = vmul.f32 %v1580, %v1612
    %v1614 = vsub.f32 1.0, %v1613
    %v1615 = vmul.f32 %v1612, %v1614
    %v1616 = vadd.f32 %v1612, %v1615
    %vm1617 = vweird.f32 %v1580
    %vm1618 = vweird.f32 %v1612
    %vm1619 = vmor %vm1617, %vm1618
    %v1620 = vsel %vm1619, %v1612, %v1616
    %v1621 = vand.u32 2147483647, %v1580
    %vm1622 = vcmp.eq.f32.partialorder %v1621, 8.507059e+37
    %v1623 = vand.u32 %v1580, 2147483648
    %v1624 = vor.u32 1.1754944e-38, %v1623
    %v1625 = vsel %vm1622, %v1624, %v1620
    %v1626 = vmul.f32 1.0, %v1625
    %v1627 = vrcp.pop %v1581
    %v1628 = vmul.f32 %v1581, %v1627
    %v1629 = vsub.f32 1.0, %v1628
    %v1630 = vmul.f32 %v1627, %v1629
    %v1631 = vadd.f32 %v1627, %v1630
    %vm1632 = vweird.f32 %v1581
    %vm1633 = vweird.f32 %v1627
    %vm1634 = vmor %vm1632, %vm1633
    %v1635 = vsel %vm1634, %v1627, %v1631
    %v1636 = vand.u32 2147483647, %v1581
    %vm1637 = vcmp.eq.f32.partialorder %v1636, 8.507059e+37
    %v1638 = vand.u32 %v1581, 2147483648
    %v1639 = vor.u32 1.1754944e-38, %v1638
    %v1640 = vsel %vm1637, %v1639, %v1635
    %v1641 = vmul.f32 1.0, %v1640
    %v1642 = vtanh.pop %v1562
    %v1643 = vtanh.pop %v1563
    %v1644 = vtanh.pop %v1564
    %v1645 = vtanh.pop %v1565
    %v1646 = vmul.f32 %v1596, 0.0
    %v1647 = vmul.f32 %v1611, 0.0
    %v1648 = vmul.f32 %v1626, 0.0
    %v1649 = vmul.f32 %v1641, 0.0
    %1654 = vrot.lane.b32.xlu0 %v1642, 96
    %v1655 = vpop.permute.xlu0 %1654
    %1656 = vrot.lane.b32.xlu0 %v1643, 96
    %v1657 = vpop.permute.xlu0 %1656
    %1658 = vrot.lane.b32.xlu0 %v1644, 96
    %v1659 = vpop.permute.xlu0 %1658
    %1660 = vrot.lane.b32.xlu0 %v1645, 96
    %v1661 = vpop.permute.xlu0 %1660
    %v1666 = vmul.f32 %v1596, %v1655
    %v1667 = vmul.f32 %v1611, %v1657
    %v1668 = vmul.f32 %v1626, %v1659
    %v1669 = vmul.f32 %v1641, %v1661
    %1674 = vrot.lane.b32.xlu0 %v1666, 16
    %v1675 = vpop.permute.xlu0 %1674
    %1676 = vrot.lane.b32.xlu0 %v1667, 16
    %v1677 = vpop.permute.xlu0 %1676
    %1678 = vrot.lane.b32.xlu0 %v1668, 16
    %v1679 = vpop.permute.xlu0 %1678
    %1680 = vrot.lane.b32.xlu0 %v1669, 16
    %v1681 = vpop.permute.xlu0 %1680
    %v1686 = vadd.f32 %v1646, %v1675
    %v1687 = vadd.f32 %v1647, %v1677
    %v1688 = vadd.f32 %v1648, %v1679
    %v1689 = vadd.f32 %v1649, %v1681
    %v1690 = vtanh.pop %v1686
    %v1691 = vtanh.pop %v1687
    %v1692 = vtanh.pop %v1688
    %v1693 = vtanh.pop %v1689
    %1698 = vrot.lane.b32.xlu0 %v1690, 32
    %v1699 = vpop.permute.xlu0 %1698
    %1700 = vrot.lane.b32.xlu0 %v1691, 32
    %v1701 = vpop.permute.xlu0 %1700
    %1702 = vrot.lane.b32.xlu0 %v1692, 32
    %v1703 = vpop.permute.xlu0 %1702
    %1704 = vrot.lane.b32.xlu0 %v1693, 32
    %v1705 = vpop.permute.xlu0 %1704
    %v1710 = vmul.f32 %v1596, %v1699
    %v1711 = vmul.f32 %v1611, %v1701
    %v1712 = vmul.f32 %v1626, %v1703
    %v1713 = vmul.f32 %v1641, %v1705
    %v1714 = vrot.slane %v1492, 5
    %v1715 = vrot.slane %v1495, 5
    %1716 = vrot.lane.b32.xlu0 %v1714, 64
    %v1717 = vpop.permute.xlu0 %1716
    %1718 = vrot.lane.b32.xlu0 %v1715, 64
    %v1719 = vpop.permute.xlu0 %1718
    %v1724 = vrot.slane %v1711, 7
    %vm1725 = vcmask 1041409
    %v1726 = vsel %vm1725, %v1724, %v1710
    %1727 = vrot.lane.b32.xlu0 %v1726, 80
    %v1728 = vpop.permute.xlu0 %1727
    %v1729 = vsel %vm258, %v1728, 0
    %1731 = vmatpush.msra.mxu0 0.0
    %1732 = vmatpush.msra.mxu0 0.0
    %1733 = vmatpush.msra.mxu0 0.0
    %1734 = vmatpush.msra.mxu0 0.0
    %1735 = vmatpush.msra.mxu0 0.0
    %1736 = vmatpush.msra.mxu0 0.0
    %1737 = vmatpush.msra.mxu0 0.0
    %1738 = vmatpush.msra.mxu0 0.0
    %1739 = vmatpush.msra.mxu0 0.0
    %1740 = vmatpush.msra.mxu0 0.0
    %1741 = vmatpush.msra.mxu0 0.0
    %1742 = vmatpush.msra.mxu0 0.0
    %1743 = vmatpush.msra.mxu0 0.0
    %1744 = vmatpush.msra.mxu0 0.0
    %1745 = vmatpush.msra.mxu0 %v1498
    %1746 = vmatpush.msra.mxu0 %v1497
    %1747 = vmatmul.f32.gmra.mxu0 %v1729
    %v1748 = vpop.f32.mrf.mxu0
    %v1749 = vadd.f32 0.0, %v1748
    %1750 = vdwg.mxu0
    %v1753 = vrot.slane %v1713, 7
    %v1754 = vsel %vm1725, %v1753, %v1712
    %1755 = vrot.lane.b32.xlu0 %v1754, 80
    %v1756 = vpop.permute.xlu0 %1755
    %v1757 = vsel %vm258, %v1756, 0
    %1759 = vmatpush.msra.mxu0 0.0
    %1760 = vmatpush.msra.mxu0 0.0
    %1761 = vmatpush.msra.mxu0 0.0
    %1762 = vmatpush.msra.mxu0 0.0
    %1763 = vmatpush.msra.mxu0 0.0
    %1764 = vmatpush.msra.mxu0 0.0
    %1765 = vmatpush.msra.mxu0 0.0
    %1766 = vmatpush.msra.mxu0 0.0
    %1767 = vmatpush.msra.mxu0 0.0
    %1768 = vmatpush.msra.mxu0 0.0
    %1769 = vmatpush.msra.mxu0 0.0
    %1770 = vmatpush.msra.mxu0 0.0
    %1771 = vmatpush.msra.mxu0 0.0
    %1772 = vmatpush.msra.mxu0 0.0
    %1773 = vmatpush.msra.mxu0 %v1500
    %1774 = vmatpush.msra.mxu0 %v1499
    %1775 = vmatmul.f32.gmra.mxu0 %v1757
    %v1776 = vpop.f32.mrf.mxu0
    %v1777 = vadd.f32 0.0, %v1776
    %1778 = vdwg.mxu0
    %v1781 = vrot.slane %v1749, 7
    %v1782 = vrot.slane %v1777, 7
    %v1787 = vadd.f32 %v1492, %v1781
    %v1788 = vadd.f32 %v1495, %v1749
    %v1789 = vadd.f32 %v1717, %v1782
    %v1790 = vadd.f32 %v1719, %v1777
    %v1791 = vsub.f32 0.0, %v1787
    %v1792 = vsub.f32 0.0, %v1788
    %v1793 = vsub.f32 0.0, %v1789
    %v1794 = vsub.f32 0.0, %v1790
    %v1795 = vmul.f32 %v1791, 1.442695
    %v1796 = vpow.pop %v1795
    %v1797 = vmul.f32 %v1792, 1.442695
    %v1798 = vpow.pop %v1797
    %v1799 = vmul.f32 %v1793, 1.442695
    %v1800 = vpow.pop %v1799
    %v1801 = vmul.f32 %v1794, 1.442695
    %v1802 = vpow.pop %v1801
    %v1803 = vadd.f32 %v1796, 1.0
    %v1804 = vadd.f32 %v1798, 1.0
    %v1805 = vadd.f32 %v1800, 1.0
    %v1806 = vadd.f32 %v1802, 1.0
    %v1807 = vrcp.pop %v1803
    %v1808 = vmul.f32 %v1803, %v1807
    %v1809 = vsub.f32 1.0, %v1808
    %v1810 = vmul.f32 %v1807, %v1809
    %v1811 = vadd.f32 %v1807, %v1810
    %vm1812 = vweird.f32 %v1803
    %vm1813 = vweird.f32 %v1807
    %vm1814 = vmor %vm1812, %vm1813
    %v1815 = vsel %vm1814, %v1807, %v1811
    %v1816 = vand.u32 2147483647, %v1803
    %vm1817 = vcmp.eq.f32.partialorder %v1816, 8.507059e+37
    %v1818 = vand.u32 %v1803, 2147483648
    %v1819 = vor.u32 1.1754944e-38, %v1818
    %v1820 = vsel %vm1817, %v1819, %v1815
    %v1821 = vmul.f32 1.0, %v1820
    %v1822 = vrcp.pop %v1804
    %v1823 = vmul.f32 %v1804, %v1822
    %v1824 = vsub.f32 1.0, %v1823
    %v1825 = vmul.f32 %v1822, %v1824
    %v1826 = vadd.f32 %v1822, %v1825
    %vm1827 = vweird.f32 %v1804
    %vm1828 = vweird.f32 %v1822
    %vm1829 = vmor %vm1827, %vm1828
    %v1830 = vsel %vm1829, %v1822, %v1826
    %v1831 = vand.u32 2147483647, %v1804
    %vm1832 = vcmp.eq.f32.partialorder %v1831, 8.507059e+37
    %v1833 = vand.u32 %v1804, 2147483648
    %v1834 = vor.u32 1.1754944e-38, %v1833
    %v1835 = vsel %vm1832, %v1834, %v1830
    %v1836 = vmul.f32 1.0, %v1835
    %v1837 = vrcp.pop %v1805
    %v1838 = vmul.f32 %v1805, %v1837
    %v1839 = vsub.f32 1.0, %v1838
    %v1840 = vmul.f32 %v1837, %v1839
    %v1841 = vadd.f32 %v1837, %v1840
    %vm1842 = vweird.f32 %v1805
    %vm1843 = vweird.f32 %v1837
    %vm1844 = vmor %vm1842, %vm1843
    %v1845 = vsel %vm1844, %v1837, %v1841
    %v1846 = vand.u32 2147483647, %v1805
    %vm1847 = vcmp.eq.f32.partialorder %v1846, 8.507059e+37
    %v1848 = vand.u32 %v1805, 2147483648
    %v1849 = vor.u32 1.1754944e-38, %v1848
    %v1850 = vsel %vm1847, %v1849, %v1845
    %v1851 = vmul.f32 1.0, %v1850
    %v1852 = vrcp.pop %v1806
    %v1853 = vmul.f32 %v1806, %v1852
    %v1854 = vsub.f32 1.0, %v1853
    %v1855 = vmul.f32 %v1852, %v1854
    %v1856 = vadd.f32 %v1852, %v1855
    %vm1857 = vweird.f32 %v1806
    %vm1858 = vweird.f32 %v1852
    %vm1859 = vmor %vm1857, %vm1858
    %v1860 = vsel %vm1859, %v1852, %v1856
    %v1861 = vand.u32 2147483647, %v1806
    %vm1862 = vcmp.eq.f32.partialorder %v1861, 8.507059e+37
    %v1863 = vand.u32 %v1806, 2147483648
    %v1864 = vor.u32 1.1754944e-38, %v1863
    %v1865 = vsel %vm1862, %v1864, %v1860
    %v1866 = vmul.f32 1.0, %v1865
    %v1867 = vtanh.pop %v1787
    %v1868 = vtanh.pop %v1788
    %v1869 = vtanh.pop %v1789
    %v1870 = vtanh.pop %v1790
    %v1875 = vrot.slane %v1686, 7
    %v1876 = vrot.slane %v1687, 7
    %v1877 = vrot.slane %v1688, 7
    %v1878 = vrot.slane %v1689, 7
    %v1883 = vmul.f32 %v1821, %v1875
    %v1884 = vmul.f32 %v1836, %v1876
    %v1885 = vmul.f32 %v1851, %v1877
    %v1886 = vmul.f32 %v1866, %v1878
    %1891 = vrot.lane.b32.xlu0 %v1867, 96
    %v1892 = vpop.permute.xlu0 %1891
    %1893 = vrot.lane.b32.xlu0 %v1868, 96
    %v1894 = vpop.permute.xlu0 %1893
    %1895 = vrot.lane.b32.xlu0 %v1869, 96
    %v1896 = vpop.permute.xlu0 %1895
    %1897 = vrot.lane.b32.xlu0 %v1870, 96
    %v1898 = vpop.permute.xlu0 %1897
    %v1903 = vmul.f32 %v1821, %v1892
    %v1904 = vmul.f32 %v1836, %v1894
    %v1905 = vmul.f32 %v1851, %v1896
    %v1906 = vmul.f32 %v1866, %v1898
    %1911 = vrot.lane.b32.xlu0 %v1903, 16
    %v1912 = vpop.permute.xlu0 %1911
    %1913 = vrot.lane.b32.xlu0 %v1904, 16
    %v1914 = vpop.permute.xlu0 %1913
    %1915 = vrot.lane.b32.xlu0 %v1905, 16
    %v1916 = vpop.permute.xlu0 %1915
    %1917 = vrot.lane.b32.xlu0 %v1906, 16
    %v1918 = vpop.permute.xlu0 %1917
    %v1923 = vadd.f32 %v1883, %v1912
    %v1924 = vadd.f32 %v1884, %v1914
    %v1925 = vadd.f32 %v1885, %v1916
    %v1926 = vadd.f32 %v1886, %v1918
    %v1927 = vtanh.pop %v1923
    %v1928 = vtanh.pop %v1924
    %v1929 = vtanh.pop %v1925
    %v1930 = vtanh.pop %v1926
    %1935 = vrot.lane.b32.xlu0 %v1927, 32
    %v1936 = vpop.permute.xlu0 %1935
    %1937 = vrot.lane.b32.xlu0 %v1928, 32
    %v1938 = vpop.permute.xlu0 %1937
    %1939 = vrot.lane.b32.xlu0 %v1929, 32
    %v1940 = vpop.permute.xlu0 %1939
    %1941 = vrot.lane.b32.xlu0 %v1930, 32
    %v1942 = vpop.permute.xlu0 %1941
    %v1947 = vmul.f32 %v1821, %v1936
    %v1948 = vmul.f32 %v1836, %v1938
    %v1949 = vmul.f32 %v1851, %v1940
    %v1950 = vmul.f32 %v1866, %v1942
    %v1951 = vrot.slane %v1492, 3
    %v1952 = vrot.slane %v1495, 3
    %1953 = vrot.lane.b32.xlu0 %v1951, 64
    %v1954 = vpop.permute.xlu0 %1953
    %1955 = vrot.lane.b32.xlu0 %v1952, 64
    %v1956 = vpop.permute.xlu0 %1955
    %v1961 = vrot.slane %v1947, 1
    %v1962 = vsel %vm1725, %v1948, %v1961
    %1963 = vrot.lane.b32.xlu0 %v1962, 80
    %v1964 = vpop.permute.xlu0 %1963
    %v1965 = vsel %vm258, %v1964, 0
    %1967 = vmatpush.msra.mxu0 0.0
    %1968 = vmatpush.msra.mxu0 0.0
    %1969 = vmatpush.msra.mxu0 0.0
    %1970 = vmatpush.msra.mxu0 0.0
    %1971 = vmatpush.msra.mxu0 0.0
    %1972 = vmatpush.msra.mxu0 0.0
    %1973 = vmatpush.msra.mxu0 0.0
    %1974 = vmatpush.msra.mxu0 0.0
    %1975 = vmatpush.msra.mxu0 0.0
    %1976 = vmatpush.msra.mxu0 0.0
    %1977 = vmatpush.msra.mxu0 0.0
    %1978 = vmatpush.msra.mxu0 0.0
    %1979 = vmatpush.msra.mxu0 0.0
    %1980 = vmatpush.msra.mxu0 0.0
    %1981 = vmatpush.msra.mxu0 %v1498
    %1982 = vmatpush.msra.mxu0 %v1497
    %1983 = vmatmul.f32.gmra.mxu0 %v1965
    %v1984 = vpop.f32.mrf.mxu0
    %v1985 = vadd.f32 0.0, %v1984
    %1986 = vdwg.mxu0
    %v1989 = vrot.slane %v1949, 1
    %v1990 = vsel %vm1725, %v1950, %v1989
    %1991 = vrot.lane.b32.xlu0 %v1990, 80
    %v1992 = vpop.permute.xlu0 %1991
    %v1993 = vsel %vm258, %v1992, 0
    %1995 = vmatpush.msra.mxu0 0.0
    %1996 = vmatpush.msra.mxu0 0.0
    %1997 = vmatpush.msra.mxu0 0.0
    %1998 = vmatpush.msra.mxu0 0.0
    %1999 = vmatpush.msra.mxu0 0.0
    %2000 = vmatpush.msra.mxu0 0.0
    %2001 = vmatpush.msra.mxu0 0.0
    %2002 = vmatpush.msra.mxu0 0.0
    %2003 = vmatpush.msra.mxu0 0.0
    %2004 = vmatpush.msra.mxu0 0.0
    %2005 = vmatpush.msra.mxu0 0.0
    %2006 = vmatpush.msra.mxu0 0.0
    %2007 = vmatpush.msra.mxu0 0.0
    %2008 = vmatpush.msra.mxu0 0.0
    %2009 = vmatpush.msra.mxu0 %v1500
    %2010 = vmatpush.msra.mxu0 %v1499
    %2011 = vmatmul.f32.gmra.mxu0 %v1993
    %v2012 = vpop.f32.mrf.mxu0
    %v2013 = vadd.f32 0.0, %v2012
    %2014 = vdwg.mxu0
    %v2017 = vrot.slane %v1985, 6
    %v2018 = vrot.slane %v1985, 7
    %v2019 = vrot.slane %v2013, 6
    %v2020 = vrot.slane %v2013, 7
    %v2025 = vadd.f32 %v1492, %v2017
    %v2026 = vadd.f32 %v1495, %v2018
    %v2027 = vadd.f32 %v1954, %v2019
    %v2028 = vadd.f32 %v1956, %v2020
    %v2029 = vsub.f32 0.0, %v2025
    %v2030 = vsub.f32 0.0, %v2026
    %v2031 = vsub.f32 0.0, %v2027
    %v2032 = vsub.f32 0.0, %v2028
    %v2033 = vmul.f32 %v2029, 1.442695
    %v2034 = vpow.pop %v2033
    %v2035 = vmul.f32 %v2030, 1.442695
    %v2036 = vpow.pop %v2035
    %v2037 = vmul.f32 %v2031, 1.442695
    %v2038 = vpow.pop %v2037
    %v2039 = vmul.f32 %v2032, 1.442695
    %v2040 = vpow.pop %v2039
    %v2041 = vadd.f32 %v2034, 1.0
    %v2042 = vadd.f32 %v2036, 1.0
    %v2043 = vadd.f32 %v2038, 1.0
    %v2044 = vadd.f32 %v2040, 1.0
    %v2045 = vrcp.pop %v2041
    %v2046 = vmul.f32 %v2041, %v2045
    %v2047 = vsub.f32 1.0, %v2046
    %v2048 = vmul.f32 %v2045, %v2047
    %v2049 = vadd.f32 %v2045, %v2048
    %vm2050 = vweird.f32 %v2041
    %vm2051 = vweird.f32 %v2045
    %vm2052 = vmor %vm2050, %vm2051
    %v2053 = vsel %vm2052, %v2045, %v2049
    %v2054 = vand.u32 2147483647, %v2041
    %vm2055 = vcmp.eq.f32.partialorder %v2054, 8.507059e+37
    %v2056 = vand.u32 %v2041, 2147483648
    %v2057 = vor.u32 1.1754944e-38, %v2056
    %v2058 = vsel %vm2055, %v2057, %v2053
    %v2059 = vmul.f32 1.0, %v2058
    %v2060 = vrcp.pop %v2042
    %v2061 = vmul.f32 %v2042, %v2060
    %v2062 = vsub.f32 1.0, %v2061
    %v2063 = vmul.f32 %v2060, %v2062
    %v2064 = vadd.f32 %v2060, %v2063
    %vm2065 = vweird.f32 %v2042
    %vm2066 = vweird.f32 %v2060
    %vm2067 = vmor %vm2065, %vm2066
    %v2068 = vsel %vm2067, %v2060, %v2064
    %v2069 = vand.u32 2147483647, %v2042
    %vm2070 = vcmp.eq.f32.partialorder %v2069, 8.507059e+37
    %v2071 = vand.u32 %v2042, 2147483648
    %v2072 = vor.u32 1.1754944e-38, %v2071
    %v2073 = vsel %vm2070, %v2072, %v2068
    %v2074 = vmul.f32 1.0, %v2073
    %v2075 = vrcp.pop %v2043
    %v2076 = vmul.f32 %v2043, %v2075
    %v2077 = vsub.f32 1.0, %v2076
    %v2078 = vmul.f32 %v2075, %v2077
    %v2079 = vadd.f32 %v2075, %v2078
    %vm2080 = vweird.f32 %v2043
    %vm2081 = vweird.f32 %v2075
    %vm2082 = vmor %vm2080, %vm2081
    %v2083 = vsel %vm2082, %v2075, %v2079
    %v2084 = vand.u32 2147483647, %v2043
    %vm2085 = vcmp.eq.f32.partialorder %v2084, 8.507059e+37
    %v2086 = vand.u32 %v2043, 2147483648
    %v2087 = vor.u32 1.1754944e-38, %v2086
    %v2088 = vsel %vm2085, %v2087, %v2083
    %v2089 = vmul.f32 1.0, %v2088
    %v2090 = vrcp.pop %v2044
    %v2091 = vmul.f32 %v2044, %v2090
    %v2092 = vsub.f32 1.0, %v2091
    %v2093 = vmul.f32 %v2090, %v2092
    %v2094 = vadd.f32 %v2090, %v2093
    %vm2095 = vweird.f32 %v2044
    %vm2096 = vweird.f32 %v2090
    %vm2097 = vmor %vm2095, %vm2096
    %v2098 = vsel %vm2097, %v2090, %v2094
    %v2099 = vand.u32 2147483647, %v2044
    %vm2100 = vcmp.eq.f32.partialorder %v2099, 8.507059e+37
    %v2101 = vand.u32 %v2044, 2147483648
    %v2102 = vor.u32 1.1754944e-38, %v2101
    %v2103 = vsel %vm2100, %v2102, %v2098
    %v2104 = vmul.f32 1.0, %v2103
    %v2105 = vtanh.pop %v2025
    %v2106 = vtanh.pop %v2026
    %v2107 = vtanh.pop %v2027
    %v2108 = vtanh.pop %v2028
    %v2113 = vrot.slane %v1923, 7
    %v2114 = vrot.slane %v1924, 7
    %v2115 = vrot.slane %v1925, 7
    %v2116 = vrot.slane %v1926, 7
    %v2121 = vmul.f32 %v2059, %v2113
    %v2122 = vmul.f32 %v2074, %v2114
    %v2123 = vmul.f32 %v2089, %v2115
    %v2124 = vmul.f32 %v2104, %v2116
    %2129 = vrot.lane.b32.xlu0 %v2105, 96
    %v2130 = vpop.permute.xlu0 %2129
    %2131 = vrot.lane.b32.xlu0 %v2106, 96
    %v2132 = vpop.permute.xlu0 %2131
    %2133 = vrot.lane.b32.xlu0 %v2107, 96
    %v2134 = vpop.permute.xlu0 %2133
    %2135 = vrot.lane.b32.xlu0 %v2108, 96
    %v2136 = vpop.permute.xlu0 %2135
    %v2141 = vmul.f32 %v2059, %v2130
    %v2142 = vmul.f32 %v2074, %v2132
    %v2143 = vmul.f32 %v2089, %v2134
    %v2144 = vmul.f32 %v2104, %v2136
    %2149 = vrot.lane.b32.xlu0 %v2141, 16
    %v2150 = vpop.permute.xlu0 %2149
    %2151 = vrot.lane.b32.xlu0 %v2142, 16
    %v2152 = vpop.permute.xlu0 %2151
    %2153 = vrot.lane.b32.xlu0 %v2143, 16
    %v2154 = vpop.permute.xlu0 %2153
    %2155 = vrot.lane.b32.xlu0 %v2144, 16
    %v2156 = vpop.permute.xlu0 %2155
    %v2161 = vadd.f32 %v2121, %v2150
    %v2162 = vadd.f32 %v2122, %v2152
    %v2163 = vadd.f32 %v2123, %v2154
    %v2164 = vadd.f32 %v2124, %v2156
    %v2165 = vtanh.pop %v2161
    %v2166 = vtanh.pop %v2162
    %v2167 = vtanh.pop %v2163
    %v2168 = vtanh.pop %v2164
    %2173 = vrot.lane.b32.xlu0 %v2165, 32
    %v2174 = vpop.permute.xlu0 %2173
    %2175 = vrot.lane.b32.xlu0 %v2166, 32
    %v2176 = vpop.permute.xlu0 %2175
    %2177 = vrot.lane.b32.xlu0 %v2167, 32
    %v2178 = vpop.permute.xlu0 %2177
    %2179 = vrot.lane.b32.xlu0 %v2168, 32
    %v2180 = vpop.permute.xlu0 %2179
    %v2185 = vmul.f32 %v2059, %v2174
    %v2186 = vmul.f32 %v2074, %v2176
    %v2187 = vmul.f32 %v2089, %v2178
    %v2188 = vmul.f32 %v2104, %v2180
    %v2189 = vrot.slane %v1492, 1
    %v2190 = vrot.slane %v1495, 1
    %2191 = vrot.lane.b32.xlu0 %v2189, 64
    %v2192 = vpop.permute.xlu0 %2191
    %2193 = vrot.lane.b32.xlu0 %v2190, 64
    %v2194 = vpop.permute.xlu0 %2193
    %v2199 = vrot.slane %v2185, 2
    %v2200 = vrot.slane %v2186, 1
    %v2201 = vsel %vm1725, %v2200, %v2199
    %2202 = vrot.lane.b32.xlu0 %v2201, 80
    %v2203 = vpop.permute.xlu0 %2202
    %v2204 = vsel %vm258, %v2203, 0
    %2206 = vmatpush.msra.mxu0 0.0
    %2207 = vmatpush.msra.mxu0 0.0
    %2208 = vmatpush.msra.mxu0 0.0
    %2209 = vmatpush.msra.mxu0 0.0
    %2210 = vmatpush.msra.mxu0 0.0
    %2211 = vmatpush.msra.mxu0 0.0
    %2212 = vmatpush.msra.mxu0 0.0
    %2213 = vmatpush.msra.mxu0 0.0
    %2214 = vmatpush.msra.mxu0 0.0
    %2215 = vmatpush.msra.mxu0 0.0
    %2216 = vmatpush.msra.mxu0 0.0
    %2217 = vmatpush.msra.mxu0 0.0
    %2218 = vmatpush.msra.mxu0 0.0
    %2219 = vmatpush.msra.mxu0 0.0
    %2220 = vmatpush.msra.mxu0 %v1498
    %2221 = vmatpush.msra.mxu0 %v1497
    %2222 = vmatmul.f32.gmra.mxu0 %v2204
    %v2223 = vpop.f32.mrf.mxu0
    %v2224 = vadd.f32 0.0, %v2223
    %2225 = vdwg.mxu0
    %v2228 = vrot.slane %v2187, 2
    %v2229 = vrot.slane %v2188, 1
    %v2230 = vsel %vm1725, %v2229, %v2228
    %2231 = vrot.lane.b32.xlu0 %v2230, 80
    %v2232 = vpop.permute.xlu0 %2231
    %v2233 = vsel %vm258, %v2232, 0
    %2235 = vmatpush.msra.mxu0 0.0
    %2236 = vmatpush.msra.mxu0 0.0
    %2237 = vmatpush.msra.mxu0 0.0
    %2238 = vmatpush.msra.mxu0 0.0
    %2239 = vmatpush.msra.mxu0 0.0
    %2240 = vmatpush.msra.mxu0 0.0
    %2241 = vmatpush.msra.mxu0 0.0
    %2242 = vmatpush.msra.mxu0 0.0
    %2243 = vmatpush.msra.mxu0 0.0
    %2244 = vmatpush.msra.mxu0 0.0
    %2245 = vmatpush.msra.mxu0 0.0
    %2246 = vmatpush.msra.mxu0 0.0
    %2247 = vmatpush.msra.mxu0 0.0
    %2248 = vmatpush.msra.mxu0 0.0
    %2249 = vmatpush.msra.mxu0 %v1500
    %2250 = vmatpush.msra.mxu0 %v1499
    %2251 = vmatmul.f32.gmra.mxu0 %v2233
    %v2252 = vpop.f32.mrf.mxu0
    %v2253 = vadd.f32 0.0, %v2252
    %2254 = vdwg.mxu0
    %v2257 = vrot.slane %v2224, 5
    %v2258 = vrot.slane %v2224, 6
    %v2259 = vrot.slane %v2253, 5
    %v2260 = vrot.slane %v2253, 6
    %v2265 = vadd.f32 %v1492, %v2257
    %v2266 = vadd.f32 %v1495, %v2258
    %v2267 = vadd.f32 %v2192, %v2259
    %v2268 = vadd.f32 %v2194, %v2260
    %v2269 = vsub.f32 0.0, %v2265
    %v2270 = vsub.f32 0.0, %v2266
    %v2271 = vsub.f32 0.0, %v2267
    %v2272 = vsub.f32 0.0, %v2268
    %v2273 = vmul.f32 %v2269, 1.442695
    %v2274 = vpow.pop %v2273
    %v2275 = vmul.f32 %v2270, 1.442695
    %v2276 = vpow.pop %v2275
    %v2277 = vmul.f32 %v2271, 1.442695
    %v2278 = vpow.pop %v2277
    %v2279 = vmul.f32 %v2272, 1.442695
    %v2280 = vpow.pop %v2279
    %v2281 = vadd.f32 %v2274, 1.0
    %v2282 = vadd.f32 %v2276, 1.0
    %v2283 = vadd.f32 %v2278, 1.0
    %v2284 = vadd.f32 %v2280, 1.0
    %v2285 = vrcp.pop %v2281
    %v2286 = vmul.f32 %v2281, %v2285
    %v2287 = vsub.f32 1.0, %v2286
    %v2288 = vmul.f32 %v2285, %v2287
    %v2289 = vadd.f32 %v2285, %v2288
    %vm2290 = vweird.f32 %v2281
    %vm2291 = vweird.f32 %v2285
    %vm2292 = vmor %vm2290, %vm2291
    %v2293 = vsel %vm2292, %v2285, %v2289
    %v2294 = vand.u32 2147483647, %v2281
    %vm2295 = vcmp.eq.f32.partialorder %v2294, 8.507059e+37
    %v2296 = vand.u32 %v2281, 2147483648
    %v2297 = vor.u32 1.1754944e-38, %v2296
    %v2298 = vsel %vm2295, %v2297, %v2293
    %v2299 = vmul.f32 1.0, %v2298
    %v2300 = vrcp.pop %v2282
    %v2301 = vmul.f32 %v2282, %v2300
    %v2302 = vsub.f32 1.0, %v2301
    %v2303 = vmul.f32 %v2300, %v2302
    %v2304 = vadd.f32 %v2300, %v2303
    %vm2305 = vweird.f32 %v2282
    %vm2306 = vweird.f32 %v2300
    %vm2307 = vmor %vm2305, %vm2306
    %v2308 = vsel %vm2307, %v2300, %v2304
    %v2309 = vand.u32 2147483647, %v2282
    %vm2310 = vcmp.eq.f32.partialorder %v2309, 8.507059e+37
    %v2311 = vand.u32 %v2282, 2147483648
    %v2312 = vor.u32 1.1754944e-38, %v2311
    %v2313 = vsel %vm2310, %v2312, %v2308
    %v2314 = vmul.f32 1.0, %v2313
    %v2315 = vrcp.pop %v2283
    %v2316 = vmul.f32 %v2283, %v2315
    %v2317 = vsub.f32 1.0, %v2316
    %v2318 = vmul.f32 %v2315, %v2317
    %v2319 = vadd.f32 %v2315, %v2318
    %vm2320 = vweird.f32 %v2283
    %vm2321 = vweird.f32 %v2315
    %vm2322 = vmor %vm2320, %vm2321
    %v2323 = vsel %vm2322, %v2315, %v2319
    %v2324 = vand.u32 2147483647, %v2283
    %vm2325 = vcmp.eq.f32.partialorder %v2324, 8.507059e+37
    %v2326 = vand.u32 %v2283, 2147483648
    %v2327 = vor.u32 1.1754944e-38, %v2326
    %v2328 = vsel %vm2325, %v2327, %v2323
    %v2329 = vmul.f32 1.0, %v2328
    %v2330 = vrcp.pop %v2284
    %v2331 = vmul.f32 %v2284, %v2330
    %v2332 = vsub.f32 1.0, %v2331
    %v2333 = vmul.f32 %v2330, %v2332
    %v2334 = vadd.f32 %v2330, %v2333
    %vm2335 = vweird.f32 %v2284
    %vm2336 = vweird.f32 %v2330
    %vm2337 = vmor %vm2335, %vm2336
    %v2338 = vsel %vm2337, %v2330, %v2334
    %v2339 = vand.u32 2147483647, %v2284
    %vm2340 = vcmp.eq.f32.partialorder %v2339, 8.507059e+37
    %v2341 = vand.u32 %v2284, 2147483648
    %v2342 = vor.u32 1.1754944e-38, %v2341
    %v2343 = vsel %vm2340, %v2342, %v2338
    %v2344 = vmul.f32 1.0, %v2343
    %v2345 = vtanh.pop %v2265
    %v2346 = vtanh.pop %v2266
    %v2347 = vtanh.pop %v2267
    %v2348 = vtanh.pop %v2268
    %v2353 = vrot.slane %v2161, 7
    %v2354 = vrot.slane %v2162, 7
    %v2355 = vrot.slane %v2163, 7
    %v2356 = vrot.slane %v2164, 7
    %v2361 = vmul.f32 %v2299, %v2353
    %v2362 = vmul.f32 %v2314, %v2354
    %v2363 = vmul.f32 %v2329, %v2355
    %v2364 = vmul.f32 %v2344, %v2356
    %2369 = vrot.lane.b32.xlu0 %v2345, 96
    %v2370 = vpop.permute.xlu0 %2369
    %2371 = vrot.lane.b32.xlu0 %v2346, 96
    %v2372 = vpop.permute.xlu0 %2371
    %2373 = vrot.lane.b32.xlu0 %v2347, 96
    %v2374 = vpop.permute.xlu0 %2373
    %2375 = vrot.lane.b32.xlu0 %v2348, 96
    %v2376 = vpop.permute.xlu0 %2375
    %v2381 = vmul.f32 %v2299, %v2370
    %v2382 = vmul.f32 %v2314, %v2372
    %v2383 = vmul.f32 %v2329, %v2374
    %v2384 = vmul.f32 %v2344, %v2376
    %2389 = vrot.lane.b32.xlu0 %v2381, 16
    %v2390 = vpop.permute.xlu0 %2389
    %2391 = vrot.lane.b32.xlu0 %v2382, 16
    %v2392 = vpop.permute.xlu0 %2391
    %2393 = vrot.lane.b32.xlu0 %v2383, 16
    %v2394 = vpop.permute.xlu0 %2393
    %2395 = vrot.lane.b32.xlu0 %v2384, 16
    %v2396 = vpop.permute.xlu0 %2395
    %v2401 = vadd.f32 %v2361, %v2390
    %v2402 = vadd.f32 %v2362, %v2392
    %v2403 = vadd.f32 %v2363, %v2394
    %v2404 = vadd.f32 %v2364, %v2396
    %v2405 = vtanh.pop %v2401
    %v2406 = vtanh.pop %v2402
    %v2407 = vtanh.pop %v2403
    %v2408 = vtanh.pop %v2404
    %2413 = vrot.lane.b32.xlu0 %v2405, 32
    %v2414 = vpop.permute.xlu0 %2413
    %2415 = vrot.lane.b32.xlu0 %v2406, 32
    %v2416 = vpop.permute.xlu0 %2415
    %2417 = vrot.lane.b32.xlu0 %v2407, 32
    %v2418 = vpop.permute.xlu0 %2417
    %2419 = vrot.lane.b32.xlu0 %v2408, 32
    %v2420 = vpop.permute.xlu0 %2419
    %v2425 = vmul.f32 %v2299, %v2414
    %v2426 = vmul.f32 %v2314, %v2416
    %v2427 = vmul.f32 %v2329, %v2418
    %v2428 = vmul.f32 %v2344, %v2420
    %v2431 = vrot.slane %v2425, 3
    %v2432 = vrot.slane %v2426, 2
    %v2433 = vsel %vm1725, %v2432, %v2431
    %2434 = vrot.lane.b32.xlu0 %v2433, 80
    %v2435 = vpop.permute.xlu0 %2434
    %v2436 = vsel %vm258, %v2435, 0
    %2438 = vmatpush.msra.mxu0 0.0
    %2439 = vmatpush.msra.mxu0 0.0
    %2440 = vmatpush.msra.mxu0 0.0
    %2441 = vmatpush.msra.mxu0 0.0
    %2442 = vmatpush.msra.mxu0 0.0
    %2443 = vmatpush.msra.mxu0 0.0
    %2444 = vmatpush.msra.mxu0 0.0
    %2445 = vmatpush.msra.mxu0 0.0
    %2446 = vmatpush.msra.mxu0 0.0
    %2447 = vmatpush.msra.mxu0 0.0
    %2448 = vmatpush.msra.mxu0 0.0
    %2449 = vmatpush.msra.mxu0 0.0
    %2450 = vmatpush.msra.mxu0 0.0
    %2451 = vmatpush.msra.mxu0 0.0
    %2452 = vmatpush.msra.mxu0 %v1498
    %2453 = vmatpush.msra.mxu0 %v1497
    %2454 = vmatmul.f32.gmra.mxu0 %v2436
    %v2455 = vpop.f32.mrf.mxu0
    %v2456 = vadd.f32 0.0, %v2455
    %2457 = vdwg.mxu0
    %v2460 = vrot.slane %v2427, 3
    %v2461 = vrot.slane %v2428, 2
    %v2462 = vsel %vm1725, %v2461, %v2460
    %2463 = vrot.lane.b32.xlu0 %v2462, 80
    %v2464 = vpop.permute.xlu0 %2463
    %v2465 = vsel %vm258, %v2464, 0
    %2467 = vmatpush.msra.mxu0 0.0
    %2468 = vmatpush.msra.mxu0 0.0
    %2469 = vmatpush.msra.mxu0 0.0
    %2470 = vmatpush.msra.mxu0 0.0
    %2471 = vmatpush.msra.mxu0 0.0
    %2472 = vmatpush.msra.mxu0 0.0
    %2473 = vmatpush.msra.mxu0 0.0
    %2474 = vmatpush.msra.mxu0 0.0
    %2475 = vmatpush.msra.mxu0 0.0
    %2476 = vmatpush.msra.mxu0 0.0
    %2477 = vmatpush.msra.mxu0 0.0
    %2478 = vmatpush.msra.mxu0 0.0
    %2479 = vmatpush.msra.mxu0 0.0
    %2480 = vmatpush.msra.mxu0 0.0
    %2481 = vmatpush.msra.mxu0 %v1500
    %2482 = vmatpush.msra.mxu0 %v1499
    %2483 = vmatmul.f32.gmra.mxu0 %v2465
    %v2484 = vpop.f32.mrf.mxu0
    %v2485 = vadd.f32 0.0, %v2484
    %2486 = vdwg.mxu0
    %v2489 = vrot.slane %v2456, 4
    %v2490 = vrot.slane %v2456, 5
    %v2491 = vrot.slane %v2485, 4
    %v2492 = vrot.slane %v2485, 5
    %v2497 = vadd.f32 %v1492, %v2489
    %v2498 = vadd.f32 %v1495, %v2490
    %v2499 = vadd.f32 %v1506, %v2491
    %v2500 = vadd.f32 %v1508, %v2492
    %v2501 = vsub.f32 0.0, %v2497
    %v2502 = vsub.f32 0.0, %v2498
    %v2503 = vsub.f32 0.0, %v2499
    %v2504 = vsub.f32 0.0, %v2500
    %v2505 = vmul.f32 %v2501, 1.442695
    %v2506 = vpow.pop %v2505
    %v2507 = vmul.f32 %v2502, 1.442695
    %v2508 = vpow.pop %v2507
    %v2509 = vmul.f32 %v2503, 1.442695
    %v2510 = vpow.pop %v2509
    %v2511 = vmul.f32 %v2504, 1.442695
    %v2512 = vpow.pop %v2511
    %v2513 = vadd.f32 %v2506, 1.0
    %v2514 = vadd.f32 %v2508, 1.0
    %v2515 = vadd.f32 %v2510, 1.0
    %v2516 = vadd.f32 %v2512, 1.0
    %v2517 = vrcp.pop %v2513
    %v2518 = vmul.f32 %v2513, %v2517
    %v2519 = vsub.f32 1.0, %v2518
    %v2520 = vmul.f32 %v2517, %v2519
    %v2521 = vadd.f32 %v2517, %v2520
    %vm2522 = vweird.f32 %v2513
    %vm2523 = vweird.f32 %v2517
    %vm2524 = vmor %vm2522, %vm2523
    %v2525 = vsel %vm2524, %v2517, %v2521
    %v2526 = vand.u32 2147483647, %v2513
    %vm2527 = vcmp.eq.f32.partialorder %v2526, 8.507059e+37
    %v2528 = vand.u32 %v2513, 2147483648
    %v2529 = vor.u32 1.1754944e-38, %v2528
    %v2530 = vsel %vm2527, %v2529, %v2525
    %v2531 = vmul.f32 1.0, %v2530
    %v2532 = vrcp.pop %v2514
    %v2533 = vmul.f32 %v2514, %v2532
    %v2534 = vsub.f32 1.0, %v2533
    %v2535 = vmul.f32 %v2532, %v2534
    %v2536 = vadd.f32 %v2532, %v2535
    %vm2537 = vweird.f32 %v2514
    %vm2538 = vweird.f32 %v2532
    %vm2539 = vmor %vm2537, %vm2538
    %v2540 = vsel %vm2539, %v2532, %v2536
    %v2541 = vand.u32 2147483647, %v2514
    %vm2542 = vcmp.eq.f32.partialorder %v2541, 8.507059e+37
    %v2543 = vand.u32 %v2514, 2147483648
    %v2544 = vor.u32 1.1754944e-38, %v2543
    %v2545 = vsel %vm2542, %v2544, %v2540
    %v2546 = vmul.f32 1.0, %v2545
    %v2547 = vrcp.pop %v2515
    %v2548 = vmul.f32 %v2515, %v2547
    %v2549 = vsub.f32 1.0, %v2548
    %v2550 = vmul.f32 %v2547, %v2549
    %v2551 = vadd.f32 %v2547, %v2550
    %vm2552 = vweird.f32 %v2515
    %vm2553 = vweird.f32 %v2547
    %vm2554 = vmor %vm2552, %vm2553
    %v2555 = vsel %vm2554, %v2547, %v2551
    %v2556 = vand.u32 2147483647, %v2515
    %vm2557 = vcmp.eq.f32.partialorder %v2556, 8.507059e+37
    %v2558 = vand.u32 %v2515, 2147483648
    %v2559 = vor.u32 1.1754944e-38, %v2558
    %v2560 = vsel %vm2557, %v2559, %v2555
    %v2561 = vmul.f32 1.0, %v2560
    %v2562 = vrcp.pop %v2516
    %v2563 = vmul.f32 %v2516, %v2562
    %v2564 = vsub.f32 1.0, %v2563
    %v2565 = vmul.f32 %v2562, %v2564
    %v2566 = vadd.f32 %v2562, %v2565
    %vm2567 = vweird.f32 %v2516
    %vm2568 = vweird.f32 %v2562
    %vm2569 = vmor %vm2567, %vm2568
    %v2570 = vsel %vm2569, %v2562, %v2566
    %v2571 = vand.u32 2147483647, %v2516
    %vm2572 = vcmp.eq.f32.partialorder %v2571, 8.507059e+37
    %v2573 = vand.u32 %v2516, 2147483648
    %v2574 = vor.u32 1.1754944e-38, %v2573
    %v2575 = vsel %vm2572, %v2574, %v2570
    %v2576 = vmul.f32 1.0, %v2575
    %v2577 = vtanh.pop %v2497
    %v2578 = vtanh.pop %v2498
    %v2579 = vtanh.pop %v2499
    %v2580 = vtanh.pop %v2500
    %v2585 = vrot.slane %v2401, 7
    %v2586 = vrot.slane %v2402, 7
    %v2587 = vrot.slane %v2403, 7
    %v2588 = vrot.slane %v2404, 7
    %v2593 = vmul.f32 %v2531, %v2585
    %v2594 = vmul.f32 %v2546, %v2586
    %v2595 = vmul.f32 %v2561, %v2587
    %v2596 = vmul.f32 %v2576, %v2588
    %2601 = vrot.lane.b32.xlu0 %v2577, 96
    %v2602 = vpop.permute.xlu0 %2601
    %2603 = vrot.lane.b32.xlu0 %v2578, 96
    %v2604 = vpop.permute.xlu0 %2603
    %2605 = vrot.lane.b32.xlu0 %v2579, 96
    %v2606 = vpop.permute.xlu0 %2605
    %2607 = vrot.lane.b32.xlu0 %v2580, 96
    %v2608 = vpop.permute.xlu0 %2607
    %v2613 = vmul.f32 %v2531, %v2602
    %v2614 = vmul.f32 %v2546, %v2604
    %v2615 = vmul.f32 %v2561, %v2606
    %v2616 = vmul.f32 %v2576, %v2608
    %2621 = vrot.lane.b32.xlu0 %v2613, 16
    %v2622 = vpop.permute.xlu0 %2621
    %2623 = vrot.lane.b32.xlu0 %v2614, 16
    %v2624 = vpop.permute.xlu0 %2623
    %2625 = vrot.lane.b32.xlu0 %v2615, 16
    %v2626 = vpop.permute.xlu0 %2625
    %2627 = vrot.lane.b32.xlu0 %v2616, 16
    %v2628 = vpop.permute.xlu0 %2627
    %v2633 = vadd.f32 %v2593, %v2622
    %v2634 = vadd.f32 %v2594, %v2624
    %v2635 = vadd.f32 %v2595, %v2626
    %v2636 = vadd.f32 %v2596, %v2628
    %v2637 = vtanh.pop %v2633
    %v2638 = vtanh.pop %v2634
    %v2639 = vtanh.pop %v2635
    %v2640 = vtanh.pop %v2636
    %2645 = vrot.lane.b32.xlu0 %v2637, 32
    %v2646 = vpop.permute.xlu0 %2645
    %2647 = vrot.lane.b32.xlu0 %v2638, 32
    %v2648 = vpop.permute.xlu0 %2647
    %2649 = vrot.lane.b32.xlu0 %v2639, 32
    %v2650 = vpop.permute.xlu0 %2649
    %2651 = vrot.lane.b32.xlu0 %v2640, 32
    %v2652 = vpop.permute.xlu0 %2651
    %v2657 = vmul.f32 %v2531, %v2646
    %v2658 = vmul.f32 %v2546, %v2648
    %v2659 = vmul.f32 %v2561, %v2650
    %v2660 = vmul.f32 %v2576, %v2652
    %v2663 = vrot.slane %v2657, 4
    %v2664 = vrot.slane %v2658, 3
    %v2665 = vsel %vm1725, %v2664, %v2663
    %2666 = vrot.lane.b32.xlu0 %v2665, 80
    %v2667 = vpop.permute.xlu0 %2666
    %v2668 = vsel %vm258, %v2667, 0
    %2670 = vmatpush.msra.mxu0 0.0
    %2671 = vmatpush.msra.mxu0 0.0
    %2672 = vmatpush.msra.mxu0 0.0
    %2673 = vmatpush.msra.mxu0 0.0
    %2674 = vmatpush.msra.mxu0 0.0
    %2675 = vmatpush.msra.mxu0 0.0
    %2676 = vmatpush.msra.mxu0 0.0
    %2677 = vmatpush.msra.mxu0 0.0
    %2678 = vmatpush.msra.mxu0 0.0
    %2679 = vmatpush.msra.mxu0 0.0
    %2680 = vmatpush.msra.mxu0 0.0
    %2681 = vmatpush.msra.mxu0 0.0
    %2682 = vmatpush.msra.mxu0 0.0
    %2683 = vmatpush.msra.mxu0 0.0
    %2684 = vmatpush.msra.mxu0 %v1498
    %2685 = vmatpush.msra.mxu0 %v1497
    %2686 = vmatmul.f32.gmra.mxu0 %v2668
    %v2687 = vpop.f32.mrf.mxu0
    %v2688 = vadd.f32 0.0, %v2687
    %2689 = vdwg.mxu0
    %v2692 = vrot.slane %v2659, 4
    %v2693 = vrot.slane %v2660, 3
    %v2694 = vsel %vm1725, %v2693, %v2692
    %2695 = vrot.lane.b32.xlu0 %v2694, 80
    %v2696 = vpop.permute.xlu0 %2695
    %v2697 = vsel %vm258, %v2696, 0
    %2699 = vmatpush.msra.mxu0 0.0
    %2700 = vmatpush.msra.mxu0 0.0
    %2701 = vmatpush.msra.mxu0 0.0
    %2702 = vmatpush.msra.mxu0 0.0
    %2703 = vmatpush.msra.mxu0 0.0
    %2704 = vmatpush.msra.mxu0 0.0
    %2705 = vmatpush.msra.mxu0 0.0
    %2706 = vmatpush.msra.mxu0 0.0
    %2707 = vmatpush.msra.mxu0 0.0
    %2708 = vmatpush.msra.mxu0 0.0
    %2709 = vmatpush.msra.mxu0 0.0
    %2710 = vmatpush.msra.mxu0 0.0
    %2711 = vmatpush.msra.mxu0 0.0
    %2712 = vmatpush.msra.mxu0 0.0
    %2713 = vmatpush.msra.mxu0 %v1500
    %2714 = vmatpush.msra.mxu0 %v1499
    %2715 = vmatmul.f32.gmra.mxu0 %v2697
    %v2716 = vpop.f32.mrf.mxu0
    %v2717 = vadd.f32 0.0, %v2716
    %2718 = vdwg.mxu0
    %v2721 = vrot.slane %v2688, 3
    %v2722 = vrot.slane %v2688, 4
    %v2723 = vrot.slane %v2717, 3
    %v2724 = vrot.slane %v2717, 4
    %v2729 = vadd.f32 %v1492, %v2721
    %v2730 = vadd.f32 %v1495, %v2722
    %v2731 = vadd.f32 %v1717, %v2723
    %v2732 = vadd.f32 %v1719, %v2724
    %v2733 = vsub.f32 0.0, %v2729
    %v2734 = vsub.f32 0.0, %v2730
    %v2735 = vsub.f32 0.0, %v2731
    %v2736 = vsub.f32 0.0, %v2732
    %v2737 = vmul.f32 %v2733, 1.442695
    %v2738 = vpow.pop %v2737
    %v2739 = vmul.f32 %v2734, 1.442695
    %v2740 = vpow.pop %v2739
    %v2741 = vmul.f32 %v2735, 1.442695
    %v2742 = vpow.pop %v2741
    %v2743 = vmul.f32 %v2736, 1.442695
    %v2744 = vpow.pop %v2743
    %v2745 = vadd.f32 %v2738, 1.0
    %v2746 = vadd.f32 %v2740, 1.0
    %v2747 = vadd.f32 %v2742, 1.0
    %v2748 = vadd.f32 %v2744, 1.0
    %v2749 = vrcp.pop %v2745
    %v2750 = vmul.f32 %v2745, %v2749
    %v2751 = vsub.f32 1.0, %v2750
    %v2752 = vmul.f32 %v2749, %v2751
    %v2753 = vadd.f32 %v2749, %v2752
    %vm2754 = vweird.f32 %v2745
    %vm2755 = vweird.f32 %v2749
    %vm2756 = vmor %vm2754, %vm2755
    %v2757 = vsel %vm2756, %v2749, %v2753
    %v2758 = vand.u32 2147483647, %v2745
    %vm2759 = vcmp.eq.f32.partialorder %v2758, 8.507059e+37
    %v2760 = vand.u32 %v2745, 2147483648
    %v2761 = vor.u32 1.1754944e-38, %v2760
    %v2762 = vsel %vm2759, %v2761, %v2757
    %v2763 = vmul.f32 1.0, %v2762
    %v2764 = vrcp.pop %v2746
    %v2765 = vmul.f32 %v2746, %v2764
    %v2766 = vsub.f32 1.0, %v2765
    %v2767 = vmul.f32 %v2764, %v2766
    %v2768 = vadd.f32 %v2764, %v2767
    %vm2769 = vweird.f32 %v2746
    %vm2770 = vweird.f32 %v2764
    %vm2771 = vmor %vm2769, %vm2770
    %v2772 = vsel %vm2771, %v2764, %v2768
    %v2773 = vand.u32 2147483647, %v2746
    %vm2774 = vcmp.eq.f32.partialorder %v2773, 8.507059e+37
    %v2775 = vand.u32 %v2746, 2147483648
    %v2776 = vor.u32 1.1754944e-38, %v2775
    %v2777 = vsel %vm2774, %v2776, %v2772
    %v2778 = vmul.f32 1.0, %v2777
    %v2779 = vrcp.pop %v2747
    %v2780 = vmul.f32 %v2747, %v2779
    %v2781 = vsub.f32 1.0, %v2780
    %v2782 = vmul.f32 %v2779, %v2781
    %v2783 = vadd.f32 %v2779, %v2782
    %vm2784 = vweird.f32 %v2747
    %vm2785 = vweird.f32 %v2779
    %vm2786 = vmor %vm2784, %vm2785
    %v2787 = vsel %vm2786, %v2779, %v2783
    %v2788 = vand.u32 2147483647, %v2747
    %vm2789 = vcmp.eq.f32.partialorder %v2788, 8.507059e+37
    %v2790 = vand.u32 %v2747, 2147483648
    %v2791 = vor.u32 1.1754944e-38, %v2790
    %v2792 = vsel %vm2789, %v2791, %v2787
    %v2793 = vmul.f32 1.0, %v2792
    %v2794 = vrcp.pop %v2748
    %v2795 = vmul.f32 %v2748, %v2794
    %v2796 = vsub.f32 1.0, %v2795
    %v2797 = vmul.f32 %v2794, %v2796
    %v2798 = vadd.f32 %v2794, %v2797
    %vm2799 = vweird.f32 %v2748
    %vm2800 = vweird.f32 %v2794
    %vm2801 = vmor %vm2799, %vm2800
    %v2802 = vsel %vm2801, %v2794, %v2798
    %v2803 = vand.u32 2147483647, %v2748
    %vm2804 = vcmp.eq.f32.partialorder %v2803, 8.507059e+37
    %v2805 = vand.u32 %v2748, 2147483648
    %v2806 = vor.u32 1.1754944e-38, %v2805
    %v2807 = vsel %vm2804, %v2806, %v2802
    %v2808 = vmul.f32 1.0, %v2807
    %v2809 = vtanh.pop %v2729
    %v2810 = vtanh.pop %v2730
    %v2811 = vtanh.pop %v2731
    %v2812 = vtanh.pop %v2732
    %v2817 = vrot.slane %v2633, 7
    %v2818 = vrot.slane %v2634, 7
    %v2819 = vrot.slane %v2635, 7
    %v2820 = vrot.slane %v2636, 7
    %v2825 = vmul.f32 %v2763, %v2817
    %v2826 = vmul.f32 %v2778, %v2818
    %v2827 = vmul.f32 %v2793, %v2819
    %v2828 = vmul.f32 %v2808, %v2820
    %2833 = vrot.lane.b32.xlu0 %v2809, 96
    %v2834 = vpop.permute.xlu0 %2833
    %2835 = vrot.lane.b32.xlu0 %v2810, 96
    %v2836 = vpop.permute.xlu0 %2835
    %2837 = vrot.lane.b32.xlu0 %v2811, 96
    %v2838 = vpop.permute.xlu0 %2837
    %2839 = vrot.lane.b32.xlu0 %v2812, 96
    %v2840 = vpop.permute.xlu0 %2839
    %v2845 = vmul.f32 %v2763, %v2834
    %v2846 = vmul.f32 %v2778, %v2836
    %v2847 = vmul.f32 %v2793, %v2838
    %v2848 = vmul.f32 %v2808, %v2840
    %2853 = vrot.lane.b32.xlu0 %v2845, 16
    %v2854 = vpop.permute.xlu0 %2853
    %2855 = vrot.lane.b32.xlu0 %v2846, 16
    %v2856 = vpop.permute.xlu0 %2855
    %2857 = vrot.lane.b32.xlu0 %v2847, 16
    %v2858 = vpop.permute.xlu0 %2857
    %2859 = vrot.lane.b32.xlu0 %v2848, 16
    %v2860 = vpop.permute.xlu0 %2859
    %v2865 = vadd.f32 %v2825, %v2854
    %v2866 = vadd.f32 %v2826, %v2856
    %v2867 = vadd.f32 %v2827, %v2858
    %v2868 = vadd.f32 %v2828, %v2860
    %v2869 = vtanh.pop %v2865
    %v2870 = vtanh.pop %v2866
    %v2871 = vtanh.pop %v2867
    %v2872 = vtanh.pop %v2868
    %2877 = vrot.lane.b32.xlu0 %v2869, 32
    %v2878 = vpop.permute.xlu0 %2877
    %2879 = vrot.lane.b32.xlu0 %v2870, 32
    %v2880 = vpop.permute.xlu0 %2879
    %2881 = vrot.lane.b32.xlu0 %v2871, 32
    %v2882 = vpop.permute.xlu0 %2881
    %2883 = vrot.lane.b32.xlu0 %v2872, 32
    %v2884 = vpop.permute.xlu0 %2883
    %v2889 = vmul.f32 %v2763, %v2878
    %v2890 = vmul.f32 %v2778, %v2880
    %v2891 = vmul.f32 %v2793, %v2882
    %v2892 = vmul.f32 %v2808, %v2884
    %v2895 = vrot.slane %v2889, 5
    %v2896 = vrot.slane %v2890, 4
    %v2897 = vsel %vm1725, %v2896, %v2895
    %2898 = vrot.lane.b32.xlu0 %v2897, 80
    %v2899 = vpop.permute.xlu0 %2898
    %v2900 = vsel %vm258, %v2899, 0
    %2902 = vmatpush.msra.mxu0 0.0
    %2903 = vmatpush.msra.mxu0 0.0
    %2904 = vmatpush.msra.mxu0 0.0
    %2905 = vmatpush.msra.mxu0 0.0
    %2906 = vmatpush.msra.mxu0 0.0
    %2907 = vmatpush.msra.mxu0 0.0
    %2908 = vmatpush.msra.mxu0 0.0
    %2909 = vmatpush.msra.mxu0 0.0
    %2910 = vmatpush.msra.mxu0 0.0
    %2911 = vmatpush.msra.mxu0 0.0
    %2912 = vmatpush.msra.mxu0 0.0
    %2913 = vmatpush.msra.mxu0 0.0
    %2914 = vmatpush.msra.mxu0 0.0
    %2915 = vmatpush.msra.mxu0 0.0
    %2916 = vmatpush.msra.mxu0 %v1498
    %2917 = vmatpush.msra.mxu0 %v1497
    %2918 = vmatmul.f32.gmra.mxu0 %v2900
    %v2919 = vpop.f32.mrf.mxu0
    %v2920 = vadd.f32 0.0, %v2919
    %2921 = vdwg.mxu0
    %v2924 = vrot.slane %v2891, 5
    %v2925 = vrot.slane %v2892, 4
    %v2926 = vsel %vm1725, %v2925, %v2924
    %2927 = vrot.lane.b32.xlu0 %v2926, 80
    %v2928 = vpop.permute.xlu0 %2927
    %v2929 = vsel %vm258, %v2928, 0
    %2931 = vmatpush.msra.mxu0 0.0
    %2932 = vmatpush.msra.mxu0 0.0
    %2933 = vmatpush.msra.mxu0 0.0
    %2934 = vmatpush.msra.mxu0 0.0
    %2935 = vmatpush.msra.mxu0 0.0
    %2936 = vmatpush.msra.mxu0 0.0
    %2937 = vmatpush.msra.mxu0 0.0
    %2938 = vmatpush.msra.mxu0 0.0
    %2939 = vmatpush.msra.mxu0 0.0
    %2940 = vmatpush.msra.mxu0 0.0
    %2941 = vmatpush.msra.mxu0 0.0
    %2942 = vmatpush.msra.mxu0 0.0
    %2943 = vmatpush.msra.mxu0 0.0
    %2944 = vmatpush.msra.mxu0 0.0
    %2945 = vmatpush.msra.mxu0 %v1500
    %2946 = vmatpush.msra.mxu0 %v1499
    %2947 = vmatmul.f32.gmra.mxu0 %v2929
    %v2948 = vpop.f32.mrf.mxu0
    %v2949 = vadd.f32 0.0, %v2948
    %2950 = vdwg.mxu0
    %v2953 = vrot.slane %v2920, 2
    %v2954 = vrot.slane %v2920, 3
    %v2955 = vrot.slane %v2949, 2
    %v2956 = vrot.slane %v2949, 3
    %v2961 = vadd.f32 %v1492, %v2953
    %v2962 = vadd.f32 %v1495, %v2954
    %v2963 = vadd.f32 %v1954, %v2955
    %v2964 = vadd.f32 %v1956, %v2956
    %v2965 = vsub.f32 0.0, %v2961
    %v2966 = vsub.f32 0.0, %v2962
    %v2967 = vsub.f32 0.0, %v2963
    %v2968 = vsub.f32 0.0, %v2964
    %v2969 = vmul.f32 %v2965, 1.442695
    %v2970 = vpow.pop %v2969
    %v2971 = vmul.f32 %v2966, 1.442695
    %v2972 = vpow.pop %v2971
    %v2973 = vmul.f32 %v2967, 1.442695
    %v2974 = vpow.pop %v2973
    %v2975 = vmul.f32 %v2968, 1.442695
    %v2976 = vpow.pop %v2975
    %v2977 = vadd.f32 %v2970, 1.0
    %v2978 = vadd.f32 %v2972, 1.0
    %v2979 = vadd.f32 %v2974, 1.0
    %v2980 = vadd.f32 %v2976, 1.0
    %v2981 = vrcp.pop %v2977
    %v2982 = vmul.f32 %v2977, %v2981
    %v2983 = vsub.f32 1.0, %v2982
    %v2984 = vmul.f32 %v2981, %v2983
    %v2985 = vadd.f32 %v2981, %v2984
    %vm2986 = vweird.f32 %v2977
    %vm2987 = vweird.f32 %v2981
    %vm2988 = vmor %vm2986, %vm2987
    %v2989 = vsel %vm2988, %v2981, %v2985
    %v2990 = vand.u32 2147483647, %v2977
    %vm2991 = vcmp.eq.f32.partialorder %v2990, 8.507059e+37
    %v2992 = vand.u32 %v2977, 2147483648
    %v2993 = vor.u32 1.1754944e-38, %v2992
    %v2994 = vsel %vm2991, %v2993, %v2989
    %v2995 = vmul.f32 1.0, %v2994
    %v2996 = vrcp.pop %v2978
    %v2997 = vmul.f32 %v2978, %v2996
    %v2998 = vsub.f32 1.0, %v2997
    %v2999 = vmul.f32 %v2996, %v2998
    %v3000 = vadd.f32 %v2996, %v2999
    %vm3001 = vweird.f32 %v2978
    %vm3002 = vweird.f32 %v2996
    %vm3003 = vmor %vm3001, %vm3002
    %v3004 = vsel %vm3003, %v2996, %v3000
    %v3005 = vand.u32 2147483647, %v2978
    %vm3006 = vcmp.eq.f32.partialorder %v3005, 8.507059e+37
    %v3007 = vand.u32 %v2978, 2147483648
    %v3008 = vor.u32 1.1754944e-38, %v3007
    %v3009 = vsel %vm3006, %v3008, %v3004
    %v3010 = vmul.f32 1.0, %v3009
    %v3011 = vrcp.pop %v2979
    %v3012 = vmul.f32 %v2979, %v3011
    %v3013 = vsub.f32 1.0, %v3012
    %v3014 = vmul.f32 %v3011, %v3013
    %v3015 = vadd.f32 %v3011, %v3014
    %vm3016 = vweird.f32 %v2979
    %vm3017 = vweird.f32 %v3011
    %vm3018 = vmor %vm3016, %vm3017
    %v3019 = vsel %vm3018, %v3011, %v3015
    %v3020 = vand.u32 2147483647, %v2979
    %vm3021 = vcmp.eq.f32.partialorder %v3020, 8.507059e+37
    %v3022 = vand.u32 %v2979, 2147483648
    %v3023 = vor.u32 1.1754944e-38, %v3022
    %v3024 = vsel %vm3021, %v3023, %v3019
    %v3025 = vmul.f32 1.0, %v3024
    %v3026 = vrcp.pop %v2980
    %v3027 = vmul.f32 %v2980, %v3026
    %v3028 = vsub.f32 1.0, %v3027
    %v3029 = vmul.f32 %v3026, %v3028
    %v3030 = vadd.f32 %v3026, %v3029
    %vm3031 = vweird.f32 %v2980
    %vm3032 = vweird.f32 %v3026
    %vm3033 = vmor %vm3031, %vm3032
    %v3034 = vsel %vm3033, %v3026, %v3030
    %v3035 = vand.u32 2147483647, %v2980
    %vm3036 = vcmp.eq.f32.partialorder %v3035, 8.507059e+37
    %v3037 = vand.u32 %v2980, 2147483648
    %v3038 = vor.u32 1.1754944e-38, %v3037
    %v3039 = vsel %vm3036, %v3038, %v3034
    %v3040 = vmul.f32 1.0, %v3039
    %v3041 = vtanh.pop %v2961
    %v3042 = vtanh.pop %v2962
    %v3043 = vtanh.pop %v2963
    %v3044 = vtanh.pop %v2964
    %v3049 = vrot.slane %v2865, 7
    %v3050 = vrot.slane %v2866, 7
    %v3051 = vrot.slane %v2867, 7
    %v3052 = vrot.slane %v2868, 7
    %v3057 = vmul.f32 %v2995, %v3049
    %v3058 = vmul.f32 %v3010, %v3050
    %v3059 = vmul.f32 %v3025, %v3051
    %v3060 = vmul.f32 %v3040, %v3052
    %3065 = vrot.lane.b32.xlu0 %v3041, 96
    %v3066 = vpop.permute.xlu0 %3065
    %3067 = vrot.lane.b32.xlu0 %v3042, 96
    %v3068 = vpop.permute.xlu0 %3067
    %3069 = vrot.lane.b32.xlu0 %v3043, 96
    %v3070 = vpop.permute.xlu0 %3069
    %3071 = vrot.lane.b32.xlu0 %v3044, 96
    %v3072 = vpop.permute.xlu0 %3071
    %v3077 = vmul.f32 %v2995, %v3066
    %v3078 = vmul.f32 %v3010, %v3068
    %v3079 = vmul.f32 %v3025, %v3070
    %v3080 = vmul.f32 %v3040, %v3072
    %3085 = vrot.lane.b32.xlu0 %v3077, 16
    %v3086 = vpop.permute.xlu0 %3085
    %3087 = vrot.lane.b32.xlu0 %v3078, 16
    %v3088 = vpop.permute.xlu0 %3087
    %3089 = vrot.lane.b32.xlu0 %v3079, 16
    %v3090 = vpop.permute.xlu0 %3089
    %3091 = vrot.lane.b32.xlu0 %v3080, 16
    %v3092 = vpop.permute.xlu0 %3091
    %v3097 = vadd.f32 %v3057, %v3086
    %v3098 = vadd.f32 %v3058, %v3088
    %v3099 = vadd.f32 %v3059, %v3090
    %v3100 = vadd.f32 %v3060, %v3092
    %v3101 = vtanh.pop %v3097
    %v3102 = vtanh.pop %v3098
    %v3103 = vtanh.pop %v3099
    %v3104 = vtanh.pop %v3100
    %3109 = vrot.lane.b32.xlu0 %v3101, 32
    %v3110 = vpop.permute.xlu0 %3109
    %3111 = vrot.lane.b32.xlu0 %v3102, 32
    %v3112 = vpop.permute.xlu0 %3111
    %3113 = vrot.lane.b32.xlu0 %v3103, 32
    %v3114 = vpop.permute.xlu0 %3113
    %3115 = vrot.lane.b32.xlu0 %v3104, 32
    %v3116 = vpop.permute.xlu0 %3115
    %v3121 = vmul.f32 %v2995, %v3110
    %v3122 = vmul.f32 %v3010, %v3112
    %v3123 = vmul.f32 %v3025, %v3114
    %v3124 = vmul.f32 %v3040, %v3116
    %v3127 = vrot.slane %v3121, 6
    %v3128 = vrot.slane %v3122, 5
    %v3129 = vsel %vm1725, %v3128, %v3127
    %3130 = vrot.lane.b32.xlu0 %v3129, 80
    %v3131 = vpop.permute.xlu0 %3130
    %v3132 = vsel %vm258, %v3131, 0
    %3134 = vmatpush.msra.mxu0 0.0
    %3135 = vmatpush.msra.mxu0 0.0
    %3136 = vmatpush.msra.mxu0 0.0
    %3137 = vmatpush.msra.mxu0 0.0
    %3138 = vmatpush.msra.mxu0 0.0
    %3139 = vmatpush.msra.mxu0 0.0
    %3140 = vmatpush.msra.mxu0 0.0
    %3141 = vmatpush.msra.mxu0 0.0
    %3142 = vmatpush.msra.mxu0 0.0
    %3143 = vmatpush.msra.mxu0 0.0
    %3144 = vmatpush.msra.mxu0 0.0
    %3145 = vmatpush.msra.mxu0 0.0
    %3146 = vmatpush.msra.mxu0 0.0
    %3147 = vmatpush.msra.mxu0 0.0
    %3148 = vmatpush.msra.mxu0 %v1498
    %3149 = vmatpush.msra.mxu0 %v1497
    %3150 = vmatmul.f32.gmra.mxu0 %v3132
    %v3151 = vpop.f32.mrf.mxu0
    %v3152 = vadd.f32 0.0, %v3151
    %3153 = vdwg.mxu0
    %v3156 = vrot.slane %v3123, 6
    %v3157 = vrot.slane %v3124, 5
    %v3158 = vsel %vm1725, %v3157, %v3156
    %3159 = vrot.lane.b32.xlu0 %v3158, 80
    %v3160 = vpop.permute.xlu0 %3159
    %v3161 = vsel %vm258, %v3160, 0
    %3163 = vmatpush.msra.mxu0 0.0
    %3164 = vmatpush.msra.mxu0 0.0
    %3165 = vmatpush.msra.mxu0 0.0
    %3166 = vmatpush.msra.mxu0 0.0
    %3167 = vmatpush.msra.mxu0 0.0
    %3168 = vmatpush.msra.mxu0 0.0
    %3169 = vmatpush.msra.mxu0 0.0
    %3170 = vmatpush.msra.mxu0 0.0
    %3171 = vmatpush.msra.mxu0 0.0
    %3172 = vmatpush.msra.mxu0 0.0
    %3173 = vmatpush.msra.mxu0 0.0
    %3174 = vmatpush.msra.mxu0 0.0
    %3175 = vmatpush.msra.mxu0 0.0
    %3176 = vmatpush.msra.mxu0 0.0
    %3177 = vmatpush.msra.mxu0 %v1500
    %3178 = vmatpush.msra.mxu0 %v1499
    %3179 = vmatmul.f32.gmra.mxu0 %v3161
    %v3180 = vpop.f32.mrf.mxu0
    %v3181 = vadd.f32 0.0, %v3180
    %3182 = vdwg.mxu0
    %v3185 = vrot.slane %v3152, 1
    %v3186 = vrot.slane %v3152, 2
    %v3187 = vrot.slane %v3181, 1
    %v3188 = vrot.slane %v3181, 2
    %v3193 = vadd.f32 %v1492, %v3185
    %v3194 = vadd.f32 %v1495, %v3186
    %v3195 = vadd.f32 %v2192, %v3187
    %v3196 = vadd.f32 %v2194, %v3188
    %v3197 = vsub.f32 0.0, %v3193
    %v3198 = vsub.f32 0.0, %v3194
    %v3199 = vsub.f32 0.0, %v3195
    %v3200 = vsub.f32 0.0, %v3196
    %v3201 = vmul.f32 %v3197, 1.442695
    %v3202 = vpow.pop %v3201
    %v3203 = vmul.f32 %v3198, 1.442695
    %v3204 = vpow.pop %v3203
    %v3205 = vmul.f32 %v3199, 1.442695
    %v3206 = vpow.pop %v3205
    %v3207 = vmul.f32 %v3200, 1.442695
    %v3208 = vpow.pop %v3207
    %v3209 = vadd.f32 %v3202, 1.0
    %v3210 = vadd.f32 %v3204, 1.0
    %v3211 = vadd.f32 %v3206, 1.0
    %v3212 = vadd.f32 %v3208, 1.0
    %v3213 = vrcp.pop %v3209
    %v3214 = vmul.f32 %v3209, %v3213
    %v3215 = vsub.f32 1.0, %v3214
    %v3216 = vmul.f32 %v3213, %v3215
    %v3217 = vadd.f32 %v3213, %v3216
    %vm3218 = vweird.f32 %v3209
    %vm3219 = vweird.f32 %v3213
    %vm3220 = vmor %vm3218, %vm3219
    %v3221 = vsel %vm3220, %v3213, %v3217
    %v3222 = vand.u32 2147483647, %v3209
    %vm3223 = vcmp.eq.f32.partialorder %v3222, 8.507059e+37
    %v3224 = vand.u32 %v3209, 2147483648
    %v3225 = vor.u32 1.1754944e-38, %v3224
    %v3226 = vsel %vm3223, %v3225, %v3221
    %v3227 = vmul.f32 1.0, %v3226
    %v3228 = vrcp.pop %v3210
    %v3229 = vmul.f32 %v3210, %v3228
    %v3230 = vsub.f32 1.0, %v3229
    %v3231 = vmul.f32 %v3228, %v3230
    %v3232 = vadd.f32 %v3228, %v3231
    %vm3233 = vweird.f32 %v3210
    %vm3234 = vweird.f32 %v3228
    %vm3235 = vmor %vm3233, %vm3234
    %v3236 = vsel %vm3235, %v3228, %v3232
    %v3237 = vand.u32 2147483647, %v3210
    %vm3238 = vcmp.eq.f32.partialorder %v3237, 8.507059e+37
    %v3239 = vand.u32 %v3210, 2147483648
    %v3240 = vor.u32 1.1754944e-38, %v3239
    %v3241 = vsel %vm3238, %v3240, %v3236
    %v3242 = vmul.f32 1.0, %v3241
    %v3243 = vrcp.pop %v3211
    %v3244 = vmul.f32 %v3211, %v3243
    %v3245 = vsub.f32 1.0, %v3244
    %v3246 = vmul.f32 %v3243, %v3245
    %v3247 = vadd.f32 %v3243, %v3246
    %vm3248 = vweird.f32 %v3211
    %vm3249 = vweird.f32 %v3243
    %vm3250 = vmor %vm3248, %vm3249
    %v3251 = vsel %vm3250, %v3243, %v3247
    %v3252 = vand.u32 2147483647, %v3211
    %vm3253 = vcmp.eq.f32.partialorder %v3252, 8.507059e+37
    %v3254 = vand.u32 %v3211, 2147483648
    %v3255 = vor.u32 1.1754944e-38, %v3254
    %v3256 = vsel %vm3253, %v3255, %v3251
    %v3257 = vmul.f32 1.0, %v3256
    %v3258 = vrcp.pop %v3212
    %v3259 = vmul.f32 %v3212, %v3258
    %v3260 = vsub.f32 1.0, %v3259
    %v3261 = vmul.f32 %v3258, %v3260
    %v3262 = vadd.f32 %v3258, %v3261
    %vm3263 = vweird.f32 %v3212
    %vm3264 = vweird.f32 %v3258
    %vm3265 = vmor %vm3263, %vm3264
    %v3266 = vsel %vm3265, %v3258, %v3262
    %v3267 = vand.u32 2147483647, %v3212
    %vm3268 = vcmp.eq.f32.partialorder %v3267, 8.507059e+37
    %v3269 = vand.u32 %v3212, 2147483648
    %v3270 = vor.u32 1.1754944e-38, %v3269
    %v3271 = vsel %vm3268, %v3270, %v3266
    %v3272 = vmul.f32 1.0, %v3271
    %v3273 = vtanh.pop %v3193
    %v3274 = vtanh.pop %v3194
    %v3275 = vtanh.pop %v3195
    %v3276 = vtanh.pop %v3196
    %v3281 = vrot.slane %v3097, 7
    %v3282 = vrot.slane %v3098, 7
    %v3283 = vrot.slane %v3099, 7
    %v3284 = vrot.slane %v3100, 7
    %v3289 = vmul.f32 %v3227, %v3281
    %v3290 = vmul.f32 %v3242, %v3282
    %v3291 = vmul.f32 %v3257, %v3283
    %v3292 = vmul.f32 %v3272, %v3284
    %3297 = vrot.lane.b32.xlu0 %v3273, 96
    %v3298 = vpop.permute.xlu0 %3297
    %3299 = vrot.lane.b32.xlu0 %v3274, 96
    %v3300 = vpop.permute.xlu0 %3299
    %3301 = vrot.lane.b32.xlu0 %v3275, 96
    %v3302 = vpop.permute.xlu0 %3301
    %3303 = vrot.lane.b32.xlu0 %v3276, 96
    %v3304 = vpop.permute.xlu0 %3303
    %v3309 = vmul.f32 %v3227, %v3298
    %v3310 = vmul.f32 %v3242, %v3300
    %v3311 = vmul.f32 %v3257, %v3302
    %v3312 = vmul.f32 %v3272, %v3304
    %3317 = vrot.lane.b32.xlu0 %v3309, 16
    %v3318 = vpop.permute.xlu0 %3317
    %3319 = vrot.lane.b32.xlu0 %v3310, 16
    %v3320 = vpop.permute.xlu0 %3319
    %3321 = vrot.lane.b32.xlu0 %v3311, 16
    %v3322 = vpop.permute.xlu0 %3321
    %3323 = vrot.lane.b32.xlu0 %v3312, 16
    %v3324 = vpop.permute.xlu0 %3323
    %v3329 = vadd.f32 %v3289, %v3318
    %v3330 = vadd.f32 %v3290, %v3320
    %v3331 = vadd.f32 %v3291, %v3322
    %v3332 = vadd.f32 %v3292, %v3324
    %v3333 = vtanh.pop %v3329
    %v3334 = vtanh.pop %v3330
    %v3335 = vtanh.pop %v3331
    %v3336 = vtanh.pop %v3332
    %3341 = vrot.lane.b32.xlu0 %v3333, 32
    %v3342 = vpop.permute.xlu0 %3341
    %3343 = vrot.lane.b32.xlu0 %v3334, 32
    %v3344 = vpop.permute.xlu0 %3343
    %3345 = vrot.lane.b32.xlu0 %v3335, 32
    %v3346 = vpop.permute.xlu0 %3345
    %3347 = vrot.lane.b32.xlu0 %v3336, 32
    %v3348 = vpop.permute.xlu0 %3347
    %v3353 = vmul.f32 %v3227, %v3342
    %v3354 = vmul.f32 %v3242, %v3344
    %v3355 = vmul.f32 %v3257, %v3346
    %v3356 = vmul.f32 %v3272, %v3348
    %v3358 = vrot.slane %v1947, 7
    %v3359 = vrot.slane %v1948, 6
    %vm3360 = vcmask 1043459
    %v3361 = vsel %vm3360, %v3359, %v3358
    %v3363 = vrot.slane %v2185, 6
    %v3364 = vrot.slane %v2186, 5
    %vm3365 = vcmask 1045509
    %v3366 = vsel %vm3365, %v3364, %v3363
    %v3368 = vrot.slane %v2425, 5
    %v3369 = vrot.slane %v2426, 4
    %vm3370 = vcmask 1047559
    %v3371 = vsel %vm3370, %v3369, %v3368
    %v3374 = vrot.slane %v2889, 3
    %v3375 = vrot.slane %v2890, 2
    %v3376 = vsel %vm3360, %v3375, %v3374
    %v3378 = vrot.slane %v3121, 2
    %v3379 = vrot.slane %v3122, 1
    %v3380 = vsel %vm3365, %v3379, %v3378
    %v3384 = vrot.slane %v3353, 1
    %v3385 = vsel %vm3370, %v3354, %v3384
    %vm3387 = vcmask 1041408
    %v3388 = vsel %vm3387, %v1726, %v3361
    %vm3389 = vcmask 1043456
    %v3390 = vsel %vm3389, %v3388, %v3366
    %vm3391 = vcmask 1045504
    %v3392 = vsel %vm3391, %v3390, %v3371
    %v3393 = vsel %vm3387, %v2665, %v3376
    %v3394 = vsel %vm3389, %v3393, %v3380
    %v3395 = vsel %vm3391, %v3394, %v3385
    %v3398 = vrot.slane %v3355, 7
    %v3399 = vrot.slane %v3356, 6
    %v3400 = vsel %vm1725, %v3399, %v3398
    %v3402 = vrot.slane %v3123, 4
    %v3403 = vrot.slane %v3124, 3
    %v3404 = vsel %vm3360, %v3403, %v3402
    %v3406 = vrot.slane %v2891, 1
    %v3407 = vsel %vm3365, %v2892, %v3406
    %v3409 = vrot.slane %v2659, 6
    %v3410 = vrot.slane %v2660, 5
    %v3411 = vsel %vm3370, %v3410, %v3409
    %v3414 = vrot.slane %v2188, 7
    %v3415 = vsel %vm3360, %v3414, %v2187
    %v3417 = vrot.slane %v1949, 5
    %v3418 = vrot.slane %v1950, 4
    %v3419 = vsel %vm3365, %v3418, %v3417
    %v3421 = vrot.slane %v1712, 2
    %v3422 = vrot.slane %v1713, 1
    %v3423 = vsel %vm3370, %v3422, %v3421
    %v3425 = vsel %vm3387, %v3400, %v3404
    %v3426 = vsel %vm3389, %v3425, %v3407
    %v3427 = vsel %vm3391, %v3426, %v3411
    %v3428 = vsel %vm3387, %v2462, %v3415
    %v3429 = vsel %vm3389, %v3428, %v3419
    %v3430 = vsel %vm3391, %v3429, %v3423
    %3433 = vrot.lane.b32.xlu0 %v3392, 80
    %v3434 = vpop.permute.xlu0 %3433
    %3435 = vrot.lane.b32.xlu0 %v3395, 80
    %v3436 = vpop.permute.xlu0 %3435
    %3441 = vrot.lane.b32.xlu0 %v3427, 96
    %v3442 = vpop.permute.xlu0 %3441
    %3443 = vrot.lane.b32.xlu0 %v3430, 96
    %v3444 = vpop.permute.xlu0 %3443
    %v3447 = vsel %vm258, %v3434, %v3442
    %v3448 = vsel %vm258, %v3436, %v3444
    %v3449 = vld [vmem:[#allocation7] sm:$0xff]
    %v3450 = vld [vmem:[#allocation7 + $0x8] sm:$0xff]
    %v3451 = vld [vmem:[#allocation7 + $0x10] sm:$0xff]
    %v3452 = vld [vmem:[#allocation7 + $0x18] sm:$0xff]
    %v3453 = vld [vmem:[%s20] sm:$0x1]
    %v3455 = vperm.slane %v3453, 0
    %v3458 = vsel %vm135, %v3447, 0
    %v3461 = vsel %vm135, %v3448, 0
    %3463 = vmatpush.msra.mxu0 0.0
    %3464 = vmatpush.msra.mxu0 0.0
    %3465 = vmatpush.msra.mxu0 0.0
    %3466 = vmatpush.msra.mxu0 0.0
    %3467 = vmatpush.msra.mxu0 0.0
    %3468 = vmatpush.msra.mxu0 0.0
    %3469 = vmatpush.msra.mxu0 0.0
    %3470 = vmatpush.msra.mxu0 0.0
    %3471 = vmatpush.msra.mxu0 0.0
    %3472 = vmatpush.msra.mxu0 0.0
    %3473 = vmatpush.msra.mxu0 0.0
    %3474 = vmatpush.msra.mxu0 0.0
    %3475 = vmatpush.msra.mxu0 %v3452
    %3476 = vmatpush.msra.mxu0 %v3451
    %3477 = vmatpush.msra.mxu0 %v3450
    %3478 = vmatpush.msra.mxu0 %v3449
    %3479 = vmatmul.f32.gmra.mxu0 %v3458
    %v3480 = vpop.f32.mrf.mxu0
    %v3481 = vadd.f32 %v3455, %v3480
    %3482 = vmatmul.f32.gmra.mxu0 %v3461
    %v3483 = vpop.f32.mrf.mxu0
    %v3484 = vadd.f32 %v3455, %v3483
    %3485 = vdwg.mxu0
    %3486 = vst.msk [vmem:[%s21] sm:$0xff] %vm361, %v3481
    %3487 = vst.msk [vmem:[%s21 + $0x8] sm:$0xff] %vm361, %v3484
    // Predicated region
    $region102: #{kobert_bilstm_crf_forward.1} parent=1 // pred_check
      _
    $region103: #{kobert_bilstm_crf_forward.1} parent=1 // pred_check_branch
      %3489 = sbr.rel (0) target = $region105
    $region104: #{kobert_bilstm_crf_forward.1} parent=1 // pred_region
      _
    $region105: #{kobert_bilstm_crf_forward.1} parent=1 // pred_fallthru
      _
    // Predicated region
    $region106: #{kobert_bilstm_crf_forward.1} parent=1 // pred_check
      _
    $region107: #{kobert_bilstm_crf_forward.1} parent=1 // pred_check_branch
      %3491 = sbr.rel (0) target = $region109
    $region108: #{kobert_bilstm_crf_forward.1} parent=1 // pred_region
      _
    $region109: #{kobert_bilstm_crf_forward.1} parent=1 // pred_fallthru
      _
    %3492 = vsyncpa [#allocation3], 1
    %3493 = vsyncpa [#allocation5], 1
    %3494 = vsyncpa [#allocation8], 1

</llo_original>
